<compile_context>
chip_gen: v7x
topology: tpu7x:2x2x1
jax: 0.10.0
libtpu: 0.0.40
codegen_flags: <defaults>
</compile_context>

<pallas_src>
import math

import jax
import jax.numpy as jnp
from jax.experimental import pallas as pl
from jax.experimental.pallas import tpu as pltpu

# ----- small synthetic config (bert-base-uncased scaled down) -----
VOCAB = 100
HIDDEN = 32
N_LAYERS = 2
N_HEADS = 4
HEAD_DIM = HIDDEN // N_HEADS
INTER = 64
MAX_POS = 16
TYPE_VOCAB = 2
LN_EPS = 1e-12
ATTN_SCALE = 1.0 / math.sqrt(HEAD_DIM)


# ----------------------------- kernel helpers -----------------------------
def _gelu_tanh(x):
    # TODO(synk): HF bert-base uses exact erf-GELU; tanh approximation used here.
    c = math.sqrt(2.0 / math.pi)
    return 0.5 * x * (1.0 + jnp.tanh(c * (x + 0.044715 * x * x * x)))


def _layernorm(x, gamma, beta):
    mu = jnp.mean(x, axis=-1, keepdims=True)
    var = jnp.mean(jnp.square(x - mu), axis=-1, keepdims=True)
    return (x - mu) * jax.lax.rsqrt(var + LN_EPS) * gamma + beta


# ----------------------------- embedding LayerNorm kernel -----------------------------
def _emb_layernorm_kernel(x_ref, g_ref, b_ref, o_ref):
    o_ref[...] = _layernorm(x_ref[...], g_ref[...], b_ref[...])


def emb_layernorm(x, gamma, beta):
    M, H = x.shape
    vspec = pl.BlockSpec(memory_space=pltpu.MemorySpace.VMEM)
    return pl.pallas_call(
        _emb_layernorm_kernel,
        out_shape=jax.ShapeDtypeStruct((M, H), jnp.float32),
        in_specs=[vspec, vspec, vspec],
        out_specs=vspec,
    )(x, gamma.reshape(1, H), beta.reshape(1, H))


# ----------------------------- fused encoder-layer kernel -----------------------------
def _layer_kernel(h_ref, mb_ref, wqkv_ref, bqkv_ref, wo_ref, bo_ref,
                  ln1g_ref, ln1b_ref, w1_ref, b1_ref, w2_ref, b2_ref,
                  ln2g_ref, ln2b_ref, o_ref):
    h = h_ref[...]                                             # [S, H]
    mb = mb_ref[...]                                           # [1, S] additive key bias

    # fused QKV projection (one MXU matmul instead of three)
    qkv = jnp.dot(h, wqkv_ref[...], preferred_element_type=jnp.float32)
    qkv = qkv + bqkv_ref[...]                                  # [S, 3H]

    # per-head attention via static lane slices (no reshape/transpose round-trips)
    ctx_parts = []
    for hd in range(N_HEADS):
        lo = hd * HEAD_DIM
        q = qkv[:, lo:lo + HEAD_DIM]                                   # [S, D]
        k = qkv[:, HIDDEN + lo:HIDDEN + lo + HEAD_DIM]                 # [S, D]
        v = qkv[:, 2 * HIDDEN + lo:2 * HIDDEN + lo + HEAD_DIM]         # [S, D]
        s = jax.lax.dot_general(
            q, k, (((1,), (1,)), ((), ())),
            preferred_element_type=jnp.float32) * ATTN_SCALE           # [S, S]
        s = s + mb                                                     # key mask bias
        s = s - jnp.max(s, axis=-1, keepdims=True)
        p = jnp.exp(s)
        p = p * pl.reciprocal(jnp.sum(p, axis=-1, keepdims=True), approx=True)
        ctx_parts.append(jnp.dot(p, v, preferred_element_type=jnp.float32))
    ctx = jnp.concatenate(ctx_parts, axis=-1)                          # [S, H]

    # output projection + residual + LayerNorm (fused epilogue)
    attn = jnp.dot(ctx, wo_ref[...], preferred_element_type=jnp.float32) + bo_ref[...]
    h1 = _layernorm(attn + h, ln1g_ref[...], ln1b_ref[...])

    # FFN: matmul + GELU + matmul + residual + LayerNorm (fused epilogue)
    ff = jnp.dot(h1, w1_ref[...], preferred_element_type=jnp.float32) + b1_ref[...]
    ff = _gelu_tanh(ff)
    ff = jnp.dot(ff, w2_ref[...], preferred_element_type=jnp.float32) + b2_ref[...]
    o_ref[...] = _layernorm(ff + h1, ln2g_ref[...], ln2b_ref[...])


def encoder_layer(h, mask_bias, lp, B, S):
    # h: [B*S, H] (batch-major rows); mask_bias: [B, 1, S] additive bias
    def repl(shape):
        nd = len(shape)
        return pl.BlockSpec(shape, lambda b: (0,) * nd)

    in_specs = [
        pl.BlockSpec((S, HIDDEN), lambda b: (b, 0)),          # h rows of batch b
        pl.BlockSpec((None, 1, S), lambda b: (b, 0, 0)),      # mask bias -> [1, S]
        repl((HIDDEN, 3 * HIDDEN)), repl((1, 3 * HIDDEN)),    # wqkv, bqkv
        repl((HIDDEN, HIDDEN)), repl((1, HIDDEN)),            # wo, bo
        repl((1, HIDDEN)), repl((1, HIDDEN)),                 # ln1 gamma/beta
        repl((HIDDEN, INTER)), repl((1, INTER)),              # w1, b1
        repl((INTER, HIDDEN)), repl((1, HIDDEN)),             # w2, b2
        repl((1, HIDDEN)), repl((1, HIDDEN)),                 # ln2 gamma/beta
    ]
    return pl.pallas_call(
        _layer_kernel,
        out_shape=jax.ShapeDtypeStruct((B * S, HIDDEN), jnp.float32),
        grid=(B,),
        in_specs=in_specs,
        out_specs=pl.BlockSpec((S, HIDDEN), lambda b: (b, 0)),
        compiler_params=pltpu.CompilerParams(dimension_semantics=("parallel",)),
    )(h, mask_bias,
      lp["wqkv"], lp["bqkv"].reshape(1, -1),
      lp["wo"], lp["bo"].reshape(1, -1),
      lp["ln1_g"].reshape(1, -1), lp["ln1_b"].reshape(1, -1),
      lp["w1"], lp["b1"].reshape(1, -1),
      lp["w2"], lp["b2"].reshape(1, -1),
      lp["ln2_g"].reshape(1, -1), lp["ln2_b"].reshape(1, -1))


# ----------------------------- model -----------------------------
def init_params(key):
    # TODO(synk): pretrained bert-base-uncased weights are replaced with synthetic
    # small-config parameters (no file/network access allowed in-script).
    def nrm(k, shape):
        return 0.02 * jax.random.normal(k, shape, jnp.float32)

    keys = jax.random.split(key, 3 + N_LAYERS)
    params = dict(
        word_emb=nrm(keys[0], (VOCAB, HIDDEN)),
        pos_emb=nrm(keys[1], (MAX_POS, HIDDEN)),
        type_emb=nrm(keys[2], (TYPE_VOCAB, HIDDEN)),
        emb_ln_g=jnp.ones((HIDDEN,), jnp.float32),
        emb_ln_b=jnp.zeros((HIDDEN,), jnp.float32),
        layers=[],
    )
    for i in range(N_LAYERS):
        lk = jax.random.split(keys[3 + i], 4)
        params["layers"].append(dict(
            wqkv=nrm(lk[0], (HIDDEN, 3 * HIDDEN)),            # fused Q|K|V weight
            bqkv=jnp.zeros((3 * HIDDEN,), jnp.float32),
            wo=nrm(lk[1], (HIDDEN, HIDDEN)), bo=jnp.zeros((HIDDEN,), jnp.float32),
            ln1_g=jnp.ones((HIDDEN,), jnp.float32),
            ln1_b=jnp.zeros((HIDDEN,), jnp.float32),
            w1=nrm(lk[2], (HIDDEN, INTER)), b1=jnp.zeros((INTER,), jnp.float32),
            w2=nrm(lk[3], (INTER, HIDDEN)), b2=jnp.zeros((HIDDEN,), jnp.float32),
            ln2_g=jnp.ones((HIDDEN,), jnp.float32),
            ln2_b=jnp.zeros((HIDDEN,), jnp.float32),
        ))
    return params


def bert_forward(params, text, mask=None):
    """Equivalent of `self.bert(text, attention_mask=mask)[0]` (eval mode)."""
    B, S = text.shape
    if mask is None:
        mask = jnp.ones((B, S), jnp.float32)
    # hoisted once: HF-style additive attention bias, -10000 on masked keys
    mask_bias = ((mask.astype(jnp.float32) - 1.0) * 10000.0).reshape(B, 1, S)

    # embeddings: word + position + token_type(=0), then LayerNorm
    we = jnp.take(params["word_emb"], text, axis=0)            # [B,S,H]
    pe = params["pos_emb"][:S][None, :, :]                     # [1,S,H]
    te = params["type_emb"][0][None, None, :]                  # token_type_ids = 0
    emb = (we + pe + te).reshape(B * S, HIDDEN).astype(jnp.float32)
    h = emb_layernorm(emb, params["emb_ln_g"], params["emb_ln_b"])

    # TODO(synk): dropout omitted (inference/eval semantics).
    for lp in params["layers"]:
        h = encoder_layer(h, mask_bias, lp, B, S)

    return h.reshape(B, S, HIDDEN)


if __name__ == "__main__":
    key = jax.random.PRNGKey(0)
    pkey, tkey = jax.random.split(key)
    params = init_params(pkey)

    B, S = 2, 8
    text = jax.random.randint(tkey, (B, S), 0, VOCAB, dtype=jnp.int32)
    mask = jnp.ones((B, S), jnp.float32).at[1, 6:].set(0.0)

    out = jax.jit(bert_forward)(params, text, mask)
    out = jax.block_until_ready(out)
    assert out.shape == (B, S, HIDDEN), out.shape
    assert bool(jnp.all(jnp.isfinite(out)))
    print("KERNEL_OK")
</pallas_src>

<mosaic_0001>
module attributes {stable_mosaic.version = 11 : i64} {
  func.func @_emb_layernorm_kernel(%arg0: memref<16x32xf32, #tpu.memory_space<vmem>>, %arg1: memref<1x32xf32, #tpu.memory_space<vmem>>, %arg2: memref<1x32xf32, #tpu.memory_space<vmem>>, %arg3: memref<16x32xf32, #tpu.memory_space<vmem>>) attributes {dimension_semantics = [], scalar_prefetch = 0 : i64, scratch_operands = 0 : i64, tpu.core_type = #tpu.core_type<tc>} {
    %c0 = arith.constant 0 : index
    %c0_0 = arith.constant 0 : index
    %0 = vector.load %arg0[%c0, %c0_0] : memref<16x32xf32, #tpu.memory_space<vmem>>, vector<16x32xf32>
    %c0_1 = arith.constant 0 : index
    %c0_2 = arith.constant 0 : index
    %1 = vector.load %arg1[%c0_1, %c0_2] : memref<1x32xf32, #tpu.memory_space<vmem>>, vector<1x32xf32>
    %c0_3 = arith.constant 0 : index
    %c0_4 = arith.constant 0 : index
    %2 = vector.load %arg2[%c0_3, %c0_4] : memref<1x32xf32, #tpu.memory_space<vmem>>, vector<1x32xf32>
    %cst = arith.constant dense<0.000000e+00> : vector<16xf32>
    %3 = vector.multi_reduction <add>, %0, %cst [1] : vector<16x32xf32> to vector<16xf32>
    %4 = vector.shape_cast %3 : vector<16xf32> to vector<16x1xf32>
    %cst_5 = arith.constant 3.200000e+01 : f32
    %5 = vector.broadcast %cst_5 : f32 to vector<16x1xf32>
    %6 = arith.divf %4, %5 : vector<16x1xf32>
    %7 = vector.broadcast %6 : vector<16x1xf32> to vector<16x32xf32>
    %8 = arith.subf %0, %7 : vector<16x32xf32>
    %9 = arith.mulf %8, %8 : vector<16x32xf32>
    %cst_6 = arith.constant dense<0.000000e+00> : vector<16xf32>
    %10 = vector.multi_reduction <add>, %9, %cst_6 [1] : vector<16x32xf32> to vector<16xf32>
    %11 = vector.shape_cast %10 : vector<16xf32> to vector<16x1xf32>
    %cst_7 = arith.constant 3.200000e+01 : f32
    %12 = vector.broadcast %cst_7 : f32 to vector<16x1xf32>
    %13 = arith.divf %11, %12 : vector<16x1xf32>
    %14 = vector.broadcast %6 : vector<16x1xf32> to vector<16x32xf32>
    %15 = arith.subf %0, %14 : vector<16x32xf32>
    %cst_8 = arith.constant 9.99999996E-13 : f32
    %16 = vector.broadcast %cst_8 : f32 to vector<16x1xf32>
    %17 = arith.addf %13, %16 : vector<16x1xf32>
    %18 = math.rsqrt %17 : vector<16x1xf32>
    %19 = vector.broadcast %18 : vector<16x1xf32> to vector<16x32xf32>
    %20 = arith.mulf %15, %19 : vector<16x32xf32>
    %21 = vector.broadcast %1 : vector<1x32xf32> to vector<16x32xf32>
    %22 = arith.mulf %20, %21 : vector<16x32xf32>
    %23 = vector.broadcast %2 : vector<1x32xf32> to vector<16x32xf32>
    %24 = arith.addf %22, %23 : vector<16x32xf32>
    %c0_9 = arith.constant 0 : index
    %c0_10 = arith.constant 0 : index
    %25 = vector.load %arg3[%c0_9, %c0_10] : memref<16x32xf32, #tpu.memory_space<vmem>>, vector<16x32xf32>
    tpu.vector_store %arg3[%c0_9, %c0_10], %24 {strides = array<i32>} : memref<16x32xf32, #tpu.memory_space<vmem>>, vector<16x32xf32>,
    return
  }
}

module attributes {stable_mosaic.version = 11 : i64} {
  func.func @_layer_kernel(%arg0: i32, %arg1: memref<8x32xf32, #tpu.memory_space<vmem>>, %arg2: memref<1x1x8xf32, #tpu.memory_space<vmem>>, %arg3: memref<32x96xf32, #tpu.memory_space<vmem>>, %arg4: memref<1x96xf32, #tpu.memory_space<vmem>>, %arg5: memref<32x32xf32, #tpu.memory_space<vmem>>, %arg6: memref<1x32xf32, #tpu.memory_space<vmem>>, %arg7: memref<1x32xf32, #tpu.memory_space<vmem>>, %arg8: memref<1x32xf32, #tpu.memory_space<vmem>>, %arg9: memref<32x64xf32, #tpu.memory_space<vmem>>, %arg10: memref<1x64xf32, #tpu.memory_space<vmem>>, %arg11: memref<64x32xf32, #tpu.memory_space<vmem>>, %arg12: memref<1x32xf32, #tpu.memory_space<vmem>>, %arg13: memref<1x32xf32, #tpu.memory_space<vmem>>, %arg14: memref<1x32xf32, #tpu.memory_space<vmem>>, %arg15: memref<8x32xf32, #tpu.memory_space<vmem>>) attributes {dimension_semantics = [#tpu.dimension_semantics<parallel>], iteration_bounds = array<i64: 2>, scalar_prefetch = 0 : i64, scratch_operands = 0 : i64, tpu.core_type = #tpu.core_type<tc>, window_params = [{transform_indices = @transform_0, window_bounds = array<i64: 8, 32>}, {transform_indices = @transform_1, window_bounds = array<i64: 1, 1, 8>}, {pipeline_mode = #tpu.pipeline_mode<synchronous>, transform_indices = @transform_2, window_bounds = array<i64: 32, 96>}, {pipeline_mode = #tpu.pipeline_mode<synchronous>, transform_indices = @transform_3, window_bounds = array<i64: 1, 96>}, {pipeline_mode = #tpu.pipeline_mode<synchronous>, transform_indices = @transform_4, window_bounds = array<i64: 32, 32>}, {pipeline_mode = #tpu.pipeline_mode<synchronous>, transform_indices = @transform_5, window_bounds = array<i64: 1, 32>}, {pipeline_mode = #tpu.pipeline_mode<synchronous>, transform_indices = @transform_6, window_bounds = array<i64: 1, 32>}, {pipeline_mode = #tpu.pipeline_mode<synchronous>, transform_indices = @transform_7, window_bounds = array<i64: 1, 32>}, {pipeline_mode = #tpu.pipeline_mode<synchronous>, transform_indices = @transform_8, window_bounds = array<i64: 32, 64>}, {pipeline_mode = #tpu.pipeline_mode<synchronous>, transform_indices = @transform_9, window_bounds = array<i64: 1, 64>}, {pipeline_mode = #tpu.pipeline_mode<synchronous>, transform_indices = @transform_10, window_bounds = array<i64: 64, 32>}, {pipeline_mode = #tpu.pipeline_mode<synchronous>, transform_indices = @transform_11, window_bounds = array<i64: 1, 32>}, {pipeline_mode = #tpu.pipeline_mode<synchronous>, transform_indices = @transform_12, window_bounds = array<i64: 1, 32>}, {pipeline_mode = #tpu.pipeline_mode<synchronous>, transform_indices = @transform_13, window_bounds = array<i64: 1, 32>}, {transform_indices = @transform_14, window_bounds = array<i64: 8, 32>}]} {
    %c0 = arith.constant 0 : index
    %c0_0 = arith.constant 0 : index
    %0 = vector.load %arg1[%c0, %c0_0] : memref<8x32xf32, #tpu.memory_space<vmem>>, vector<8x32xf32>
    %c0_1 = arith.constant 0 : index
    %c0_2 = arith.constant 0 : index
    %c0_3 = arith.constant 0 : index
    %1 = vector.load %arg2[%c0_1, %c0_2, %c0_3] : memref<1x1x8xf32, #tpu.memory_space<vmem>>, vector<1x1x8xf32>
    %2 = vector.shape_cast %1 : vector<1x1x8xf32> to vector<1x8xf32>
    %c0_4 = arith.constant 0 : index
    %c0_5 = arith.constant 0 : index
    %3 = vector.load %arg3[%c0_4, %c0_5] : memref<32x96xf32, #tpu.memory_space<vmem>>, vector<32x96xf32>
    %cst = arith.constant dense<0.000000e+00> : vector<8x96xf32>
    %4 = tpu.matmul %0, %3, %cst {dimension_numbers = #tpu.dot_dimension_numbers<[1], [0], [0], [1], [0, 0, 1, 1], [], []>} : vector<8x32xf32>, vector<32x96xf32>, vector<8x96xf32> -> vector<8x96xf32>
    %c0_6 = arith.constant 0 : index
    %c0_7 = arith.constant 0 : index
    %5 = vector.load %arg4[%c0_6, %c0_7] : memref<1x96xf32, #tpu.memory_space<vmem>>, vector<1x96xf32>
    %6 = vector.broadcast %5 : vector<1x96xf32> to vector<8x96xf32>
    %7 = arith.addf %4, %6 : vector<8x96xf32>
    %8 = vector.extract_strided_slice %7 {offsets = [0, 0], sizes = [8, 8], strides = [1, 1]} : vector<8x96xf32> to vector<8x8xf32>
    %9 = vector.extract_strided_slice %7 {offsets = [0, 32], sizes = [8, 8], strides = [1, 1]} : vector<8x96xf32> to vector<8x8xf32>
    %10 = vector.extract_strided_slice %7 {offsets = [0, 64], sizes = [8, 8], strides = [1, 1]} : vector<8x96xf32> to vector<8x8xf32>
    %cst_8 = arith.constant dense<0.000000e+00> : vector<8x8xf32>
    %11 = tpu.matmul %8, %9, %cst_8 {dimension_numbers = #tpu.dot_dimension_numbers<[1], [1], [0], [0], [0, 0, 1, 0], [], []>} : vector<8x8xf32>, vector<8x8xf32>, vector<8x8xf32> -> vector<8x8xf32>
    %cst_9 = arith.constant 0.353553385 : f32
    %12 = vector.broadcast %cst_9 : f32 to vector<8x8xf32>
    %13 = arith.mulf %11, %12 : vector<8x8xf32>
    %14 = vector.broadcast %2 : vector<1x8xf32> to vector<8x8xf32>
    %15 = arith.addf %13, %14 : vector<8x8xf32>
    %cst_10 = arith.constant dense<0xFF800000> : vector<8xf32>
    %16 = vector.multi_reduction <maximumf>, %15, %cst_10 [1] : vector<8x8xf32> to vector<8xf32>
    %17 = vector.shape_cast %16 : vector<8xf32> to vector<8x1xf32>
    %18 = vector.broadcast %17 : vector<8x1xf32> to vector<8x8xf32>
    %19 = arith.subf %15, %18 : vector<8x8xf32>
    %20 = math.exp %19 : vector<8x8xf32>
    %cst_11 = arith.constant dense<0.000000e+00> : vector<8xf32>
    %21 = vector.multi_reduction <add>, %20, %cst_11 [1] : vector<8x8xf32> to vector<8xf32>
    %22 = vector.shape_cast %21 : vector<8xf32> to vector<8x1xf32>
    %23 = tpu.reciprocal %22 {approx = true} : vector<8x1xf32> -> vector<8x1xf32>
    %24 = vector.broadcast %23 : vector<8x1xf32> to vector<8x8xf32>
    %25 = arith.mulf %20, %24 : vector<8x8xf32>
    %cst_12 = arith.constant dense<0.000000e+00> : vector<8x8xf32>
    %26 = tpu.matmul %25, %10, %cst_12 {dimension_numbers = #tpu.dot_dimension_numbers<[1], [0], [0], [1], [0, 0, 1, 1], [], []>} : vector<8x8xf32>, vector<8x8xf32>, vector<8x8xf32> -> vector<8x8xf32>
    %27 = vector.extract_strided_slice %7 {offsets = [0, 8], sizes = [8, 8], strides = [1, 1]} : vector<8x96xf32> to vector<8x8xf32>
    %28 = vector.extract_strided_slice %7 {offsets = [0, 40], sizes = [8, 8], strides = [1, 1]} : vector<8x96xf32> to vector<8x8xf32>
    %29 = vector.extract_strided_slice %7 {offsets = [0, 72], sizes = [8, 8], strides = [1, 1]} : vector<8x96xf32> to vector<8x8xf32>
    %cst_13 = arith.constant dense<0.000000e+00> : vector<8x8xf32>
    %30 = tpu.matmul %27, %28, %cst_13 {dimension_numbers = #tpu.dot_dimension_numbers<[1], [1], [0], [0], [0, 0, 1, 0], [], []>} : vector<8x8xf32>, vector<8x8xf32>, vector<8x8xf32> -> vector<8x8xf32>
    %cst_14 = arith.constant 0.353553385 : f32
    %31 = vector.broadcast %cst_14 : f32 to vector<8x8xf32>
    %32 = arith.mulf %30, %31 : vector<8x8xf32>
    %33 = vector.broadcast %2 : vector<1x8xf32> to vector<8x8xf32>
    %34 = arith.addf %32, %33 : vector<8x8xf32>
    %cst_15 = arith.constant dense<0xFF800000> : vector<8xf32>
    %35 = vector.multi_reduction <maximumf>, %34, %cst_15 [1] : vector<8x8xf32> to vector<8xf32>
    %36 = vector.shape_cast %35 : vector<8xf32> to vector<8x1xf32>
    %37 = vector.broadcast %36 : vector<8x1xf32> to vector<8x8xf32>
    %38 = arith.subf %34, %37 : vector<8x8xf32>
    %39 = math.exp %38 : vector<8x8xf32>
    %cst_16 = arith.constant dense<0.000000e+00> : vector<8xf32>
    %40 = vector.multi_reduction <add>, %39, %cst_16 [1] : vector<8x8xf32> to vector<8xf32>
    %41 = vector.shape_cast %40 : vector<8xf32> to vector<8x1xf32>
    %42 = tpu.reciprocal %41 {approx = true} : vector<8x1xf32> -> vector<8x1xf32>
    %43 = vector.broadcast %42 : vector<8x1xf32> to vector<8x8xf32>
    %44 = arith.mulf %39, %43 : vector<8x8xf32>
    %cst_17 = arith.constant dense<0.000000e+00> : vector<8x8xf32>
    %45 = tpu.matmul %44, %29, %cst_17 {dimension_numbers = #tpu.dot_dimension_numbers<[1], [0], [0], [1], [0, 0, 1, 1], [], []>} : vector<8x8xf32>, vector<8x8xf32>, vector<8x8xf32> -> vector<8x8xf32>
    %46 = vector.extract_strided_slice %7 {offsets = [0, 16], sizes = [8, 8], strides = [1, 1]} : vector<8x96xf32> to vector<8x8xf32>
    %47 = vector.extract_strided_slice %7 {offsets = [0, 48], sizes = [8, 8], strides = [1, 1]} : vector<8x96xf32> to vector<8x8xf32>
    %48 = vector.extract_strided_slice %7 {offsets = [0, 80], sizes = [8, 8], strides = [1, 1]} : vector<8x96xf32> to vector<8x8xf32>
    %cst_18 = arith.constant dense<0.000000e+00> : vector<8x8xf32>
    %49 = tpu.matmul %46, %47, %cst_18 {dimension_numbers = #tpu.dot_dimension_numbers<[1], [1], [0], [0], [0, 0, 1, 0], [], []>} : vector<8x8xf32>, vector<8x8xf32>, vector<8x8xf32> -> vector<8x8xf32>
    %cst_19 = arith.constant 0.353553385 : f32
    %50 = vector.broadcast %cst_19 : f32 to vector<8x8xf32>
    %51 = arith.mulf %49, %50 : vector<8x8xf32>
    %52 = vector.broadcast %2 : vector<1x8xf32> to vector<8x8xf32>
    %53 = arith.addf %51, %52 : vector<8x8xf32>
    %cst_20 = arith.constant dense<0xFF800000> : vector<8xf32>
    %54 = vector.multi_reduction <maximumf>, %53, %cst_20 [1] : vector<8x8xf32> to vector<8xf32>
    %55 = vector.shape_cast %54 : vector<8xf32> to vector<8x1xf32>
    %56 = vector.broadcast %55 : vector<8x1xf32> to vector<8x8xf32>
    %57 = arith.subf %53, %56 : vector<8x8xf32>
    %58 = math.exp %57 : vector<8x8xf32>
    %cst_21 = arith.constant dense<0.000000e+00> : vector<8xf32>
    %59 = vector.multi_reduction <add>, %58, %cst_21 [1] : vector<8x8xf32> to vector<8xf32>
    %60 = vector.shape_cast %59 : vector<8xf32> to vector<8x1xf32>
    %61 = tpu.reciprocal %60 {approx = true} : vector<8x1xf32> -> vector<8x1xf32>
    %62 = vector.broadcast %61 : vector<8x1xf32> to vector<8x8xf32>
    %63 = arith.mulf %58, %62 : vector<8x8xf32>
    %cst_22 = arith.constant dense<0.000000e+00> : vector<8x8xf32>
    %64 = tpu.matmul %63, %48, %cst_22 {dimension_numbers = #tpu.dot_dimension_numbers<[1], [0], [0], [1], [0, 0, 1, 1], [], []>} : vector<8x8xf32>, vector<8x8xf32>, vector<8x8xf32> -> vector<8x8xf32>
    %65 = vector.extract_strided_slice %7 {offsets = [0, 24], sizes = [8, 8], strides = [1, 1]} : vector<8x96xf32> to vector<8x8xf32>
    %66 = vector.extract_strided_slice %7 {offsets = [0, 56], sizes = [8, 8], strides = [1, 1]} : vector<8x96xf32> to vector<8x8xf32>
    %67 = vector.extract_strided_slice %7 {offsets = [0, 88], sizes = [8, 8], strides = [1, 1]} : vector<8x96xf32> to vector<8x8xf32>
    %cst_23 = arith.constant dense<0.000000e+00> : vector<8x8xf32>
    %68 = tpu.matmul %65, %66, %cst_23 {dimension_numbers = #tpu.dot_dimension_numbers<[1], [1], [0], [0], [0, 0, 1, 0], [], []>} : vector<8x8xf32>, vector<8x8xf32>, vector<8x8xf32> -> vector<8x8xf32>
    %cst_24 = arith.constant 0.353553385 : f32
    %69 = vector.broadcast %cst_24 : f32 to vector<8x8xf32>
    %70 = arith.mulf %68, %69 : vector<8x8xf32>
    %71 = vector.broadcast %2 : vector<1x8xf32> to vector<8x8xf32>
    %72 = arith.addf %70, %71 : vector<8x8xf32>
    %cst_25 = arith.constant dense<0xFF800000> : vector<8xf32>
    %73 = vector.multi_reduction <maximumf>, %72, %cst_25 [1] : vector<8x8xf32> to vector<8xf32>
    %74 = vector.shape_cast %73 : vector<8xf32> to vector<8x1xf32>
    %75 = vector.broadcast %74 : vector<8x1xf32> to vector<8x8xf32>
    %76 = arith.subf %72, %75 : vector<8x8xf32>
    %77 = math.exp %76 : vector<8x8xf32>
    %cst_26 = arith.constant dense<0.000000e+00> : vector<8xf32>
    %78 = vector.multi_reduction <add>, %77, %cst_26 [1] : vector<8x8xf32> to vector<8xf32>
    %79 = vector.shape_cast %78 : vector<8xf32> to vector<8x1xf32>
    %80 = tpu.reciprocal %79 {approx = true} : vector<8x1xf32> -> vector<8x1xf32>
    %81 = vector.broadcast %80 : vector<8x1xf32> to vector<8x8xf32>
    %82 = arith.mulf %77, %81 : vector<8x8xf32>
    %cst_27 = arith.constant dense<0.000000e+00> : vector<8x8xf32>
    %83 = tpu.matmul %82, %67, %cst_27 {dimension_numbers = #tpu.dot_dimension_numbers<[1], [0], [0], [1], [0, 0, 1, 1], [], []>} : vector<8x8xf32>, vector<8x8xf32>, vector<8x8xf32> -> vector<8x8xf32>
    %84 = tpu.concatenate %26, %45, %64, %83 in 1 : vector<8x8xf32>, vector<8x8xf32>, vector<8x8xf32>, vector<8x8xf32> -> vector<8x32xf32>
    %c0_28 = arith.constant 0 : index
    %c0_29 = arith.constant 0 : index
    %85 = vector.load %arg5[%c0_28, %c0_29] : memref<32x32xf32, #tpu.memory_space<vmem>>, vector<32x32xf32>
    %cst_30 = arith.constant dense<0.000000e+00> : vector<8x32xf32>
    %86 = tpu.matmul %84, %85, %cst_30 {dimension_numbers = #tpu.dot_dimension_numbers<[1], [0], [0], [1], [0, 0, 1, 1], [], []>} : vector<8x32xf32>, vector<32x32xf32>, vector<8x32xf32> -> vector<8x32xf32>
    %c0_31 = arith.constant 0 : index
    %c0_32 = arith.constant 0 : index
    %87 = vector.load %arg6[%c0_31, %c0_32] : memref<1x32xf32, #tpu.memory_space<vmem>>, vector<1x32xf32>
    %88 = vector.broadcast %87 : vector<1x32xf32> to vector<8x32xf32>
    %89 = arith.addf %86, %88 : vector<8x32xf32>
    %90 = arith.addf %89, %0 : vector<8x32xf32>
    %c0_33 = arith.constant 0 : index
    %c0_34 = arith.constant 0 : index
    %91 = vector.load %arg7[%c0_33, %c0_34] : memref<1x32xf32, #tpu.memory_space<vmem>>, vector<1x32xf32>
    %c0_35 = arith.constant 0 : index
    %c0_36 = arith.constant 0 : index
    %92 = vector.load %arg8[%c0_35, %c0_36] : memref<1x32xf32, #tpu.memory_space<vmem>>, vector<1x32xf32>
    %cst_37 = arith.constant dense<0.000000e+00> : vector<8xf32>
    %93 = vector.multi_reduction <add>, %90, %cst_37 [1] : vector<8x32xf32> to vector<8xf32>
    %94 = vector.shape_cast %93 : vector<8xf32> to vector<8x1xf32>
    %cst_38 = arith.constant 3.200000e+01 : f32
    %95 = vector.broadcast %cst_38 : f32 to vector<8x1xf32>
    %96 = arith.divf %94, %95 : vector<8x1xf32>
    %97 = vector.broadcast %96 : vector<8x1xf32> to vector<8x32xf32>
    %98 = arith.subf %90, %97 : vector<8x32xf32>
    %99 = arith.mulf %98, %98 : vector<8x32xf32>
    %cst_39 = arith.constant dense<0.000000e+00> : vector<8xf32>
    %100 = vector.multi_reduction <add>, %99, %cst_39 [1] : vector<8x32xf32> to vector<8xf32>
    %101 = vector.shape_cast %100 : vector<8xf32> to vector<8x1xf32>
    %cst_40 = arith.constant 3.200000e+01 : f32
    %102 = vector.broadcast %cst_40 : f32 to vector<8x1xf32>
    %103 = arith.divf %101, %102 : vector<8x1xf32>
    %104 = vector.broadcast %96 : vector<8x1xf32> to vector<8x32xf32>
    %105 = arith.subf %90, %104 : vector<8x32xf32>
    %cst_41 = arith.constant 9.99999996E-13 : f32
    %106 = vector.broadcast %cst_41 : f32 to vector<8x1xf32>
    %107 = arith.addf %103, %106 : vector<8x1xf32>
    %108 = math.rsqrt %107 : vector<8x1xf32>
    %109 = vector.broadcast %108 : vector<8x1xf32> to vector<8x32xf32>
    %110 = arith.mulf %105, %109 : vector<8x32xf32>
    %111 = vector.broadcast %91 : vector<1x32xf32> to vector<8x32xf32>
    %112 = arith.mulf %110, %111 : vector<8x32xf32>
    %113 = vector.broadcast %92 : vector<1x32xf32> to vector<8x32xf32>
    %114 = arith.addf %112, %113 : vector<8x32xf32>
    %c0_42 = arith.constant 0 : index
    %c0_43 = arith.constant 0 : index
    %115 = vector.load %arg9[%c0_42, %c0_43] : memref<32x64xf32, #tpu.memory_space<vmem>>, vector<32x64xf32>
    %cst_44 = arith.constant dense<0.000000e+00> : vector<8x64xf32>
    %116 = tpu.matmul %114, %115, %cst_44 {dimension_numbers = #tpu.dot_dimension_numbers<[1], [0], [0], [1], [0, 0, 1, 1], [], []>} : vector<8x32xf32>, vector<32x64xf32>, vector<8x64xf32> -> vector<8x64xf32>
    %c0_45 = arith.constant 0 : index
    %c0_46 = arith.constant 0 : index
    %117 = vector.load %arg10[%c0_45, %c0_46] : memref<1x64xf32, #tpu.memory_space<vmem>>, vector<1x64xf32>
    %118 = vector.broadcast %117 : vector<1x64xf32> to vector<8x64xf32>
    %119 = arith.addf %116, %118 : vector<8x64xf32>
    %cst_47 = arith.constant 5.000000e-01 : f32
    %120 = vector.broadcast %cst_47 : f32 to vector<8x64xf32>
    %121 = arith.mulf %120, %119 : vector<8x64xf32>
    %cst_48 = arith.constant 4.471500e-02 : f32
    %122 = vector.broadcast %cst_48 : f32 to vector<8x64xf32>
    %123 = arith.mulf %122, %119 : vector<8x64xf32>
    %124 = arith.mulf %123, %119 : vector<8x64xf32>
    %125 = arith.mulf %124, %119 : vector<8x64xf32>
    %126 = arith.addf %119, %125 : vector<8x64xf32>
    %cst_49 = arith.constant 0.797884583 : f32
    %127 = vector.broadcast %cst_49 : f32 to vector<8x64xf32>
    %128 = arith.mulf %127, %126 : vector<8x64xf32>
    %129 = math.tanh %128 : vector<8x64xf32>
    %cst_50 = arith.constant 1.000000e+00 : f32
    %130 = vector.broadcast %cst_50 : f32 to vector<8x64xf32>
    %131 = arith.addf %130, %129 : vector<8x64xf32>
    %132 = arith.mulf %121, %131 : vector<8x64xf32>
    %c0_51 = arith.constant 0 : index
    %c0_52 = arith.constant 0 : index
    %133 = vector.load %arg11[%c0_51, %c0_52] : memref<64x32xf32, #tpu.memory_space<vmem>>, vector<64x32xf32>
    %cst_53 = arith.constant dense<0.000000e+00> : vector<8x32xf32>
    %134 = tpu.matmul %132, %133, %cst_53 {dimension_numbers = #tpu.dot_dimension_numbers<[1], [0], [0], [1], [0, 0, 1, 1], [], []>} : vector<8x64xf32>, vector<64x32xf32>, vector<8x32xf32> -> vector<8x32xf32>
    %c0_54 = arith.constant 0 : index
    %c0_55 = arith.constant 0 : index
    %135 = vector.load %arg12[%c0_54, %c0_55] : memref<1x32xf32, #tpu.memory_space<vmem>>, vector<1x32xf32>
    %136 = vector.broadcast %135 : vector<1x32xf32> to vector<8x32xf32>
    %137 = arith.addf %134, %136 : vector<8x32xf32>
    %138 = arith.addf %137, %114 : vector<8x32xf32>
    %c0_56 = arith.constant 0 : index
    %c0_57 = arith.constant 0 : index
    %139 = vector.load %arg13[%c0_56, %c0_57] : memref<1x32xf32, #tpu.memory_space<vmem>>, vector<1x32xf32>
    %c0_58 = arith.constant 0 : index
    %c0_59 = arith.constant 0 : index
    %140 = vector.load %arg14[%c0_58, %c0_59] : memref<1x32xf32, #tpu.memory_space<vmem>>, vector<1x32xf32>
    %cst_60 = arith.constant dense<0.000000e+00> : vector<8xf32>
    %141 = vector.multi_reduction <add>, %138, %cst_60 [1] : vector<8x32xf32> to vector<8xf32>
    %142 = vector.shape_cast %141 : vector<8xf32> to vector<8x1xf32>
    %cst_61 = arith.constant 3.200000e+01 : f32
    %143 = vector.broadcast %cst_61 : f32 to vector<8x1xf32>
    %144 = arith.divf %142, %143 : vector<8x1xf32>
    %145 = vector.broadcast %144 : vector<8x1xf32> to vector<8x32xf32>
    %146 = arith.subf %138, %145 : vector<8x32xf32>
    %147 = arith.mulf %146, %146 : vector<8x32xf32>
    %cst_62 = arith.constant dense<0.000000e+00> : vector<8xf32>
    %148 = vector.multi_reduction <add>, %147, %cst_62 [1] : vector<8x32xf32> to vector<8xf32>
    %149 = vector.shape_cast %148 : vector<8xf32> to vector<8x1xf32>
    %cst_63 = arith.constant 3.200000e+01 : f32
    %150 = vector.broadcast %cst_63 : f32 to vector<8x1xf32>
    %151 = arith.divf %149, %150 : vector<8x1xf32>
    %152 = vector.broadcast %144 : vector<8x1xf32> to vector<8x32xf32>
    %153 = arith.subf %138, %152 : vector<8x32xf32>
    %cst_64 = arith.constant 9.99999996E-13 : f32
    %154 = vector.broadcast %cst_64 : f32 to vector<8x1xf32>
    %155 = arith.addf %151, %154 : vector<8x1xf32>
    %156 = math.rsqrt %155 : vector<8x1xf32>
    %157 = vector.broadcast %156 : vector<8x1xf32> to vector<8x32xf32>
    %158 = arith.mulf %153, %157 : vector<8x32xf32>
    %159 = vector.broadcast %139 : vector<1x32xf32> to vector<8x32xf32>
    %160 = arith.mulf %158, %159 : vector<8x32xf32>
    %161 = vector.broadcast %140 : vector<1x32xf32> to vector<8x32xf32>
    %162 = arith.addf %160, %161 : vector<8x32xf32>
    %c0_65 = arith.constant 0 : index
    %c0_66 = arith.constant 0 : index
    %163 = vector.load %arg15[%c0_65, %c0_66] : memref<8x32xf32, #tpu.memory_space<vmem>>, vector<8x32xf32>
    tpu.vector_store %arg15[%c0_65, %c0_66], %162 {strides = array<i32>} : memref<8x32xf32, #tpu.memory_space<vmem>>, vector<8x32xf32>,
    return
  }
  func.func @transform_0(%arg0: i32) -> (i32, i32) {
    %c0_i32 = arith.constant 0 : i32
    %c0_i32_0 = arith.constant 0 : i32
    return %arg0, %c0_i32 : i32, i32
  }
  func.func @transform_1(%arg0: i32) -> (i32, i32, i32) {
    %c0_i32 = arith.constant 0 : i32
    %c0_i32_0 = arith.constant 0 : i32
    %c0_i32_1 = arith.constant 0 : i32
    return %arg0, %c0_i32, %c0_i32_0 : i32, i32, i32
  }
  func.func @transform_2(%arg0: i32) -> (i32, i32) {
    %c0_i32 = arith.constant 0 : i32
    %c0_i32_0 = arith.constant 0 : i32
    %c0_i32_1 = arith.constant 0 : i32
    return %c0_i32, %c0_i32_0 : i32, i32
  }
  func.func @transform_3(%arg0: i32) -> (i32, i32) {
    %c0_i32 = arith.constant 0 : i32
    %c0_i32_0 = arith.constant 0 : i32
    %c0_i32_1 = arith.constant 0 : i32
    return %c0_i32, %c0_i32_0 : i32, i32
  }
  func.func @transform_4(%arg0: i32) -> (i32, i32) {
    %c0_i32 = arith.constant 0 : i32
    %c0_i32_0 = arith.constant 0 : i32
    %c0_i32_1 = arith.constant 0 : i32
    return %c0_i32, %c0_i32_0 : i32, i32
  }
  func.func @transform_5(%arg0: i32) -> (i32, i32) {
    %c0_i32 = arith.constant 0 : i32
    %c0_i32_0 = arith.constant 0 : i32
    %c0_i32_1 = arith.constant 0 : i32
    return %c0_i32, %c0_i32_0 : i32, i32
  }
  func.func @transform_6(%arg0: i32) -> (i32, i32) {
    %c0_i32 = arith.constant 0 : i32
    %c0_i32_0 = arith.constant 0 : i32
    %c0_i32_1 = arith.constant 0 : i32
    return %c0_i32, %c0_i32_0 : i32, i32
  }
  func.func @transform_7(%arg0: i32) -> (i32, i32) {
    %c0_i32 = arith.constant 0 : i32
    %c0_i32_0 = arith.constant 0 : i32
    %c0_i32_1 = arith.constant 0 : i32
    return %c0_i32, %c0_i32_0 : i32, i32
  }
  func.func @transform_8(%arg0: i32) -> (i32, i32) {
    %c0_i32 = arith.constant 0 : i32
    %c0_i32_0 = arith.constant 0 : i32
    %c0_i32_1 = arith.constant 0 : i32
    return %c0_i32, %c0_i32_0 : i32, i32
  }
  func.func @transform_9(%arg0: i32) -> (i32, i32) {
    %c0_i32 = arith.constant 0 : i32
    %c0_i32_0 = arith.constant 0 : i32
    %c0_i32_1 = arith.constant 0 : i32
    return %c0_i32, %c0_i32_0 : i32, i32
  }
  func.func @transform_10(%arg0: i32) -> (i32, i32) {
    %c0_i32 = arith.constant 0 : i32
    %c0_i32_0 = arith.constant 0 : i32
    %c0_i32_1 = arith.constant 0 : i32
    return %c0_i32, %c0_i32_0 : i32, i32
  }
  func.func @transform_11(%arg0: i32) -> (i32, i32) {
    %c0_i32 = arith.constant 0 : i32
    %c0_i32_0 = arith.constant 0 : i32
    %c0_i32_1 = arith.constant 0 : i32
    return %c0_i32, %c0_i32_0 : i32, i32
  }
  func.func @transform_12(%arg0: i32) -> (i32, i32) {
    %c0_i32 = arith.constant 0 : i32
    %c0_i32_0 = arith.constant 0 : i32
    %c0_i32_1 = arith.constant 0 : i32
    return %c0_i32, %c0_i32_0 : i32, i32
  }
  func.func @transform_13(%arg0: i32) -> (i32, i32) {
    %c0_i32 = arith.constant 0 : i32
    %c0_i32_0 = arith.constant 0 : i32
    %c0_i32_1 = arith.constant 0 : i32
    return %c0_i32, %c0_i32_0 : i32, i32
  }
  func.func @transform_14(%arg0: i32) -> (i32, i32) {
    %c0_i32 = arith.constant 0 : i32
    %c0_i32_0 = arith.constant 0 : i32
    return %arg0, %c0_i32 : i32, i32
  }
}

module attributes {stable_mosaic.version = 11 : i64} {
  func.func @_layer_kernel(%arg0: i32, %arg1: memref<8x32xf32, #tpu.memory_space<vmem>>, %arg2: memref<1x1x8xf32, #tpu.memory_space<vmem>>, %arg3: memref<32x96xf32, #tpu.memory_space<vmem>>, %arg4: memref<1x96xf32, #tpu.memory_space<vmem>>, %arg5: memref<32x32xf32, #tpu.memory_space<vmem>>, %arg6: memref<1x32xf32, #tpu.memory_space<vmem>>, %arg7: memref<1x32xf32, #tpu.memory_space<vmem>>, %arg8: memref<1x32xf32, #tpu.memory_space<vmem>>, %arg9: memref<32x64xf32, #tpu.memory_space<vmem>>, %arg10: memref<1x64xf32, #tpu.memory_space<vmem>>, %arg11: memref<64x32xf32, #tpu.memory_space<vmem>>, %arg12: memref<1x32xf32, #tpu.memory_space<vmem>>, %arg13: memref<1x32xf32, #tpu.memory_space<vmem>>, %arg14: memref<1x32xf32, #tpu.memory_space<vmem>>, %arg15: memref<8x32xf32, #tpu.memory_space<vmem>>) attributes {dimension_semantics = [#tpu.dimension_semantics<parallel>], iteration_bounds = array<i64: 2>, scalar_prefetch = 0 : i64, scratch_operands = 0 : i64, tpu.core_type = #tpu.core_type<tc>, window_params = [{transform_indices = @transform_0, window_bounds = array<i64: 8, 32>}, {transform_indices = @transform_1, window_bounds = array<i64: 1, 1, 8>}, {pipeline_mode = #tpu.pipeline_mode<synchronous>, transform_indices = @transform_2, window_bounds = array<i64: 32, 96>}, {pipeline_mode = #tpu.pipeline_mode<synchronous>, transform_indices = @transform_3, window_bounds = array<i64: 1, 96>}, {pipeline_mode = #tpu.pipeline_mode<synchronous>, transform_indices = @transform_4, window_bounds = array<i64: 32, 32>}, {pipeline_mode = #tpu.pipeline_mode<synchronous>, transform_indices = @transform_5, window_bounds = array<i64: 1, 32>}, {pipeline_mode = #tpu.pipeline_mode<synchronous>, transform_indices = @transform_6, window_bounds = array<i64: 1, 32>}, {pipeline_mode = #tpu.pipeline_mode<synchronous>, transform_indices = @transform_7, window_bounds = array<i64: 1, 32>}, {pipeline_mode = #tpu.pipeline_mode<synchronous>, transform_indices = @transform_8, window_bounds = array<i64: 32, 64>}, {pipeline_mode = #tpu.pipeline_mode<synchronous>, transform_indices = @transform_9, window_bounds = array<i64: 1, 64>}, {pipeline_mode = #tpu.pipeline_mode<synchronous>, transform_indices = @transform_10, window_bounds = array<i64: 64, 32>}, {pipeline_mode = #tpu.pipeline_mode<synchronous>, transform_indices = @transform_11, window_bounds = array<i64: 1, 32>}, {pipeline_mode = #tpu.pipeline_mode<synchronous>, transform_indices = @transform_12, window_bounds = array<i64: 1, 32>}, {pipeline_mode = #tpu.pipeline_mode<synchronous>, transform_indices = @transform_13, window_bounds = array<i64: 1, 32>}, {transform_indices = @transform_14, window_bounds = array<i64: 8, 32>}]} {
    %c0 = arith.constant 0 : index
    %c0_0 = arith.constant 0 : index
    %0 = vector.load %arg1[%c0, %c0_0] : memref<8x32xf32, #tpu.memory_space<vmem>>, vector<8x32xf32>
    %c0_1 = arith.constant 0 : index
    %c0_2 = arith.constant 0 : index
    %c0_3 = arith.constant 0 : index
    %1 = vector.load %arg2[%c0_1, %c0_2, %c0_3] : memref<1x1x8xf32, #tpu.memory_space<vmem>>, vector<1x1x8xf32>
    %2 = vector.shape_cast %1 : vector<1x1x8xf32> to vector<1x8xf32>
    %c0_4 = arith.constant 0 : index
    %c0_5 = arith.constant 0 : index
    %3 = vector.load %arg3[%c0_4, %c0_5] : memref<32x96xf32, #tpu.memory_space<vmem>>, vector<32x96xf32>
    %cst = arith.constant dense<0.000000e+00> : vector<8x96xf32>
    %4 = tpu.matmul %0, %3, %cst {dimension_numbers = #tpu.dot_dimension_numbers<[1], [0], [0], [1], [0, 0, 1, 1], [], []>} : vector<8x32xf32>, vector<32x96xf32>, vector<8x96xf32> -> vector<8x96xf32>
    %c0_6 = arith.constant 0 : index
    %c0_7 = arith.constant 0 : index
    %5 = vector.load %arg4[%c0_6, %c0_7] : memref<1x96xf32, #tpu.memory_space<vmem>>, vector<1x96xf32>
    %6 = vector.broadcast %5 : vector<1x96xf32> to vector<8x96xf32>
    %7 = arith.addf %4, %6 : vector<8x96xf32>
    %8 = vector.extract_strided_slice %7 {offsets = [0, 0], sizes = [8, 8], strides = [1, 1]} : vector<8x96xf32> to vector<8x8xf32>
    %9 = vector.extract_strided_slice %7 {offsets = [0, 32], sizes = [8, 8], strides = [1, 1]} : vector<8x96xf32> to vector<8x8xf32>
    %10 = vector.extract_strided_slice %7 {offsets = [0, 64], sizes = [8, 8], strides = [1, 1]} : vector<8x96xf32> to vector<8x8xf32>
    %cst_8 = arith.constant dense<0.000000e+00> : vector<8x8xf32>
    %11 = tpu.matmul %8, %9, %cst_8 {dimension_numbers = #tpu.dot_dimension_numbers<[1], [1], [0], [0], [0, 0, 1, 0], [], []>} : vector<8x8xf32>, vector<8x8xf32>, vector<8x8xf32> -> vector<8x8xf32>
    %cst_9 = arith.constant 0.353553385 : f32
    %12 = vector.broadcast %cst_9 : f32 to vector<8x8xf32>
    %13 = arith.mulf %11, %12 : vector<8x8xf32>
    %14 = vector.broadcast %2 : vector<1x8xf32> to vector<8x8xf32>
    %15 = arith.addf %13, %14 : vector<8x8xf32>
    %cst_10 = arith.constant dense<0xFF800000> : vector<8xf32>
    %16 = vector.multi_reduction <maximumf>, %15, %cst_10 [1] : vector<8x8xf32> to vector<8xf32>
    %17 = vector.shape_cast %16 : vector<8xf32> to vector<8x1xf32>
    %18 = vector.broadcast %17 : vector<8x1xf32> to vector<8x8xf32>
    %19 = arith.subf %15, %18 : vector<8x8xf32>
    %20 = math.exp %19 : vector<8x8xf32>
    %cst_11 = arith.constant dense<0.000000e+00> : vector<8xf32>
    %21 = vector.multi_reduction <add>, %20, %cst_11 [1] : vector<8x8xf32> to vector<8xf32>
    %22 = vector.shape_cast %21 : vector<8xf32> to vector<8x1xf32>
    %23 = tpu.reciprocal %22 {approx = true} : vector<8x1xf32> -> vector<8x1xf32>
    %24 = vector.broadcast %23 : vector<8x1xf32> to vector<8x8xf32>
    %25 = arith.mulf %20, %24 : vector<8x8xf32>
    %cst_12 = arith.constant dense<0.000000e+00> : vector<8x8xf32>
    %26 = tpu.matmul %25, %10, %cst_12 {dimension_numbers = #tpu.dot_dimension_numbers<[1], [0], [0], [1], [0, 0, 1, 1], [], []>} : vector<8x8xf32>, vector<8x8xf32>, vector<8x8xf32> -> vector<8x8xf32>
    %27 = vector.extract_strided_slice %7 {offsets = [0, 8], sizes = [8, 8], strides = [1, 1]} : vector<8x96xf32> to vector<8x8xf32>
    %28 = vector.extract_strided_slice %7 {offsets = [0, 40], sizes = [8, 8], strides = [1, 1]} : vector<8x96xf32> to vector<8x8xf32>
    %29 = vector.extract_strided_slice %7 {offsets = [0, 72], sizes = [8, 8], strides = [1, 1]} : vector<8x96xf32> to vector<8x8xf32>
    %cst_13 = arith.constant dense<0.000000e+00> : vector<8x8xf32>
    %30 = tpu.matmul %27, %28, %cst_13 {dimension_numbers = #tpu.dot_dimension_numbers<[1], [1], [0], [0], [0, 0, 1, 0], [], []>} : vector<8x8xf32>, vector<8x8xf32>, vector<8x8xf32> -> vector<8x8xf32>
    %cst_14 = arith.constant 0.353553385 : f32
    %31 = vector.broadcast %cst_14 : f32 to vector<8x8xf32>
    %32 = arith.mulf %30, %31 : vector<8x8xf32>
    %33 = vector.broadcast %2 : vector<1x8xf32> to vector<8x8xf32>
    %34 = arith.addf %32, %33 : vector<8x8xf32>
    %cst_15 = arith.constant dense<0xFF800000> : vector<8xf32>
    %35 = vector.multi_reduction <maximumf>, %34, %cst_15 [1] : vector<8x8xf32> to vector<8xf32>
    %36 = vector.shape_cast %35 : vector<8xf32> to vector<8x1xf32>
    %37 = vector.broadcast %36 : vector<8x1xf32> to vector<8x8xf32>
    %38 = arith.subf %34, %37 : vector<8x8xf32>
    %39 = math.exp %38 : vector<8x8xf32>
    %cst_16 = arith.constant dense<0.000000e+00> : vector<8xf32>
    %40 = vector.multi_reduction <add>, %39, %cst_16 [1] : vector<8x8xf32> to vector<8xf32>
    %41 = vector.shape_cast %40 : vector<8xf32> to vector<8x1xf32>
    %42 = tpu.reciprocal %41 {approx = true} : vector<8x1xf32> -> vector<8x1xf32>
    %43 = vector.broadcast %42 : vector<8x1xf32> to vector<8x8xf32>
    %44 = arith.mulf %39, %43 : vector<8x8xf32>
    %cst_17 = arith.constant dense<0.000000e+00> : vector<8x8xf32>
    %45 = tpu.matmul %44, %29, %cst_17 {dimension_numbers = #tpu.dot_dimension_numbers<[1], [0], [0], [1], [0, 0, 1, 1], [], []>} : vector<8x8xf32>, vector<8x8xf32>, vector<8x8xf32> -> vector<8x8xf32>
    %46 = vector.extract_strided_slice %7 {offsets = [0, 16], sizes = [8, 8], strides = [1, 1]} : vector<8x96xf32> to vector<8x8xf32>
    %47 = vector.extract_strided_slice %7 {offsets = [0, 48], sizes = [8, 8], strides = [1, 1]} : vector<8x96xf32> to vector<8x8xf32>
    %48 = vector.extract_strided_slice %7 {offsets = [0, 80], sizes = [8, 8], strides = [1, 1]} : vector<8x96xf32> to vector<8x8xf32>
    %cst_18 = arith.constant dense<0.000000e+00> : vector<8x8xf32>
    %49 = tpu.matmul %46, %47, %cst_18 {dimension_numbers = #tpu.dot_dimension_numbers<[1], [1], [0], [0], [0, 0, 1, 0], [], []>} : vector<8x8xf32>, vector<8x8xf32>, vector<8x8xf32> -> vector<8x8xf32>
    %cst_19 = arith.constant 0.353553385 : f32
    %50 = vector.broadcast %cst_19 : f32 to vector<8x8xf32>
    %51 = arith.mulf %49, %50 : vector<8x8xf32>
    %52 = vector.broadcast %2 : vector<1x8xf32> to vector<8x8xf32>
    %53 = arith.addf %51, %52 : vector<8x8xf32>
    %cst_20 = arith.constant dense<0xFF800000> : vector<8xf32>
    %54 = vector.multi_reduction <maximumf>, %53, %cst_20 [1] : vector<8x8xf32> to vector<8xf32>
    %55 = vector.shape_cast %54 : vector<8xf32> to vector<8x1xf32>
    %56 = vector.broadcast %55 : vector<8x1xf32> to vector<8x8xf32>
    %57 = arith.subf %53, %56 : vector<8x8xf32>
    %58 = math.exp %57 : vector<8x8xf32>
    %cst_21 = arith.constant dense<0.000000e+00> : vector<8xf32>
    %59 = vector.multi_reduction <add>, %58, %cst_21 [1] : vector<8x8xf32> to vector<8xf32>
    %60 = vector.shape_cast %59 : vector<8xf32> to vector<8x1xf32>
    %61 = tpu.reciprocal %60 {approx = true} : vector<8x1xf32> -> vector<8x1xf32>
    %62 = vector.broadcast %61 : vector<8x1xf32> to vector<8x8xf32>
    %63 = arith.mulf %58, %62 : vector<8x8xf32>
    %cst_22 = arith.constant dense<0.000000e+00> : vector<8x8xf32>
    %64 = tpu.matmul %63, %48, %cst_22 {dimension_numbers = #tpu.dot_dimension_numbers<[1], [0], [0], [1], [0, 0, 1, 1], [], []>} : vector<8x8xf32>, vector<8x8xf32>, vector<8x8xf32> -> vector<8x8xf32>
    %65 = vector.extract_strided_slice %7 {offsets = [0, 24], sizes = [8, 8], strides = [1, 1]} : vector<8x96xf32> to vector<8x8xf32>
    %66 = vector.extract_strided_slice %7 {offsets = [0, 56], sizes = [8, 8], strides = [1, 1]} : vector<8x96xf32> to vector<8x8xf32>
    %67 = vector.extract_strided_slice %7 {offsets = [0, 88], sizes = [8, 8], strides = [1, 1]} : vector<8x96xf32> to vector<8x8xf32>
    %cst_23 = arith.constant dense<0.000000e+00> : vector<8x8xf32>
    %68 = tpu.matmul %65, %66, %cst_23 {dimension_numbers = #tpu.dot_dimension_numbers<[1], [1], [0], [0], [0, 0, 1, 0], [], []>} : vector<8x8xf32>, vector<8x8xf32>, vector<8x8xf32> -> vector<8x8xf32>
    %cst_24 = arith.constant 0.353553385 : f32
    %69 = vector.broadcast %cst_24 : f32 to vector<8x8xf32>
    %70 = arith.mulf %68, %69 : vector<8x8xf32>
    %71 = vector.broadcast %2 : vector<1x8xf32> to vector<8x8xf32>
    %72 = arith.addf %70, %71 : vector<8x8xf32>
    %cst_25 = arith.constant dense<0xFF800000> : vector<8xf32>
    %73 = vector.multi_reduction <maximumf>, %72, %cst_25 [1] : vector<8x8xf32> to vector<8xf32>
    %74 = vector.shape_cast %73 : vector<8xf32> to vector<8x1xf32>
    %75 = vector.broadcast %74 : vector<8x1xf32> to vector<8x8xf32>
    %76 = arith.subf %72, %75 : vector<8x8xf32>
    %77 = math.exp %76 : vector<8x8xf32>
    %cst_26 = arith.constant dense<0.000000e+00> : vector<8xf32>
    %78 = vector.multi_reduction <add>, %77, %cst_26 [1] : vector<8x8xf32> to vector<8xf32>
    %79 = vector.shape_cast %78 : vector<8xf32> to vector<8x1xf32>
    %80 = tpu.reciprocal %79 {approx = true} : vector<8x1xf32> -> vector<8x1xf32>
    %81 = vector.broadcast %80 : vector<8x1xf32> to vector<8x8xf32>
    %82 = arith.mulf %77, %81 : vector<8x8xf32>
    %cst_27 = arith.constant dense<0.000000e+00> : vector<8x8xf32>
    %83 = tpu.matmul %82, %67, %cst_27 {dimension_numbers = #tpu.dot_dimension_numbers<[1], [0], [0], [1], [0, 0, 1, 1], [], []>} : vector<8x8xf32>, vector<8x8xf32>, vector<8x8xf32> -> vector<8x8xf32>
    %84 = tpu.concatenate %26, %45, %64, %83 in 1 : vector<8x8xf32>, vector<8x8xf32>, vector<8x8xf32>, vector<8x8xf32> -> vector<8x32xf32>
    %c0_28 = arith.constant 0 : index
    %c0_29 = arith.constant 0 : index
    %85 = vector.load %arg5[%c0_28, %c0_29] : memref<32x32xf32, #tpu.memory_space<vmem>>, vector<32x32xf32>
    %cst_30 = arith.constant dense<0.000000e+00> : vector<8x32xf32>
    %86 = tpu.matmul %84, %85, %cst_30 {dimension_numbers = #tpu.dot_dimension_numbers<[1], [0], [0], [1], [0, 0, 1, 1], [], []>} : vector<8x32xf32>, vector<32x32xf32>, vector<8x32xf32> -> vector<8x32xf32>
    %c0_31 = arith.constant 0 : index
    %c0_32 = arith.constant 0 : index
    %87 = vector.load %arg6[%c0_31, %c0_32] : memref<1x32xf32, #tpu.memory_space<vmem>>, vector<1x32xf32>
    %88 = vector.broadcast %87 : vector<1x32xf32> to vector<8x32xf32>
    %89 = arith.addf %86, %88 : vector<8x32xf32>
    %90 = arith.addf %89, %0 : vector<8x32xf32>
    %c0_33 = arith.constant 0 : index
    %c0_34 = arith.constant 0 : index
    %91 = vector.load %arg7[%c0_33, %c0_34] : memref<1x32xf32, #tpu.memory_space<vmem>>, vector<1x32xf32>
    %c0_35 = arith.constant 0 : index
    %c0_36 = arith.constant 0 : index
    %92 = vector.load %arg8[%c0_35, %c0_36] : memref<1x32xf32, #tpu.memory_space<vmem>>, vector<1x32xf32>
    %cst_37 = arith.constant dense<0.000000e+00> : vector<8xf32>
    %93 = vector.multi_reduction <add>, %90, %cst_37 [1] : vector<8x32xf32> to vector<8xf32>
    %94 = vector.shape_cast %93 : vector<8xf32> to vector<8x1xf32>
    %cst_38 = arith.constant 3.200000e+01 : f32
    %95 = vector.broadcast %cst_38 : f32 to vector<8x1xf32>
    %96 = arith.divf %94, %95 : vector<8x1xf32>
    %97 = vector.broadcast %96 : vector<8x1xf32> to vector<8x32xf32>
    %98 = arith.subf %90, %97 : vector<8x32xf32>
    %99 = arith.mulf %98, %98 : vector<8x32xf32>
    %cst_39 = arith.constant dense<0.000000e+00> : vector<8xf32>
    %100 = vector.multi_reduction <add>, %99, %cst_39 [1] : vector<8x32xf32> to vector<8xf32>
    %101 = vector.shape_cast %100 : vector<8xf32> to vector<8x1xf32>
    %cst_40 = arith.constant 3.200000e+01 : f32
    %102 = vector.broadcast %cst_40 : f32 to vector<8x1xf32>
    %103 = arith.divf %101, %102 : vector<8x1xf32>
    %104 = vector.broadcast %96 : vector<8x1xf32> to vector<8x32xf32>
    %105 = arith.subf %90, %104 : vector<8x32xf32>
    %cst_41 = arith.constant 9.99999996E-13 : f32
    %106 = vector.broadcast %cst_41 : f32 to vector<8x1xf32>
    %107 = arith.addf %103, %106 : vector<8x1xf32>
    %108 = math.rsqrt %107 : vector<8x1xf32>
    %109 = vector.broadcast %108 : vector<8x1xf32> to vector<8x32xf32>
    %110 = arith.mulf %105, %109 : vector<8x32xf32>
    %111 = vector.broadcast %91 : vector<1x32xf32> to vector<8x32xf32>
    %112 = arith.mulf %110, %111 : vector<8x32xf32>
    %113 = vector.broadcast %92 : vector<1x32xf32> to vector<8x32xf32>
    %114 = arith.addf %112, %113 : vector<8x32xf32>
    %c0_42 = arith.constant 0 : index
    %c0_43 = arith.constant 0 : index
    %115 = vector.load %arg9[%c0_42, %c0_43] : memref<32x64xf32, #tpu.memory_space<vmem>>, vector<32x64xf32>
    %cst_44 = arith.constant dense<0.000000e+00> : vector<8x64xf32>
    %116 = tpu.matmul %114, %115, %cst_44 {dimension_numbers = #tpu.dot_dimension_numbers<[1], [0], [0], [1], [0, 0, 1, 1], [], []>} : vector<8x32xf32>, vector<32x64xf32>, vector<8x64xf32> -> vector<8x64xf32>
    %c0_45 = arith.constant 0 : index
    %c0_46 = arith.constant 0 : index
    %117 = vector.load %arg10[%c0_45, %c0_46] : memref<1x64xf32, #tpu.memory_space<vmem>>, vector<1x64xf32>
    %118 = vector.broadcast %117 : vector<1x64xf32> to vector<8x64xf32>
    %119 = arith.addf %116, %118 : vector<8x64xf32>
    %cst_47 = arith.constant 5.000000e-01 : f32
    %120 = vector.broadcast %cst_47 : f32 to vector<8x64xf32>
    %121 = arith.mulf %120, %119 : vector<8x64xf32>
    %cst_48 = arith.constant 4.471500e-02 : f32
    %122 = vector.broadcast %cst_48 : f32 to vector<8x64xf32>
    %123 = arith.mulf %122, %119 : vector<8x64xf32>
    %124 = arith.mulf %123, %119 : vector<8x64xf32>
    %125 = arith.mulf %124, %119 : vector<8x64xf32>
    %126 = arith.addf %119, %125 : vector<8x64xf32>
    %cst_49 = arith.constant 0.797884583 : f32
    %127 = vector.broadcast %cst_49 : f32 to vector<8x64xf32>
    %128 = arith.mulf %127, %126 : vector<8x64xf32>
    %129 = math.tanh %128 : vector<8x64xf32>
    %cst_50 = arith.constant 1.000000e+00 : f32
    %130 = vector.broadcast %cst_50 : f32 to vector<8x64xf32>
    %131 = arith.addf %130, %129 : vector<8x64xf32>
    %132 = arith.mulf %121, %131 : vector<8x64xf32>
    %c0_51 = arith.constant 0 : index
    %c0_52 = arith.constant 0 : index
    %133 = vector.load %arg11[%c0_51, %c0_52] : memref<64x32xf32, #tpu.memory_space<vmem>>, vector<64x32xf32>
    %cst_53 = arith.constant dense<0.000000e+00> : vector<8x32xf32>
    %134 = tpu.matmul %132, %133, %cst_53 {dimension_numbers = #tpu.dot_dimension_numbers<[1], [0], [0], [1], [0, 0, 1, 1], [], []>} : vector<8x64xf32>, vector<64x32xf32>, vector<8x32xf32> -> vector<8x32xf32>
    %c0_54 = arith.constant 0 : index
    %c0_55 = arith.constant 0 : index
    %135 = vector.load %arg12[%c0_54, %c0_55] : memref<1x32xf32, #tpu.memory_space<vmem>>, vector<1x32xf32>
    %136 = vector.broadcast %135 : vector<1x32xf32> to vector<8x32xf32>
    %137 = arith.addf %134, %136 : vector<8x32xf32>
    %138 = arith.addf %137, %114 : vector<8x32xf32>
    %c0_56 = arith.constant 0 : index
    %c0_57 = arith.constant 0 : index
    %139 = vector.load %arg13[%c0_56, %c0_57] : memref<1x32xf32, #tpu.memory_space<vmem>>, vector<1x32xf32>
    %c0_58 = arith.constant 0 : index
    %c0_59 = arith.constant 0 : index
    %140 = vector.load %arg14[%c0_58, %c0_59] : memref<1x32xf32, #tpu.memory_space<vmem>>, vector<1x32xf32>
    %cst_60 = arith.constant dense<0.000000e+00> : vector<8xf32>
    %141 = vector.multi_reduction <add>, %138, %cst_60 [1] : vector<8x32xf32> to vector<8xf32>
    %142 = vector.shape_cast %141 : vector<8xf32> to vector<8x1xf32>
    %cst_61 = arith.constant 3.200000e+01 : f32
    %143 = vector.broadcast %cst_61 : f32 to vector<8x1xf32>
    %144 = arith.divf %142, %143 : vector<8x1xf32>
    %145 = vector.broadcast %144 : vector<8x1xf32> to vector<8x32xf32>
    %146 = arith.subf %138, %145 : vector<8x32xf32>
    %147 = arith.mulf %146, %146 : vector<8x32xf32>
    %cst_62 = arith.constant dense<0.000000e+00> : vector<8xf32>
    %148 = vector.multi_reduction <add>, %147, %cst_62 [1] : vector<8x32xf32> to vector<8xf32>
    %149 = vector.shape_cast %148 : vector<8xf32> to vector<8x1xf32>
    %cst_63 = arith.constant 3.200000e+01 : f32
    %150 = vector.broadcast %cst_63 : f32 to vector<8x1xf32>
    %151 = arith.divf %149, %150 : vector<8x1xf32>
    %152 = vector.broadcast %144 : vector<8x1xf32> to vector<8x32xf32>
    %153 = arith.subf %138, %152 : vector<8x32xf32>
    %cst_64 = arith.constant 9.99999996E-13 : f32
    %154 = vector.broadcast %cst_64 : f32 to vector<8x1xf32>
    %155 = arith.addf %151, %154 : vector<8x1xf32>
    %156 = math.rsqrt %155 : vector<8x1xf32>
    %157 = vector.broadcast %156 : vector<8x1xf32> to vector<8x32xf32>
    %158 = arith.mulf %153, %157 : vector<8x32xf32>
    %159 = vector.broadcast %139 : vector<1x32xf32> to vector<8x32xf32>
    %160 = arith.mulf %158, %159 : vector<8x32xf32>
    %161 = vector.broadcast %140 : vector<1x32xf32> to vector<8x32xf32>
    %162 = arith.addf %160, %161 : vector<8x32xf32>
    %c0_65 = arith.constant 0 : index
    %c0_66 = arith.constant 0 : index
    %163 = vector.load %arg15[%c0_65, %c0_66] : memref<8x32xf32, #tpu.memory_space<vmem>>, vector<8x32xf32>
    tpu.vector_store %arg15[%c0_65, %c0_66], %162 {strides = array<i32>} : memref<8x32xf32, #tpu.memory_space<vmem>>, vector<8x32xf32>,
    return
  }
  func.func @transform_0(%arg0: i32) -> (i32, i32) {
    %c0_i32 = arith.constant 0 : i32
    %c0_i32_0 = arith.constant 0 : i32
    return %arg0, %c0_i32 : i32, i32
  }
  func.func @transform_1(%arg0: i32) -> (i32, i32, i32) {
    %c0_i32 = arith.constant 0 : i32
    %c0_i32_0 = arith.constant 0 : i32
    %c0_i32_1 = arith.constant 0 : i32
    return %arg0, %c0_i32, %c0_i32_0 : i32, i32, i32
  }
  func.func @transform_2(%arg0: i32) -> (i32, i32) {
    %c0_i32 = arith.constant 0 : i32
    %c0_i32_0 = arith.constant 0 : i32
    %c0_i32_1 = arith.constant 0 : i32
    return %c0_i32, %c0_i32_0 : i32, i32
  }
  func.func @transform_3(%arg0: i32) -> (i32, i32) {
    %c0_i32 = arith.constant 0 : i32
    %c0_i32_0 = arith.constant 0 : i32
    %c0_i32_1 = arith.constant 0 : i32
    return %c0_i32, %c0_i32_0 : i32, i32
  }
  func.func @transform_4(%arg0: i32) -> (i32, i32) {
    %c0_i32 = arith.constant 0 : i32
    %c0_i32_0 = arith.constant 0 : i32
    %c0_i32_1 = arith.constant 0 : i32
    return %c0_i32, %c0_i32_0 : i32, i32
  }
  func.func @transform_5(%arg0: i32) -> (i32, i32) {
    %c0_i32 = arith.constant 0 : i32
    %c0_i32_0 = arith.constant 0 : i32
    %c0_i32_1 = arith.constant 0 : i32
    return %c0_i32, %c0_i32_0 : i32, i32
  }
  func.func @transform_6(%arg0: i32) -> (i32, i32) {
    %c0_i32 = arith.constant 0 : i32
    %c0_i32_0 = arith.constant 0 : i32
    %c0_i32_1 = arith.constant 0 : i32
    return %c0_i32, %c0_i32_0 : i32, i32
  }
  func.func @transform_7(%arg0: i32) -> (i32, i32) {
    %c0_i32 = arith.constant 0 : i32
    %c0_i32_0 = arith.constant 0 : i32
    %c0_i32_1 = arith.constant 0 : i32
    return %c0_i32, %c0_i32_0 : i32, i32
  }
  func.func @transform_8(%arg0: i32) -> (i32, i32) {
    %c0_i32 = arith.constant 0 : i32
    %c0_i32_0 = arith.constant 0 : i32
    %c0_i32_1 = arith.constant 0 : i32
    return %c0_i32, %c0_i32_0 : i32, i32
  }
  func.func @transform_9(%arg0: i32) -> (i32, i32) {
    %c0_i32 = arith.constant 0 : i32
    %c0_i32_0 = arith.constant 0 : i32
    %c0_i32_1 = arith.constant 0 : i32
    return %c0_i32, %c0_i32_0 : i32, i32
  }
  func.func @transform_10(%arg0: i32) -> (i32, i32) {
    %c0_i32 = arith.constant 0 : i32
    %c0_i32_0 = arith.constant 0 : i32
    %c0_i32_1 = arith.constant 0 : i32
    return %c0_i32, %c0_i32_0 : i32, i32
  }
  func.func @transform_11(%arg0: i32) -> (i32, i32) {
    %c0_i32 = arith.constant 0 : i32
    %c0_i32_0 = arith.constant 0 : i32
    %c0_i32_1 = arith.constant 0 : i32
    return %c0_i32, %c0_i32_0 : i32, i32
  }
  func.func @transform_12(%arg0: i32) -> (i32, i32) {
    %c0_i32 = arith.constant 0 : i32
    %c0_i32_0 = arith.constant 0 : i32
    %c0_i32_1 = arith.constant 0 : i32
    return %c0_i32, %c0_i32_0 : i32, i32
  }
  func.func @transform_13(%arg0: i32) -> (i32, i32) {
    %c0_i32 = arith.constant 0 : i32
    %c0_i32_0 = arith.constant 0 : i32
    %c0_i32_1 = arith.constant 0 : i32
    return %c0_i32, %c0_i32_0 : i32, i32
  }
  func.func @transform_14(%arg0: i32) -> (i32, i32) {
    %c0_i32 = arith.constant 0 : i32
    %c0_i32_0 = arith.constant 0 : i32
    return %arg0, %c0_i32 : i32, i32
  }
}

</mosaic_0001>

<llo_original>
// kernel: bert_forward.3
$region0: #{bert_forward.3}
  #allocation0 [shape = 'u32[]', space=smem, size = 0x4, offset = 0x4, fixed_abs, tag = 'smem constant byte address 0x4 - core index']
  #allocation1 [shape = 'u32[144,128]{1,0:T(1,128)}', space=vmem, size = 0x12000, scoped, tag = 'internal scratch']
  %s0 = inlined_call_operand.vmem [shape: f32[16,32], index: 0, kind: input, shape index: {}]
  %s1 = inlined_call_operand.vmem [shape: f32[1,32], index: 1, kind: input, shape index: {}]
  %s2 = inlined_call_operand.vmem [shape: f32[1,32], index: 2, kind: input, shape index: {}]
  %s3 = inlined_call_operand.vmem [shape: f32[16,32], index: 3, kind: output, shape index: {}]
  %s4 = sld [smem:[#allocation0]]
  $region22: #{bert_forward.3} parent=0
    _
  %s6 = ssub.s32 1, %s4
  %s7 = scalar_select 0, %s6, %s4
  // Predicated region
  $region2: #{bert_forward.3} parent=0 // pred_check
    _
  $region3: #{bert_forward.3} parent=0 // pred_check_branch
    %9 = sbr.rel (0) target = $region5
  $region4: #{bert_forward.3} parent=0 // pred_region
    _
  $region5: #{bert_forward.3} parent=0 // pred_fallthru
    _
  // Predicated region
  $region6: #{bert_forward.3} parent=0 // pred_check
    _
  $region7: #{bert_forward.3} parent=0 // pred_check_branch
    %11 = sbr.rel (0) target = $region9
  $region8: #{bert_forward.3} parent=0 // pred_region
    _
  $region9: #{bert_forward.3} parent=0 // pred_fallthru
    _
  // Predicated region
  $region10: #{bert_forward.3} parent=0 // pred_check
    _
  $region11: #{bert_forward.3} parent=0 // pred_check_branch
    %13 = sbr.rel (0) target = $region13
  $region12: #{bert_forward.3} parent=0 // pred_region
    _
  $region13: #{bert_forward.3} parent=0 // pred_fallthru
    _
  %v14 = vld [vmem:[%s0] sm:$0xff]
  %v15 = vld [vmem:[%s0 + $0x8] sm:$0xff]
  %v16 = vld [vmem:[%s1] sm:$0x1]
  %v17 = vld [vmem:[%s2] sm:$0x1]
  %vm18 = vcmask 261120
  %v19 = vsel %vm18, %v14, 0.0
  %20 = vadd.xlane.f32.xlu0 %v19
  %v21 = vpop.xlane.xlu0 %20
  %v22 = vsel %vm18, %v15, 0.0
  %23 = vadd.xlane.f32.xlu0 %v22
  %v24 = vpop.xlane.xlu0 %23
  %v25 = vrcp.pop 32.0
  %v26 = vmul.f32 %v21, %v25
  %v27 = vmul.f32 %v24, %v25
  %v28 = vsub.f32 %v14, %v26
  %v29 = vsub.f32 %v15, %v27
  %v30 = vmul.f32 %v28, %v28
  %v31 = vmul.f32 %v29, %v29
  %v32 = vsel %vm18, %v30, 0.0
  %33 = vadd.xlane.f32.xlu0 %v32
  %v34 = vpop.xlane.xlu0 %33
  %v35 = vsel %vm18, %v31, 0.0
  %36 = vadd.xlane.f32.xlu0 %v35
  %v37 = vpop.xlane.xlu0 %36
  %v38 = vmul.f32 %v34, %v25
  %v39 = vmul.f32 %v37, %v25
  %v40 = vadd.f32 %v38, 1e-12
  %v41 = vadd.f32 %v39, 1e-12
  %v42 = vrsqrt.pop %v40
  %v43 = vrsqrt.pop %v41
  %v44 = vmul.f32 %v28, %v42
  %v45 = vmul.f32 %v29, %v43
  %v47 = vlaneseq
  %v48 = vshrl.u32 %v47, 7
  %v49 = vsub.s32 0, %v48
  %v50 = vrot.slane %v16, %v49
  %v52 = vmul.f32 %v44, %v50
  %v53 = vmul.f32 %v45, %v50
  %v55 = vlaneseq
  %v56 = vshrl.u32 %v55, 7
  %v57 = vsub.s32 0, %v56
  %v58 = vrot.slane %v17, %v57
  %v60 = vadd.f32 %v52, %v58
  %v61 = vadd.f32 %v53, %v58
  %62 = vst.msk [vmem:[%s3] sm:$0xff] %vm18, %v60
  %63 = vst.msk [vmem:[%s3 + $0x8] sm:$0xff] %vm18, %v61
  // Predicated region
  $region14: #{bert_forward.3} parent=0 // pred_check
    _
  $region15: #{bert_forward.3} parent=0 // pred_check_branch
    %65 = sbr.rel (0) target = $region17
  $region16: #{bert_forward.3} parent=0 // pred_region
    _
  $region17: #{bert_forward.3} parent=0 // pred_fallthru
    _
  // Predicated region
  $region18: #{bert_forward.3} parent=0 // pred_check
    _
  $region19: #{bert_forward.3} parent=0 // pred_check_branch
    %67 = sbr.rel (0) target = $region21
  $region20: #{bert_forward.3} parent=0 // pred_region
    _
  $region21: #{bert_forward.3} parent=0 // pred_fallthru
    _

// kernel: bert_forward.4
$region0: #{bert_forward.4}
  #allocation0 [shape = 'u32[]', space=smem, size = 0x4, offset = 0x4, fixed_abs, tag = 'smem constant byte address 0x4 - core index']
  #allocation1 [shape = 'u32[144,128]{1,0:T(1,128)}', space=vmem, size = 0x12000, scoped, tag = 'internal scratch']
  %s0 = inlined_call_operand.vmem [shape: f32[16,32], index: 0, kind: input, shape index: {}]
  %s1 = inlined_call_operand.vmem [shape: f32[2,1,8], index: 1, kind: input, shape index: {}]
  %s2 = inlined_call_operand.vmem [shape: f32[32,96], index: 2, kind: input, shape index: {}]
  %s3 = inlined_call_operand.vmem [shape: f32[1,96], index: 3, kind: input, shape index: {}]
  %s4 = inlined_call_operand.vmem [shape: f32[32,32], index: 4, kind: input, shape index: {}]
  %s5 = inlined_call_operand.vmem [shape: f32[1,32], index: 5, kind: input, shape index: {}]
  %s6 = inlined_call_operand.vmem [shape: f32[1,32], index: 6, kind: input, shape index: {}]
  %s7 = inlined_call_operand.vmem [shape: f32[1,32], index: 7, kind: input, shape index: {}]
  %s8 = inlined_call_operand.vmem [shape: f32[32,64], index: 8, kind: input, shape index: {}]
  %s9 = inlined_call_operand.vmem [shape: f32[1,64], index: 9, kind: input, shape index: {}]
  %s10 = inlined_call_operand.vmem [shape: f32[64,32], index: 10, kind: input, shape index: {}]
  %s11 = inlined_call_operand.vmem [shape: f32[1,32], index: 11, kind: input, shape index: {}]
  %s12 = inlined_call_operand.vmem [shape: f32[1,32], index: 12, kind: input, shape index: {}]
  %s13 = inlined_call_operand.vmem [shape: f32[1,32], index: 13, kind: input, shape index: {}]
  %s14 = inlined_call_operand.vmem [shape: f32[16,32], index: 14, kind: output, shape index: {}]
  %s15 = sld [smem:[#allocation0]]
  $region89: #{bert_forward.4} parent=0
    _
  %s17 = ssub.s32 1, %s15
  %s18 = scalar_select 0, %s17, %s15
  loop: start=0, step=1, limit=4
  $region2: #{bert_forward.4} parent=0 // loop_pre_header
    _
  $region3: #{bert_forward.4} parent=0 // loop_header
    %s20 = sphi 0, %s24
    %p21 = scmp.ge.s32.totalorder %s20, 4
    %s30 = sphi 0, %s32
    %s33 = sphi 0, %s30
    %s34 = sphi 0, %s33
    %s50 = sphi 0, %s34
    %s56 = sphi 0, %s58
    %s59 = sphi 0, %s56
    %s60 = sphi 0, %s59
    %s76 = sphi 0, %s60
    %s80 = sphi 0, %s80
    %s82 = sphi 0, %s80
    %s83 = sphi 0, %s82
    %s97 = sphi 0, %s83
    %s101 = sphi 0, %s101
    %s103 = sphi 0, %s101
    %s104 = sphi 0, %s103
    %s118 = sphi 0, %s104
    %s122 = sphi 0, %s122
    %s124 = sphi 0, %s122
    %s125 = sphi 0, %s124
    %s139 = sphi 0, %s125
    %s143 = sphi 0, %s143
    %s145 = sphi 0, %s143
    %s146 = sphi 0, %s145
    %s160 = sphi 0, %s146
    %s164 = sphi 0, %s164
    %s166 = sphi 0, %s164
    %s167 = sphi 0, %s166
    %s181 = sphi 0, %s167
    %s185 = sphi 0, %s185
    %s187 = sphi 0, %s185
    %s188 = sphi 0, %s187
    %s202 = sphi 0, %s188
    %s206 = sphi 0, %s206
    %s208 = sphi 0, %s206
    %s209 = sphi 0, %s208
    %s223 = sphi 0, %s209
    %s227 = sphi 0, %s227
    %s229 = sphi 0, %s227
    %s230 = sphi 0, %s229
    %s244 = sphi 0, %s230
    %s248 = sphi 0, %s248
    %s250 = sphi 0, %s248
    %s251 = sphi 0, %s250
    %s265 = sphi 0, %s251
    %s269 = sphi 0, %s269
    %s271 = sphi 0, %s269
    %s272 = sphi 0, %s271
    %s286 = sphi 0, %s272
    %s290 = sphi 0, %s290
    %s292 = sphi 0, %s290
    %s293 = sphi 0, %s292
    %s307 = sphi 0, %s293
    %s311 = sphi 0, %s311
    %s313 = sphi 0, %s311
    %s314 = sphi 0, %s313
    %s328 = sphi 0, %s314
    %s334 = sphi 0, %s336
    %s337 = sphi 0, %s334
    %s338 = sphi 0, %s337
    %s354 = sphi 0, %s338
  $region4: #{bert_forward.4} parent=0 // loop_header_branch
    %23 = sbr.rel (%p21) target = $region8
  $region5: #{bert_forward.4} parent=0 // loop_body
    %s25 = ssub.s32 %s20, 1
    %s26 = ssub.s32 %s20, 2
    %s27 = sadd.s32 %s20, 1
    %s28 = ssub.s32 %s20, %s27
    %p29 = scmp.eq.s32.totalorder %s28, 0
    %s31 = sadd.s32 %s30, 1
    %s32 = scalar_select %p29, %s30, %s31
    %p35 = pneg %p29
    %p36 = scmp.eq.s32.totalorder %s20, 1
    %p37 = por %p35, %p36
    %p38 = scmp.ne.s32.totalorder %s30, %s33
    %p39 = scmp.eq.s32.totalorder %s20, 0
    %p40 = por %p38, %p39
    %p41 = scmp.ne.s32.totalorder %s30, %s33
    %p42 = scmp.eq.s32.totalorder %s25, 1
    %p43 = por %p41, %p42
    %p44 = scmp.ne.s32.totalorder %s33, %s34
    %p45 = scmp.eq.s32.totalorder %s25, 0
    %p46 = por %p44, %p45
    %p47 = scmp.ne.s32.totalorder %s33, %s34
    %p48 = scmp.eq.s32.totalorder %s26, 1
    %p49 = por %p47, %p48
    %p51 = scmp.ne.s32.totalorder %s34, %s50
    %p52 = scmp.eq.s32.totalorder %s26, 0
    %p53 = por %p51, %p52
    %s54 = ssub.s32 %s20, %s27
    %p55 = scmp.eq.s32.totalorder %s54, 0
    %s57 = sadd.s32 %s56, 1
    %s58 = scalar_select %p55, %s56, %s57
    %p61 = pneg %p55
    %p62 = scmp.eq.s32.totalorder %s20, 1
    %p63 = por %p61, %p62
    %p64 = scmp.ne.s32.totalorder %s56, %s59
    %p65 = scmp.eq.s32.totalorder %s20, 0
    %p66 = por %p64, %p65
    %p67 = scmp.ne.s32.totalorder %s56, %s59
    %p68 = scmp.eq.s32.totalorder %s25, 1
    %p69 = por %p67, %p68
    %p70 = scmp.ne.s32.totalorder %s59, %s60
    %p71 = scmp.eq.s32.totalorder %s25, 0
    %p72 = por %p70, %p71
    %p73 = scmp.ne.s32.totalorder %s59, %s60
    %p74 = scmp.eq.s32.totalorder %s26, 1
    %p75 = por %p73, %p74
    %p77 = scmp.ne.s32.totalorder %s60, %s76
    %p78 = scmp.eq.s32.totalorder %s26, 0
    %p79 = por %p77, %p78
    %s81 = sadd.s32 %s80, 1
    %p84 = scmp.eq.s32.totalorder %s20, 1
    %p85 = scmp.ne.s32.totalorder %s80, %s82
    %p86 = scmp.eq.s32.totalorder %s20, 0
    %p87 = por %p85, %p86
    %p88 = scmp.ne.s32.totalorder %s80, %s82
    %p89 = scmp.eq.s32.totalorder %s25, 1
    %p90 = por %p88, %p89
    %p91 = scmp.ne.s32.totalorder %s82, %s83
    %p92 = scmp.eq.s32.totalorder %s25, 0
    %p93 = por %p91, %p92
    %p94 = scmp.ne.s32.totalorder %s82, %s83
    %p95 = scmp.eq.s32.totalorder %s26, 1
    %p96 = por %p94, %p95
    %p98 = scmp.ne.s32.totalorder %s83, %s97
    %p99 = scmp.eq.s32.totalorder %s26, 0
    %p100 = por %p98, %p99
    %s102 = sadd.s32 %s101, 1
    %p105 = scmp.eq.s32.totalorder %s20, 1
    %p106 = scmp.ne.s32.totalorder %s101, %s103
    %p107 = scmp.eq.s32.totalorder %s20, 0
    %p108 = por %p106, %p107
    %p109 = scmp.ne.s32.totalorder %s101, %s103
    %p110 = scmp.eq.s32.totalorder %s25, 1
    %p111 = por %p109, %p110
    %p112 = scmp.ne.s32.totalorder %s103, %s104
    %p113 = scmp.eq.s32.totalorder %s25, 0
    %p114 = por %p112, %p113
    %p115 = scmp.ne.s32.totalorder %s103, %s104
    %p116 = scmp.eq.s32.totalorder %s26, 1
    %p117 = por %p115, %p116
    %p119 = scmp.ne.s32.totalorder %s104, %s118
    %p120 = scmp.eq.s32.totalorder %s26, 0
    %p121 = por %p119, %p120
    %s123 = sadd.s32 %s122, 1
    %p126 = scmp.eq.s32.totalorder %s20, 1
    %p127 = scmp.ne.s32.totalorder %s122, %s124
    %p128 = scmp.eq.s32.totalorder %s20, 0
    %p129 = por %p127, %p128
    %p130 = scmp.ne.s32.totalorder %s122, %s124
    %p131 = scmp.eq.s32.totalorder %s25, 1
    %p132 = por %p130, %p131
    %p133 = scmp.ne.s32.totalorder %s124, %s125
    %p134 = scmp.eq.s32.totalorder %s25, 0
    %p135 = por %p133, %p134
    %p136 = scmp.ne.s32.totalorder %s124, %s125
    %p137 = scmp.eq.s32.totalorder %s26, 1
    %p138 = por %p136, %p137
    %p140 = scmp.ne.s32.totalorder %s125, %s139
    %p141 = scmp.eq.s32.totalorder %s26, 0
    %p142 = por %p140, %p141
    %s144 = sadd.s32 %s143, 1
    %p147 = scmp.eq.s32.totalorder %s20, 1
    %p148 = scmp.ne.s32.totalorder %s143, %s145
    %p149 = scmp.eq.s32.totalorder %s20, 0
    %p150 = por %p148, %p149
    %p151 = scmp.ne.s32.totalorder %s143, %s145
    %p152 = scmp.eq.s32.totalorder %s25, 1
    %p153 = por %p151, %p152
    %p154 = scmp.ne.s32.totalorder %s145, %s146
    %p155 = scmp.eq.s32.totalorder %s25, 0
    %p156 = por %p154, %p155
    %p157 = scmp.ne.s32.totalorder %s145, %s146
    %p158 = scmp.eq.s32.totalorder %s26, 1
    %p159 = por %p157, %p158
    %p161 = scmp.ne.s32.totalorder %s146, %s160
    %p162 = scmp.eq.s32.totalorder %s26, 0
    %p163 = por %p161, %p162
    %s165 = sadd.s32 %s164, 1
    %p168 = scmp.eq.s32.totalorder %s20, 1
    %p169 = scmp.ne.s32.totalorder %s164, %s166
    %p170 = scmp.eq.s32.totalorder %s20, 0
    %p171 = por %p169, %p170
    %p172 = scmp.ne.s32.totalorder %s164, %s166
    %p173 = scmp.eq.s32.totalorder %s25, 1
    %p174 = por %p172, %p173
    %p175 = scmp.ne.s32.totalorder %s166, %s167
    %p176 = scmp.eq.s32.totalorder %s25, 0
    %p177 = por %p175, %p176
    %p178 = scmp.ne.s32.totalorder %s166, %s167
    %p179 = scmp.eq.s32.totalorder %s26, 1
    %p180 = por %p178, %p179
    %p182 = scmp.ne.s32.totalorder %s167, %s181
    %p183 = scmp.eq.s32.totalorder %s26, 0
    %p184 = por %p182, %p183
    %s186 = sadd.s32 %s185, 1
    %p189 = scmp.eq.s32.totalorder %s20, 1
    %p190 = scmp.ne.s32.totalorder %s185, %s187
    %p191 = scmp.eq.s32.totalorder %s20, 0
    %p192 = por %p190, %p191
    %p193 = scmp.ne.s32.totalorder %s185, %s187
    %p194 = scmp.eq.s32.totalorder %s25, 1
    %p195 = por %p193, %p194
    %p196 = scmp.ne.s32.totalorder %s187, %s188
    %p197 = scmp.eq.s32.totalorder %s25, 0
    %p198 = por %p196, %p197
    %p199 = scmp.ne.s32.totalorder %s187, %s188
    %p200 = scmp.eq.s32.totalorder %s26, 1
    %p201 = por %p199, %p200
    %p203 = scmp.ne.s32.totalorder %s188, %s202
    %p204 = scmp.eq.s32.totalorder %s26, 0
    %p205 = por %p203, %p204
    %s207 = sadd.s32 %s206, 1
    %p210 = scmp.eq.s32.totalorder %s20, 1
    %p211 = scmp.ne.s32.totalorder %s206, %s208
    %p212 = scmp.eq.s32.totalorder %s20, 0
    %p213 = por %p211, %p212
    %p214 = scmp.ne.s32.totalorder %s206, %s208
    %p215 = scmp.eq.s32.totalorder %s25, 1
    %p216 = por %p214, %p215
    %p217 = scmp.ne.s32.totalorder %s208, %s209
    %p218 = scmp.eq.s32.totalorder %s25, 0
    %p219 = por %p217, %p218
    %p220 = scmp.ne.s32.totalorder %s208, %s209
    %p221 = scmp.eq.s32.totalorder %s26, 1
    %p222 = por %p220, %p221
    %p224 = scmp.ne.s32.totalorder %s209, %s223
    %p225 = scmp.eq.s32.totalorder %s26, 0
    %p226 = por %p224, %p225
    %s228 = sadd.s32 %s227, 1
    %p231 = scmp.eq.s32.totalorder %s20, 1
    %p232 = scmp.ne.s32.totalorder %s227, %s229
    %p233 = scmp.eq.s32.totalorder %s20, 0
    %p234 = por %p232, %p233
    %p235 = scmp.ne.s32.totalorder %s227, %s229
    %p236 = scmp.eq.s32.totalorder %s25, 1
    %p237 = por %p235, %p236
    %p238 = scmp.ne.s32.totalorder %s229, %s230
    %p239 = scmp.eq.s32.totalorder %s25, 0
    %p240 = por %p238, %p239
    %p241 = scmp.ne.s32.totalorder %s229, %s230
    %p242 = scmp.eq.s32.totalorder %s26, 1
    %p243 = por %p241, %p242
    %p245 = scmp.ne.s32.totalorder %s230, %s244
    %p246 = scmp.eq.s32.totalorder %s26, 0
    %p247 = por %p245, %p246
    %s249 = sadd.s32 %s248, 1
    %p252 = scmp.eq.s32.totalorder %s20, 1
    %p253 = scmp.ne.s32.totalorder %s248, %s250
    %p254 = scmp.eq.s32.totalorder %s20, 0
    %p255 = por %p253, %p254
    %p256 = scmp.ne.s32.totalorder %s248, %s250
    %p257 = scmp.eq.s32.totalorder %s25, 1
    %p258 = por %p256, %p257
    %p259 = scmp.ne.s32.totalorder %s250, %s251
    %p260 = scmp.eq.s32.totalorder %s25, 0
    %p261 = por %p259, %p260
    %p262 = scmp.ne.s32.totalorder %s250, %s251
    %p263 = scmp.eq.s32.totalorder %s26, 1
    %p264 = por %p262, %p263
    %p266 = scmp.ne.s32.totalorder %s251, %s265
    %p267 = scmp.eq.s32.totalorder %s26, 0
    %p268 = por %p266, %p267
    %s270 = sadd.s32 %s269, 1
    %p273 = scmp.eq.s32.totalorder %s20, 1
    %p274 = scmp.ne.s32.totalorder %s269, %s271
    %p275 = scmp.eq.s32.totalorder %s20, 0
    %p276 = por %p274, %p275
    %p277 = scmp.ne.s32.totalorder %s269, %s271
    %p278 = scmp.eq.s32.totalorder %s25, 1
    %p279 = por %p277, %p278
    %p280 = scmp.ne.s32.totalorder %s271, %s272
    %p281 = scmp.eq.s32.totalorder %s25, 0
    %p282 = por %p280, %p281
    %p283 = scmp.ne.s32.totalorder %s271, %s272
    %p284 = scmp.eq.s32.totalorder %s26, 1
    %p285 = por %p283, %p284
    %p287 = scmp.ne.s32.totalorder %s272, %s286
    %p288 = scmp.eq.s32.totalorder %s26, 0
    %p289 = por %p287, %p288
    %s291 = sadd.s32 %s290, 1
    %p294 = scmp.eq.s32.totalorder %s20, 1
    %p295 = scmp.ne.s32.totalorder %s290, %s292
    %p296 = scmp.eq.s32.totalorder %s20, 0
    %p297 = por %p295, %p296
    %p298 = scmp.ne.s32.totalorder %s290, %s292
    %p299 = scmp.eq.s32.totalorder %s25, 1
    %p300 = por %p298, %p299
    %p301 = scmp.ne.s32.totalorder %s292, %s293
    %p302 = scmp.eq.s32.totalorder %s25, 0
    %p303 = por %p301, %p302
    %p304 = scmp.ne.s32.totalorder %s292, %s293
    %p305 = scmp.eq.s32.totalorder %s26, 1
    %p306 = por %p304, %p305
    %p308 = scmp.ne.s32.totalorder %s293, %s307
    %p309 = scmp.eq.s32.totalorder %s26, 0
    %p310 = por %p308, %p309
    %s312 = sadd.s32 %s311, 1
    %p315 = scmp.eq.s32.totalorder %s20, 1
    %p316 = scmp.ne.s32.totalorder %s311, %s313
    %p317 = scmp.eq.s32.totalorder %s20, 0
    %p318 = por %p316, %p317
    %p319 = scmp.ne.s32.totalorder %s311, %s313
    %p320 = scmp.eq.s32.totalorder %s25, 1
    %p321 = por %p319, %p320
    %p322 = scmp.ne.s32.totalorder %s313, %s314
    %p323 = scmp.eq.s32.totalorder %s25, 0
    %p324 = por %p322, %p323
    %p325 = scmp.ne.s32.totalorder %s313, %s314
    %p326 = scmp.eq.s32.totalorder %s26, 1
    %p327 = por %p325, %p326
    %p329 = scmp.ne.s32.totalorder %s314, %s328
    %p330 = scmp.eq.s32.totalorder %s26, 0
    %p331 = por %p329, %p330
    %s332 = ssub.s32 %s20, %s27
    %p333 = scmp.eq.s32.totalorder %s332, 0
    %s335 = sadd.s32 %s334, 1
    %s336 = scalar_select %p333, %s334, %s335
    %p339 = pneg %p333
    %p340 = scmp.eq.s32.totalorder %s20, 1
    %p341 = por %p339, %p340
    %p342 = scmp.ne.s32.totalorder %s334, %s337
    %p343 = scmp.eq.s32.totalorder %s20, 0
    %p344 = por %p342, %p343
    %p345 = scmp.ne.s32.totalorder %s334, %s337
    %p346 = scmp.eq.s32.totalorder %s25, 1
    %p347 = por %p345, %p346
    %p348 = scmp.ne.s32.totalorder %s337, %s338
    %p349 = scmp.eq.s32.totalorder %s25, 0
    %p350 = por %p348, %p349
    %p351 = scmp.ne.s32.totalorder %s337, %s338
    %p352 = scmp.eq.s32.totalorder %s26, 1
    %p353 = por %p351, %p352
    %p355 = scmp.ne.s32.totalorder %s338, %s354
    %p356 = scmp.eq.s32.totalorder %s26, 0
    %p357 = por %p355, %p356
    %p358 = scmp.le.s32.totalorder 1, %s20
    %p359 = scmp.lt.s32.totalorder %s20, 3
    %p360 = pnand %p358, %p359
    %p361 = pneg %p360
    // Predicated region
    $region9: #{bert_forward.4} parent=5 // pred_check
      _
    $region10: #{bert_forward.4} parent=5 // pred_check_branch
      %363 = sbr.rel (%p360) target = $region12
    $region11: #{bert_forward.4} parent=5 // pred_region
      %s364 = ssub.s32 %s20, 1
      // Predicated region
      $region13: #{bert_forward.4} parent=11 // pred_check
        %p365 = pneg %p93
      $region14: #{bert_forward.4} parent=11 // pred_check_branch
        %367 = sbr.rel (%p365) target = $region16
      $region15: #{bert_forward.4} parent=11 // pred_region
        _
      $region16: #{bert_forward.4} parent=11 // pred_fallthru
        _
      // Predicated region
      $region17: #{bert_forward.4} parent=11 // pred_check
        %p368 = pneg %p114
      $region18: #{bert_forward.4} parent=11 // pred_check_branch
        %370 = sbr.rel (%p368) target = $region20
      $region19: #{bert_forward.4} parent=11 // pred_region
        _
      $region20: #{bert_forward.4} parent=11 // pred_fallthru
        _
      // Predicated region
      $region21: #{bert_forward.4} parent=11 // pred_check
        %p371 = pneg %p135
      $region22: #{bert_forward.4} parent=11 // pred_check_branch
        %373 = sbr.rel (%p371) target = $region24
      $region23: #{bert_forward.4} parent=11 // pred_region
        _
      $region24: #{bert_forward.4} parent=11 // pred_fallthru
        _
      // Predicated region
      $region25: #{bert_forward.4} parent=11 // pred_check
        %p374 = pneg %p156
      $region26: #{bert_forward.4} parent=11 // pred_check_branch
        %376 = sbr.rel (%p374) target = $region28
      $region27: #{bert_forward.4} parent=11 // pred_region
        _
      $region28: #{bert_forward.4} parent=11 // pred_fallthru
        _
      // Predicated region
      $region29: #{bert_forward.4} parent=11 // pred_check
        %p377 = pneg %p177
      $region30: #{bert_forward.4} parent=11 // pred_check_branch
        %379 = sbr.rel (%p377) target = $region32
      $region31: #{bert_forward.4} parent=11 // pred_region
        _
      $region32: #{bert_forward.4} parent=11 // pred_fallthru
        _
      // Predicated region
      $region33: #{bert_forward.4} parent=11 // pred_check
        %p380 = pneg %p198
      $region34: #{bert_forward.4} parent=11 // pred_check_branch
        %382 = sbr.rel (%p380) target = $region36
      $region35: #{bert_forward.4} parent=11 // pred_region
        _
      $region36: #{bert_forward.4} parent=11 // pred_fallthru
        _
      // Predicated region
      $region37: #{bert_forward.4} parent=11 // pred_check
        %p383 = pneg %p219
      $region38: #{bert_forward.4} parent=11 // pred_check_branch
        %385 = sbr.rel (%p383) target = $region40
      $region39: #{bert_forward.4} parent=11 // pred_region
        _
      $region40: #{bert_forward.4} parent=11 // pred_fallthru
        _
      // Predicated region
      $region41: #{bert_forward.4} parent=11 // pred_check
        %p386 = pneg %p240
      $region42: #{bert_forward.4} parent=11 // pred_check_branch
        %388 = sbr.rel (%p386) target = $region44
      $region43: #{bert_forward.4} parent=11 // pred_region
        _
      $region44: #{bert_forward.4} parent=11 // pred_fallthru
        _
      // Predicated region
      $region45: #{bert_forward.4} parent=11 // pred_check
        %p389 = pneg %p261
      $region46: #{bert_forward.4} parent=11 // pred_check_branch
        %391 = sbr.rel (%p389) target = $region48
      $region47: #{bert_forward.4} parent=11 // pred_region
        _
      $region48: #{bert_forward.4} parent=11 // pred_fallthru
        _
      // Predicated region
      $region49: #{bert_forward.4} parent=11 // pred_check
        %p392 = pneg %p282
      $region50: #{bert_forward.4} parent=11 // pred_check_branch
        %394 = sbr.rel (%p392) target = $region52
      $region51: #{bert_forward.4} parent=11 // pred_region
        _
      $region52: #{bert_forward.4} parent=11 // pred_fallthru
        _
      // Predicated region
      $region53: #{bert_forward.4} parent=11 // pred_check
        %p395 = pneg %p303
      $region54: #{bert_forward.4} parent=11 // pred_check_branch
        %397 = sbr.rel (%p395) target = $region56
      $region55: #{bert_forward.4} parent=11 // pred_region
        _
      $region56: #{bert_forward.4} parent=11 // pred_fallthru
        _
      // Predicated region
      $region57: #{bert_forward.4} parent=11 // pred_check
        %p398 = pneg %p324
      $region58: #{bert_forward.4} parent=11 // pred_check_branch
        %400 = sbr.rel (%p398) target = $region60
      $region59: #{bert_forward.4} parent=11 // pred_region
        _
      $region60: #{bert_forward.4} parent=11 // pred_fallthru
        _
    $region12: #{bert_forward.4} parent=5 // pred_fallthru
      _
    %p401 = scmp.lt.s32.totalorder %s20, 2
    // Predicated region
    $region61: #{bert_forward.4} parent=5 // pred_check
      %p402 = pneg %p401
    $region62: #{bert_forward.4} parent=5 // pred_check_branch
      %404 = sbr.rel (%p402) target = $region64
    $region63: #{bert_forward.4} parent=5 // pred_region
      // Predicated region
      $region65: #{bert_forward.4} parent=63 // pred_check
        %p405 = pneg %p40
      $region66: #{bert_forward.4} parent=63 // pred_check_branch
        %407 = sbr.rel (%p405) target = $region68
      $region67: #{bert_forward.4} parent=63 // pred_region
        %p408 = scmp.lt.s32.totalorder %s20, 1
        %s409 = scalar_select %p408, %s20, 1
        %s410 = smul.addr %s409, 8
        %s411 = scalar_lea.vmem %s0, %s410
      $region68: #{bert_forward.4} parent=63 // pred_fallthru
        _
      // Predicated region
      $region69: #{bert_forward.4} parent=63 // pred_check
        %p412 = pneg %p66
      $region70: #{bert_forward.4} parent=63 // pred_check_branch
        %414 = sbr.rel (%p412) target = $region72
      $region71: #{bert_forward.4} parent=63 // pred_region
        %p415 = scmp.lt.s32.totalorder %s20, 1
        %s416 = scalar_select %p415, %s20, 1
        %s417 = scalar_lea.vmem %s1, %s416
      $region72: #{bert_forward.4} parent=63 // pred_fallthru
        _
    $region64: #{bert_forward.4} parent=5 // pred_fallthru
      _
    %p418 = scmp.le.s32.totalorder 1, %s20
    %p419 = scmp.lt.s32.totalorder %s20, 3
    %p420 = pnand %p418, %p419
    %p421 = pneg %p420
    // Predicated region
    $region73: #{bert_forward.4} parent=5 // pred_check
      _
    $region74: #{bert_forward.4} parent=5 // pred_check_branch
      %423 = sbr.rel (%p420) target = $region76
    $region75: #{bert_forward.4} parent=5 // pred_region
      %s424 = ssub.s32 %s20, 1
      %p425 = scmp.lt.s32.totalorder %s25, 1
      %s426 = scalar_select %p425, %s25, 1
      %s427 = smul.addr %s426, 8
      %s428 = scalar_lea.vmem %s0, %s427
      %p429 = pneg %p46
      %p430 = pneg %p43
      %p431 = scmp.lt.s32.totalorder %s25, 1
      %s432 = scalar_select %p431, %s25, 1
      %s433 = scalar_lea.vmem %s1, %s432
      %p434 = pneg %p72
      %p435 = pneg %p69
      %p436 = pneg %p93
      %p437 = pneg %p90
      %p438 = pneg %p114
      %p439 = pneg %p111
      %p440 = pneg %p135
      %p441 = pneg %p132
      %p442 = pneg %p156
      %p443 = pneg %p153
      %p444 = pneg %p177
      %p445 = pneg %p174
      %p446 = pneg %p198
      %p447 = pneg %p195
      %p448 = pneg %p219
      %p449 = pneg %p216
      %p450 = pneg %p240
      %p451 = pneg %p237
      %p452 = pneg %p261
      %p453 = pneg %p258
      %p454 = pneg %p282
      %p455 = pneg %p279
      %p456 = pneg %p303
      %p457 = pneg %p300
      %p458 = pneg %p324
      %p459 = pneg %p321
      %p460 = pneg %p350
      %p461 = pneg %p347
      %p462 = scmp.lt.s32.totalorder %s25, 1
      %s463 = scalar_select %p462, %s25, 1
      %s464 = smul.addr %s463, 8
      %s465 = scalar_lea.vmem %s14, %s464
      %p466 = scmp.lt.s32.totalorder %s25, 1
      %s467 = scalar_select %p466, %s25, 1
      %s468 = smul.addr %s467, 8
      %s469 = scalar_lea.vmem %s0, %s468
      %p470 = scmp.lt.s32.totalorder %s25, 1
      %s471 = scalar_select %p470, %s25, 1
      %s472 = scalar_lea.vmem %s1, %s471
      %p473 = scmp.lt.s32.totalorder %s25, 1
      %s474 = scalar_select %p473, %s25, 1
      %s475 = smul.addr %s474, 8
      %s476 = scalar_lea.vmem %s14, %s475
      %v477 = vld [vmem:[%s469] sm:$0xff]
      %v478 = vld [vmem:[%s472] sm:$0x1]
      %v479 = vld [vmem:[%s2] sm:$0xff]
      %v480 = vld [vmem:[%s2 + $0x8] sm:$0xff]
      %v481 = vld [vmem:[%s2 + $0x10] sm:$0xff]
      %v482 = vld [vmem:[%s2 + $0x18] sm:$0xff]
      %v483 = vld [vmem:[%s3] sm:$0x1]
      %v485 = vlaneseq
      %v486 = vshrl.u32 %v485, 7
      %v487 = vsub.s32 0, %v486
      %v488 = vrot.slane %v483, %v487
      %vm490 = vcmask 261120
      %v492 = vsel %vm490, %v477, 0
      %494 = vmatprep.subr.mxu0 0.0
      %495 = vmatpush1.msra.mxu0 %v479
      %496 = vmatprep.subr.mxu0 0.0
      %497 = vmatpush1.msra.mxu0 %v480
      %498 = vmatprep.subr.mxu0 0.0
      %499 = vmatpush1.msra.mxu0 %v481
      %500 = vmatprep.subr.mxu0 0.0
      %501 = vmatpush1.msra.mxu0 %v482
      %502 = vmatprep.subr.mxu0 0.0
      %503 = vmatpush1.msra.mxu0 0.0
      %504 = vmatprep.subr.mxu0 0.0
      %505 = vmatpush1.msra.mxu0 0.0
      %506 = vmatprep.subr.mxu0 0.0
      %507 = vmatpush1.msra.mxu0 0.0
      %508 = vmatprep.subr.mxu0 0.0
      %509 = vmatpush1.msra.mxu0 0.0
      %510 = vmatprep.subr.mxu0 0.0
      %511 = vmatpush1.msra.mxu0 0.0
      %512 = vmatprep.subr.mxu0 0.0
      %513 = vmatpush1.msra.mxu0 0.0
      %514 = vmatprep.subr.mxu0 0.0
      %515 = vmatpush1.msra.mxu0 0.0
      %516 = vmatprep.subr.mxu0 0.0
      %517 = vmatpush1.msra.mxu0 0.0
      %518 = vmatprep.subr.mxu0 0.0
      %519 = vmatpush1.msra.mxu0 0.0
      %520 = vmatprep.subr.mxu0 0.0
      %521 = vmatpush1.msra.mxu0 0.0
      %522 = vmatprep.subr.mxu0 0.0
      %523 = vmatpush1.msra.mxu0 0.0
      %524 = vmatprep.subr.mxu0 0.0
      %525 = vmatpush1.msra.mxu0 0.0
      %526 = vmatprep.subr.mxu0 0.0
      %527 = vmatpush1.msra.mxu0 0.0
      %528 = vmatprep.subr.mxu0 0.0
      %529 = vmatpush1.msra.mxu0 0.0
      %530 = vmatprep.subr.mxu0 0.0
      %531 = vmatpush1.msra.mxu0 0.0
      %532 = vmatprep.subr.mxu0 0.0
      %533 = vmatpush1.msra.mxu0 0.0
      %534 = vmatprep.subr.mxu0 0.0
      %535 = vmatpush1.msra.mxu0 0.0
      %536 = vmatprep.subr.mxu0 0.0
      %537 = vmatpush1.msra.mxu0 0.0
      %538 = vmatprep.subr.mxu0 0.0
      %539 = vmatpush1.msra.mxu0 0.0
      %540 = vmatprep.subr.mxu0 0.0
      %541 = vmatpush1.msra.mxu0 0.0
      %542 = vmatprep.subr.mxu0 0.0
      %543 = vmatpush1.msra.mxu0 0.0
      %544 = vmatprep.subr.mxu0 0.0
      %545 = vmatpush1.msra.mxu0 0.0
      %546 = vmatprep.subr.mxu0 0.0
      %547 = vmatpush1.msra.mxu0 0.0
      %548 = vmatprep.subr.mxu0 0.0
      %549 = vmatpush1.msra.mxu0 0.0
      %550 = vmatprep.subr.mxu0 0.0
      %551 = vmatpush1.msra.mxu0 0.0
      %552 = vmatprep.subr.mxu0 0.0
      %553 = vmatpush1.msra.mxu0 0.0
      %554 = vmatprep.subr.mxu0 0.0
      %555 = vmatpush1.msra.mxu0 0.0
      %556 = vmatprep.subr.mxu0 0.0
      %557 = vmatpush1.msra.mxu0 0.0
      %558 = vmatprep.mubr.f32.mxu0 0.0
      %559 = vmatmul.mubr.f32.gmra.mrb[0].mxu0 %v492
      %v560 = vpop.f32.mrb[0].mxu0
      %v561 = vadd.f32 %v488, %v560
      %v562 = vpop.f32.mrb[0].mxu0
      %563 = vdwg.mxu0
      %565 = vrot.lane.b32.xlu0 %v561, 96
      %v566 = vpop.permute.xlu0 %565
      %vm567 = vcmask 64512
      %v568 = vsel %vm567, %v561, 0
      %v570 = vsel %vm567, %v566, 0
      %572 = vmatprep.subr.mxu0 0.0
      %573 = vmatpush1.xpose.msra.mxu0 %v570
      %574 = vmatprep.subr.mxu0 0.0
      %575 = vmatpush1.xpose.msra.mxu0 0.0
      %576 = vmatprep.subr.mxu0 0.0
      %577 = vmatpush1.xpose.msra.mxu0 0.0
      %578 = vmatprep.subr.mxu0 0.0
      %579 = vmatpush1.xpose.msra.mxu0 0.0
      %580 = vmatprep.subr.mxu0 0.0
      %581 = vmatpush1.xpose.msra.mxu0 0.0
      %582 = vmatprep.subr.mxu0 0.0
      %583 = vmatpush1.xpose.msra.mxu0 0.0
      %584 = vmatprep.subr.mxu0 0.0
      %585 = vmatpush1.xpose.msra.mxu0 0.0
      %586 = vmatprep.subr.mxu0 0.0
      %587 = vmatpush1.xpose.msra.mxu0 0.0
      %588 = vmatprep.subr.mxu0 0.0
      %589 = vmatpush1.xpose.msra.mxu0 0.0
      %590 = vmatprep.subr.mxu0 0.0
      %591 = vmatpush1.xpose.msra.mxu0 0.0
      %592 = vmatprep.subr.mxu0 0.0
      %593 = vmatpush1.xpose.msra.mxu0 0.0
      %594 = vmatprep.subr.mxu0 0.0
      %595 = vmatpush1.xpose.msra.mxu0 0.0
      %596 = vmatprep.subr.mxu0 0.0
      %597 = vmatpush1.xpose.msra.mxu0 0.0
      %598 = vmatprep.subr.mxu0 0.0
      %599 = vmatpush1.xpose.msra.mxu0 0.0
      %600 = vmatprep.subr.mxu0 0.0
      %601 = vmatpush1.xpose.msra.mxu0 0.0
      %602 = vmatprep.subr.mxu0 0.0
      %603 = vmatpush1.xpose.msra.mxu0 0.0
      %604 = vmatprep.subr.mxu0 0.0
      %605 = vmatpush1.xpose.msra.mxu0 0.0
      %606 = vmatprep.subr.mxu0 0.0
      %607 = vmatpush1.xpose.msra.mxu0 0.0
      %608 = vmatprep.subr.mxu0 0.0
      %609 = vmatpush1.xpose.msra.mxu0 0.0
      %610 = vmatprep.subr.mxu0 0.0
      %611 = vmatpush1.xpose.msra.mxu0 0.0
      %612 = vmatprep.subr.mxu0 0.0
      %613 = vmatpush1.xpose.msra.mxu0 0.0
      %614 = vmatprep.subr.mxu0 0.0
      %615 = vmatpush1.xpose.msra.mxu0 0.0
      %616 = vmatprep.subr.mxu0 0.0
      %617 = vmatpush1.xpose.msra.mxu0 0.0
      %618 = vmatprep.subr.mxu0 0.0
      %619 = vmatpush1.xpose.msra.mxu0 0.0
      %620 = vmatprep.subr.mxu0 0.0
      %621 = vmatpush1.xpose.msra.mxu0 0.0
      %622 = vmatprep.subr.mxu0 0.0
      %623 = vmatpush1.xpose.msra.mxu0 0.0
      %624 = vmatprep.subr.mxu0 0.0
      %625 = vmatpush1.xpose.msra.mxu0 0.0
      %626 = vmatprep.subr.mxu0 0.0
      %627 = vmatpush1.xpose.msra.mxu0 0.0
      %628 = vmatprep.subr.mxu0 0.0
      %629 = vmatpush1.xpose.msra.mxu0 0.0
      %630 = vmatprep.subr.mxu0 0.0
      %631 = vmatpush1.xpose.msra.mxu0 0.0
      %632 = vmatprep.subr.mxu0 0.0
      %633 = vmatpush1.xpose.msra.mxu0 0.0
      %634 = vmatprep.subr.mxu0 0.0
      %635 = vmatpush1.xpose.msra.mxu0 0.0
      %636 = vmatprep.mubr.f32.mxu0 0.0
      %637 = vmatmul.mubr.f32.gmra.mrb[0].mxu0 %v568
      %v638 = vpop.f32.mrb[0].mxu0
      %v639 = vadd.f32 0.0, %v638
      %v640 = vpop.f32.mrb[0].mxu0
      %641 = vdwg.mxu0
      %v642 = vmul.f32 %v639, 0.35355338
      %v644 = vlaneseq
      %v645 = vshrl.u32 %v644, 7
      %v646 = vsub.s32 0, %v645
      %v647 = vrot.slane %v478, %v646
      %v649 = vadd.f32 %v642, %v647
      %v650 = vsel %vm567, %v649, -inf
      %651 = vmax.xlane.f32.xlu0 %v650
      %v652 = vpop.xlane.xlu0 %651
      %v653 = vsub.f32 %v649, %v652
      %v654 = vmul.f32 %v653, 1.442695
      %v655 = vpow.pop %v654
      %v656 = vsel %vm567, %v655, 0.0
      %657 = vadd.xlane.f32.xlu0 %v656
      %v658 = vpop.xlane.xlu0 %657
      %v659 = vrcp.pop %v658
      %v660 = vmul.f32 %v655, %v659
      %661 = vrot.lane.b32.xlu0 %v561, 64
      %v662 = vpop.permute.xlu0 %661
      %v665 = vsel %vm567, %v660, 0
      %667 = vmatprep.subr.mxu0 0.0
      %668 = vmatpush1.msra.mxu0 %v662
      %669 = vmatprep.subr.mxu0 0.0
      %670 = vmatpush1.msra.mxu0 0.0
      %671 = vmatprep.subr.mxu0 0.0
      %672 = vmatpush1.msra.mxu0 0.0
      %673 = vmatprep.subr.mxu0 0.0
      %674 = vmatpush1.msra.mxu0 0.0
      %675 = vmatprep.subr.mxu0 0.0
      %676 = vmatpush1.msra.mxu0 0.0
      %677 = vmatprep.subr.mxu0 0.0
      %678 = vmatpush1.msra.mxu0 0.0
      %679 = vmatprep.subr.mxu0 0.0
      %680 = vmatpush1.msra.mxu0 0.0
      %681 = vmatprep.subr.mxu0 0.0
      %682 = vmatpush1.msra.mxu0 0.0
      %683 = vmatprep.subr.mxu0 0.0
      %684 = vmatpush1.msra.mxu0 0.0
      %685 = vmatprep.subr.mxu0 0.0
      %686 = vmatpush1.msra.mxu0 0.0
      %687 = vmatprep.subr.mxu0 0.0
      %688 = vmatpush1.msra.mxu0 0.0
      %689 = vmatprep.subr.mxu0 0.0
      %690 = vmatpush1.msra.mxu0 0.0
      %691 = vmatprep.subr.mxu0 0.0
      %692 = vmatpush1.msra.mxu0 0.0
      %693 = vmatprep.subr.mxu0 0.0
      %694 = vmatpush1.msra.mxu0 0.0
      %695 = vmatprep.subr.mxu0 0.0
      %696 = vmatpush1.msra.mxu0 0.0
      %697 = vmatprep.subr.mxu0 0.0
      %698 = vmatpush1.msra.mxu0 0.0
      %699 = vmatprep.subr.mxu0 0.0
      %700 = vmatpush1.msra.mxu0 0.0
      %701 = vmatprep.subr.mxu0 0.0
      %702 = vmatpush1.msra.mxu0 0.0
      %703 = vmatprep.subr.mxu0 0.0
      %704 = vmatpush1.msra.mxu0 0.0
      %705 = vmatprep.subr.mxu0 0.0
      %706 = vmatpush1.msra.mxu0 0.0
      %707 = vmatprep.subr.mxu0 0.0
      %708 = vmatpush1.msra.mxu0 0.0
      %709 = vmatprep.subr.mxu0 0.0
      %710 = vmatpush1.msra.mxu0 0.0
      %711 = vmatprep.subr.mxu0 0.0
      %712 = vmatpush1.msra.mxu0 0.0
      %713 = vmatprep.subr.mxu0 0.0
      %714 = vmatpush1.msra.mxu0 0.0
      %715 = vmatprep.subr.mxu0 0.0
      %716 = vmatpush1.msra.mxu0 0.0
      %717 = vmatprep.subr.mxu0 0.0
      %718 = vmatpush1.msra.mxu0 0.0
      %719 = vmatprep.subr.mxu0 0.0
      %720 = vmatpush1.msra.mxu0 0.0
      %721 = vmatprep.subr.mxu0 0.0
      %722 = vmatpush1.msra.mxu0 0.0
      %723 = vmatprep.subr.mxu0 0.0
      %724 = vmatpush1.msra.mxu0 0.0
      %725 = vmatprep.subr.mxu0 0.0
      %726 = vmatpush1.msra.mxu0 0.0
      %727 = vmatprep.subr.mxu0 0.0
      %728 = vmatpush1.msra.mxu0 0.0
      %729 = vmatprep.subr.mxu0 0.0
      %730 = vmatpush1.msra.mxu0 0.0
      %731 = vmatprep.mubr.f32.mxu0 0.0
      %732 = vmatmul.mubr.f32.gmra.mrb[0].mxu0 %v665
      %v733 = vpop.f32.mrb[0].mxu0
      %v734 = vadd.f32 0.0, %v733
      %v735 = vpop.f32.mrb[0].mxu0
      %736 = vdwg.mxu0
      %737 = vrot.lane.b32.xlu0 %v561, 120
      %v738 = vpop.permute.xlu0 %737
      %739 = vrot.lane.b32.xlu0 %v561, 88
      %v740 = vpop.permute.xlu0 %739
      %v741 = vsel %vm567, %v738, 0
      %v743 = vsel %vm567, %v740, 0
      %745 = vmatprep.subr.mxu0 0.0
      %746 = vmatpush1.xpose.msra.mxu0 %v743
      %747 = vmatprep.subr.mxu0 0.0
      %748 = vmatpush1.xpose.msra.mxu0 0.0
      %749 = vmatprep.subr.mxu0 0.0
      %750 = vmatpush1.xpose.msra.mxu0 0.0
      %751 = vmatprep.subr.mxu0 0.0
      %752 = vmatpush1.xpose.msra.mxu0 0.0
      %753 = vmatprep.subr.mxu0 0.0
      %754 = vmatpush1.xpose.msra.mxu0 0.0
      %755 = vmatprep.subr.mxu0 0.0
      %756 = vmatpush1.xpose.msra.mxu0 0.0
      %757 = vmatprep.subr.mxu0 0.0
      %758 = vmatpush1.xpose.msra.mxu0 0.0
      %759 = vmatprep.subr.mxu0 0.0
      %760 = vmatpush1.xpose.msra.mxu0 0.0
      %761 = vmatprep.subr.mxu0 0.0
      %762 = vmatpush1.xpose.msra.mxu0 0.0
      %763 = vmatprep.subr.mxu0 0.0
      %764 = vmatpush1.xpose.msra.mxu0 0.0
      %765 = vmatprep.subr.mxu0 0.0
      %766 = vmatpush1.xpose.msra.mxu0 0.0
      %767 = vmatprep.subr.mxu0 0.0
      %768 = vmatpush1.xpose.msra.mxu0 0.0
      %769 = vmatprep.subr.mxu0 0.0
      %770 = vmatpush1.xpose.msra.mxu0 0.0
      %771 = vmatprep.subr.mxu0 0.0
      %772 = vmatpush1.xpose.msra.mxu0 0.0
      %773 = vmatprep.subr.mxu0 0.0
      %774 = vmatpush1.xpose.msra.mxu0 0.0
      %775 = vmatprep.subr.mxu0 0.0
      %776 = vmatpush1.xpose.msra.mxu0 0.0
      %777 = vmatprep.subr.mxu0 0.0
      %778 = vmatpush1.xpose.msra.mxu0 0.0
      %779 = vmatprep.subr.mxu0 0.0
      %780 = vmatpush1.xpose.msra.mxu0 0.0
      %781 = vmatprep.subr.mxu0 0.0
      %782 = vmatpush1.xpose.msra.mxu0 0.0
      %783 = vmatprep.subr.mxu0 0.0
      %784 = vmatpush1.xpose.msra.mxu0 0.0
      %785 = vmatprep.subr.mxu0 0.0
      %786 = vmatpush1.xpose.msra.mxu0 0.0
      %787 = vmatprep.subr.mxu0 0.0
      %788 = vmatpush1.xpose.msra.mxu0 0.0
      %789 = vmatprep.subr.mxu0 0.0
      %790 = vmatpush1.xpose.msra.mxu0 0.0
      %791 = vmatprep.subr.mxu0 0.0
      %792 = vmatpush1.xpose.msra.mxu0 0.0
      %793 = vmatprep.subr.mxu0 0.0
      %794 = vmatpush1.xpose.msra.mxu0 0.0
      %795 = vmatprep.subr.mxu0 0.0
      %796 = vmatpush1.xpose.msra.mxu0 0.0
      %797 = vmatprep.subr.mxu0 0.0
      %798 = vmatpush1.xpose.msra.mxu0 0.0
      %799 = vmatprep.subr.mxu0 0.0
      %800 = vmatpush1.xpose.msra.mxu0 0.0
      %801 = vmatprep.subr.mxu0 0.0
      %802 = vmatpush1.xpose.msra.mxu0 0.0
      %803 = vmatprep.subr.mxu0 0.0
      %804 = vmatpush1.xpose.msra.mxu0 0.0
      %805 = vmatprep.subr.mxu0 0.0
      %806 = vmatpush1.xpose.msra.mxu0 0.0
      %807 = vmatprep.subr.mxu0 0.0
      %808 = vmatpush1.xpose.msra.mxu0 0.0
      %809 = vmatprep.mubr.f32.mxu0 0.0
      %810 = vmatmul.mubr.f32.gmra.mrb[0].mxu0 %v741
      %v811 = vpop.f32.mrb[0].mxu0
      %v812 = vadd.f32 0.0, %v811
      %v813 = vpop.f32.mrb[0].mxu0
      %814 = vdwg.mxu0
      %v815 = vmul.f32 %v812, 0.35355338
      %v816 = vadd.f32 %v815, %v647
      %v817 = vsel %vm567, %v816, -inf
      %818 = vmax.xlane.f32.xlu0 %v817
      %v819 = vpop.xlane.xlu0 %818
      %v820 = vsub.f32 %v816, %v819
      %v821 = vmul.f32 %v820, 1.442695
      %v822 = vpow.pop %v821
      %v823 = vsel %vm567, %v822, 0.0
      %824 = vadd.xlane.f32.xlu0 %v823
      %v825 = vpop.xlane.xlu0 %824
      %v826 = vrcp.pop %v825
      %v827 = vmul.f32 %v822, %v826
      %828 = vrot.lane.b32.xlu0 %v561, 56
      %v829 = vpop.permute.xlu0 %828
      %v832 = vsel %vm567, %v827, 0
      %834 = vmatprep.subr.mxu0 0.0
      %835 = vmatpush1.msra.mxu0 %v829
      %836 = vmatprep.subr.mxu0 0.0
      %837 = vmatpush1.msra.mxu0 0.0
      %838 = vmatprep.subr.mxu0 0.0
      %839 = vmatpush1.msra.mxu0 0.0
      %840 = vmatprep.subr.mxu0 0.0
      %841 = vmatpush1.msra.mxu0 0.0
      %842 = vmatprep.subr.mxu0 0.0
      %843 = vmatpush1.msra.mxu0 0.0
      %844 = vmatprep.subr.mxu0 0.0
      %845 = vmatpush1.msra.mxu0 0.0
      %846 = vmatprep.subr.mxu0 0.0
      %847 = vmatpush1.msra.mxu0 0.0
      %848 = vmatprep.subr.mxu0 0.0
      %849 = vmatpush1.msra.mxu0 0.0
      %850 = vmatprep.subr.mxu0 0.0
      %851 = vmatpush1.msra.mxu0 0.0
      %852 = vmatprep.subr.mxu0 0.0
      %853 = vmatpush1.msra.mxu0 0.0
      %854 = vmatprep.subr.mxu0 0.0
      %855 = vmatpush1.msra.mxu0 0.0
      %856 = vmatprep.subr.mxu0 0.0
      %857 = vmatpush1.msra.mxu0 0.0
      %858 = vmatprep.subr.mxu0 0.0
      %859 = vmatpush1.msra.mxu0 0.0
      %860 = vmatprep.subr.mxu0 0.0
      %861 = vmatpush1.msra.mxu0 0.0
      %862 = vmatprep.subr.mxu0 0.0
      %863 = vmatpush1.msra.mxu0 0.0
      %864 = vmatprep.subr.mxu0 0.0
      %865 = vmatpush1.msra.mxu0 0.0
      %866 = vmatprep.subr.mxu0 0.0
      %867 = vmatpush1.msra.mxu0 0.0
      %868 = vmatprep.subr.mxu0 0.0
      %869 = vmatpush1.msra.mxu0 0.0
      %870 = vmatprep.subr.mxu0 0.0
      %871 = vmatpush1.msra.mxu0 0.0
      %872 = vmatprep.subr.mxu0 0.0
      %873 = vmatpush1.msra.mxu0 0.0
      %874 = vmatprep.subr.mxu0 0.0
      %875 = vmatpush1.msra.mxu0 0.0
      %876 = vmatprep.subr.mxu0 0.0
      %877 = vmatpush1.msra.mxu0 0.0
      %878 = vmatprep.subr.mxu0 0.0
      %879 = vmatpush1.msra.mxu0 0.0
      %880 = vmatprep.subr.mxu0 0.0
      %881 = vmatpush1.msra.mxu0 0.0
      %882 = vmatprep.subr.mxu0 0.0
      %883 = vmatpush1.msra.mxu0 0.0
      %884 = vmatprep.subr.mxu0 0.0
      %885 = vmatpush1.msra.mxu0 0.0
      %886 = vmatprep.subr.mxu0 0.0
      %887 = vmatpush1.msra.mxu0 0.0
      %888 = vmatprep.subr.mxu0 0.0
      %889 = vmatpush1.msra.mxu0 0.0
      %890 = vmatprep.subr.mxu0 0.0
      %891 = vmatpush1.msra.mxu0 0.0
      %892 = vmatprep.subr.mxu0 0.0
      %893 = vmatpush1.msra.mxu0 0.0
      %894 = vmatprep.subr.mxu0 0.0
      %895 = vmatpush1.msra.mxu0 0.0
      %896 = vmatprep.subr.mxu0 0.0
      %897 = vmatpush1.msra.mxu0 0.0
      %898 = vmatprep.mubr.f32.mxu0 0.0
      %899 = vmatmul.mubr.f32.gmra.mrb[0].mxu0 %v832
      %v900 = vpop.f32.mrb[0].mxu0
      %v901 = vadd.f32 0.0, %v900
      %v902 = vpop.f32.mrb[0].mxu0
      %903 = vdwg.mxu0
      %904 = vrot.lane.b32.xlu0 %v561, 112
      %v905 = vpop.permute.xlu0 %904
      %906 = vrot.lane.b32.xlu0 %v561, 80
      %v907 = vpop.permute.xlu0 %906
      %v908 = vsel %vm567, %v905, 0
      %v910 = vsel %vm567, %v907, 0
      %912 = vmatprep.subr.mxu0 0.0
      %913 = vmatpush1.xpose.msra.mxu0 %v910
      %914 = vmatprep.subr.mxu0 0.0
      %915 = vmatpush1.xpose.msra.mxu0 0.0
      %916 = vmatprep.subr.mxu0 0.0
      %917 = vmatpush1.xpose.msra.mxu0 0.0
      %918 = vmatprep.subr.mxu0 0.0
      %919 = vmatpush1.xpose.msra.mxu0 0.0
      %920 = vmatprep.subr.mxu0 0.0
      %921 = vmatpush1.xpose.msra.mxu0 0.0
      %922 = vmatprep.subr.mxu0 0.0
      %923 = vmatpush1.xpose.msra.mxu0 0.0
      %924 = vmatprep.subr.mxu0 0.0
      %925 = vmatpush1.xpose.msra.mxu0 0.0
      %926 = vmatprep.subr.mxu0 0.0
      %927 = vmatpush1.xpose.msra.mxu0 0.0
      %928 = vmatprep.subr.mxu0 0.0
      %929 = vmatpush1.xpose.msra.mxu0 0.0
      %930 = vmatprep.subr.mxu0 0.0
      %931 = vmatpush1.xpose.msra.mxu0 0.0
      %932 = vmatprep.subr.mxu0 0.0
      %933 = vmatpush1.xpose.msra.mxu0 0.0
      %934 = vmatprep.subr.mxu0 0.0
      %935 = vmatpush1.xpose.msra.mxu0 0.0
      %936 = vmatprep.subr.mxu0 0.0
      %937 = vmatpush1.xpose.msra.mxu0 0.0
      %938 = vmatprep.subr.mxu0 0.0
      %939 = vmatpush1.xpose.msra.mxu0 0.0
      %940 = vmatprep.subr.mxu0 0.0
      %941 = vmatpush1.xpose.msra.mxu0 0.0
      %942 = vmatprep.subr.mxu0 0.0
      %943 = vmatpush1.xpose.msra.mxu0 0.0
      %944 = vmatprep.subr.mxu0 0.0
      %945 = vmatpush1.xpose.msra.mxu0 0.0
      %946 = vmatprep.subr.mxu0 0.0
      %947 = vmatpush1.xpose.msra.mxu0 0.0
      %948 = vmatprep.subr.mxu0 0.0
      %949 = vmatpush1.xpose.msra.mxu0 0.0
      %950 = vmatprep.subr.mxu0 0.0
      %951 = vmatpush1.xpose.msra.mxu0 0.0
      %952 = vmatprep.subr.mxu0 0.0
      %953 = vmatpush1.xpose.msra.mxu0 0.0
      %954 = vmatprep.subr.mxu0 0.0
      %955 = vmatpush1.xpose.msra.mxu0 0.0
      %956 = vmatprep.subr.mxu0 0.0
      %957 = vmatpush1.xpose.msra.mxu0 0.0
      %958 = vmatprep.subr.mxu0 0.0
      %959 = vmatpush1.xpose.msra.mxu0 0.0
      %960 = vmatprep.subr.mxu0 0.0
      %961 = vmatpush1.xpose.msra.mxu0 0.0
      %962 = vmatprep.subr.mxu0 0.0
      %963 = vmatpush1.xpose.msra.mxu0 0.0
      %964 = vmatprep.subr.mxu0 0.0
      %965 = vmatpush1.xpose.msra.mxu0 0.0
      %966 = vmatprep.subr.mxu0 0.0
      %967 = vmatpush1.xpose.msra.mxu0 0.0
      %968 = vmatprep.subr.mxu0 0.0
      %969 = vmatpush1.xpose.msra.mxu0 0.0
      %970 = vmatprep.subr.mxu0 0.0
      %971 = vmatpush1.xpose.msra.mxu0 0.0
      %972 = vmatprep.subr.mxu0 0.0
      %973 = vmatpush1.xpose.msra.mxu0 0.0
      %974 = vmatprep.subr.mxu0 0.0
      %975 = vmatpush1.xpose.msra.mxu0 0.0
      %976 = vmatprep.mubr.f32.mxu0 0.0
      %977 = vmatmul.mubr.f32.gmra.mrb[0].mxu0 %v908
      %v978 = vpop.f32.mrb[0].mxu0
      %v979 = vadd.f32 0.0, %v978
      %v980 = vpop.f32.mrb[0].mxu0
      %981 = vdwg.mxu0
      %v982 = vmul.f32 %v979, 0.35355338
      %v983 = vadd.f32 %v982, %v647
      %v984 = vsel %vm567, %v983, -inf
      %985 = vmax.xlane.f32.xlu0 %v984
      %v986 = vpop.xlane.xlu0 %985
      %v987 = vsub.f32 %v983, %v986
      %v988 = vmul.f32 %v987, 1.442695
      %v989 = vpow.pop %v988
      %v990 = vsel %vm567, %v989, 0.0
      %991 = vadd.xlane.f32.xlu0 %v990
      %v992 = vpop.xlane.xlu0 %991
      %v993 = vrcp.pop %v992
      %v994 = vmul.f32 %v989, %v993
      %995 = vrot.lane.b32.xlu0 %v561, 48
      %v996 = vpop.permute.xlu0 %995
      %v999 = vsel %vm567, %v994, 0
      %1001 = vmatprep.subr.mxu0 0.0
      %1002 = vmatpush1.msra.mxu0 %v996
      %1003 = vmatprep.subr.mxu0 0.0
      %1004 = vmatpush1.msra.mxu0 0.0
      %1005 = vmatprep.subr.mxu0 0.0
      %1006 = vmatpush1.msra.mxu0 0.0
      %1007 = vmatprep.subr.mxu0 0.0
      %1008 = vmatpush1.msra.mxu0 0.0
      %1009 = vmatprep.subr.mxu0 0.0
      %1010 = vmatpush1.msra.mxu0 0.0
      %1011 = vmatprep.subr.mxu0 0.0
      %1012 = vmatpush1.msra.mxu0 0.0
      %1013 = vmatprep.subr.mxu0 0.0
      %1014 = vmatpush1.msra.mxu0 0.0
      %1015 = vmatprep.subr.mxu0 0.0
      %1016 = vmatpush1.msra.mxu0 0.0
      %1017 = vmatprep.subr.mxu0 0.0
      %1018 = vmatpush1.msra.mxu0 0.0
      %1019 = vmatprep.subr.mxu0 0.0
      %1020 = vmatpush1.msra.mxu0 0.0
      %1021 = vmatprep.subr.mxu0 0.0
      %1022 = vmatpush1.msra.mxu0 0.0
      %1023 = vmatprep.subr.mxu0 0.0
      %1024 = vmatpush1.msra.mxu0 0.0
      %1025 = vmatprep.subr.mxu0 0.0
      %1026 = vmatpush1.msra.mxu0 0.0
      %1027 = vmatprep.subr.mxu0 0.0
      %1028 = vmatpush1.msra.mxu0 0.0
      %1029 = vmatprep.subr.mxu0 0.0
      %1030 = vmatpush1.msra.mxu0 0.0
      %1031 = vmatprep.subr.mxu0 0.0
      %1032 = vmatpush1.msra.mxu0 0.0
      %1033 = vmatprep.subr.mxu0 0.0
      %1034 = vmatpush1.msra.mxu0 0.0
      %1035 = vmatprep.subr.mxu0 0.0
      %1036 = vmatpush1.msra.mxu0 0.0
      %1037 = vmatprep.subr.mxu0 0.0
      %1038 = vmatpush1.msra.mxu0 0.0
      %1039 = vmatprep.subr.mxu0 0.0
      %1040 = vmatpush1.msra.mxu0 0.0
      %1041 = vmatprep.subr.mxu0 0.0
      %1042 = vmatpush1.msra.mxu0 0.0
      %1043 = vmatprep.subr.mxu0 0.0
      %1044 = vmatpush1.msra.mxu0 0.0
      %1045 = vmatprep.subr.mxu0 0.0
      %1046 = vmatpush1.msra.mxu0 0.0
      %1047 = vmatprep.subr.mxu0 0.0
      %1048 = vmatpush1.msra.mxu0 0.0
      %1049 = vmatprep.subr.mxu0 0.0
      %1050 = vmatpush1.msra.mxu0 0.0
      %1051 = vmatprep.subr.mxu0 0.0
      %1052 = vmatpush1.msra.mxu0 0.0
      %1053 = vmatprep.subr.mxu0 0.0
      %1054 = vmatpush1.msra.mxu0 0.0
      %1055 = vmatprep.subr.mxu0 0.0
      %1056 = vmatpush1.msra.mxu0 0.0
      %1057 = vmatprep.subr.mxu0 0.0
      %1058 = vmatpush1.msra.mxu0 0.0
      %1059 = vmatprep.subr.mxu0 0.0
      %1060 = vmatpush1.msra.mxu0 0.0
      %1061 = vmatprep.subr.mxu0 0.0
      %1062 = vmatpush1.msra.mxu0 0.0
      %1063 = vmatprep.subr.mxu0 0.0
      %1064 = vmatpush1.msra.mxu0 0.0
      %1065 = vmatprep.mubr.f32.mxu0 0.0
      %1066 = vmatmul.mubr.f32.gmra.mrb[0].mxu0 %v999
      %v1067 = vpop.f32.mrb[0].mxu0
      %v1068 = vadd.f32 0.0, %v1067
      %v1069 = vpop.f32.mrb[0].mxu0
      %1070 = vdwg.mxu0
      %1071 = vrot.lane.b32.xlu0 %v561, 104
      %v1072 = vpop.permute.xlu0 %1071
      %1073 = vrot.lane.b32.xlu0 %v561, 72
      %v1074 = vpop.permute.xlu0 %1073
      %v1075 = vsel %vm567, %v1072, 0
      %v1077 = vsel %vm567, %v1074, 0
      %1079 = vmatprep.subr.mxu0 0.0
      %1080 = vmatpush1.xpose.msra.mxu0 %v1077
      %1081 = vmatprep.subr.mxu0 0.0
      %1082 = vmatpush1.xpose.msra.mxu0 0.0
      %1083 = vmatprep.subr.mxu0 0.0
      %1084 = vmatpush1.xpose.msra.mxu0 0.0
      %1085 = vmatprep.subr.mxu0 0.0
      %1086 = vmatpush1.xpose.msra.mxu0 0.0
      %1087 = vmatprep.subr.mxu0 0.0
      %1088 = vmatpush1.xpose.msra.mxu0 0.0
      %1089 = vmatprep.subr.mxu0 0.0
      %1090 = vmatpush1.xpose.msra.mxu0 0.0
      %1091 = vmatprep.subr.mxu0 0.0
      %1092 = vmatpush1.xpose.msra.mxu0 0.0
      %1093 = vmatprep.subr.mxu0 0.0
      %1094 = vmatpush1.xpose.msra.mxu0 0.0
      %1095 = vmatprep.subr.mxu0 0.0
      %1096 = vmatpush1.xpose.msra.mxu0 0.0
      %1097 = vmatprep.subr.mxu0 0.0
      %1098 = vmatpush1.xpose.msra.mxu0 0.0
      %1099 = vmatprep.subr.mxu0 0.0
      %1100 = vmatpush1.xpose.msra.mxu0 0.0
      %1101 = vmatprep.subr.mxu0 0.0
      %1102 = vmatpush1.xpose.msra.mxu0 0.0
      %1103 = vmatprep.subr.mxu0 0.0
      %1104 = vmatpush1.xpose.msra.mxu0 0.0
      %1105 = vmatprep.subr.mxu0 0.0
      %1106 = vmatpush1.xpose.msra.mxu0 0.0
      %1107 = vmatprep.subr.mxu0 0.0
      %1108 = vmatpush1.xpose.msra.mxu0 0.0
      %1109 = vmatprep.subr.mxu0 0.0
      %1110 = vmatpush1.xpose.msra.mxu0 0.0
      %1111 = vmatprep.subr.mxu0 0.0
      %1112 = vmatpush1.xpose.msra.mxu0 0.0
      %1113 = vmatprep.subr.mxu0 0.0
      %1114 = vmatpush1.xpose.msra.mxu0 0.0
      %1115 = vmatprep.subr.mxu0 0.0
      %1116 = vmatpush1.xpose.msra.mxu0 0.0
      %1117 = vmatprep.subr.mxu0 0.0
      %1118 = vmatpush1.xpose.msra.mxu0 0.0
      %1119 = vmatprep.subr.mxu0 0.0
      %1120 = vmatpush1.xpose.msra.mxu0 0.0
      %1121 = vmatprep.subr.mxu0 0.0
      %1122 = vmatpush1.xpose.msra.mxu0 0.0
      %1123 = vmatprep.subr.mxu0 0.0
      %1124 = vmatpush1.xpose.msra.mxu0 0.0
      %1125 = vmatprep.subr.mxu0 0.0
      %1126 = vmatpush1.xpose.msra.mxu0 0.0
      %1127 = vmatprep.subr.mxu0 0.0
      %1128 = vmatpush1.xpose.msra.mxu0 0.0
      %1129 = vmatprep.subr.mxu0 0.0
      %1130 = vmatpush1.xpose.msra.mxu0 0.0
      %1131 = vmatprep.subr.mxu0 0.0
      %1132 = vmatpush1.xpose.msra.mxu0 0.0
      %1133 = vmatprep.subr.mxu0 0.0
      %1134 = vmatpush1.xpose.msra.mxu0 0.0
      %1135 = vmatprep.subr.mxu0 0.0
      %1136 = vmatpush1.xpose.msra.mxu0 0.0
      %1137 = vmatprep.subr.mxu0 0.0
      %1138 = vmatpush1.xpose.msra.mxu0 0.0
      %1139 = vmatprep.subr.mxu0 0.0
      %1140 = vmatpush1.xpose.msra.mxu0 0.0
      %1141 = vmatprep.subr.mxu0 0.0
      %1142 = vmatpush1.xpose.msra.mxu0 0.0
      %1143 = vmatprep.mubr.f32.mxu0 0.0
      %1144 = vmatmul.mubr.f32.gmra.mrb[0].mxu0 %v1075
      %v1145 = vpop.f32.mrb[0].mxu0
      %v1146 = vadd.f32 0.0, %v1145
      %v1147 = vpop.f32.mrb[0].mxu0
      %1148 = vdwg.mxu0
      %v1149 = vmul.f32 %v1146, 0.35355338
      %v1150 = vadd.f32 %v1149, %v647
      %v1151 = vsel %vm567, %v1150, -inf
      %1152 = vmax.xlane.f32.xlu0 %v1151
      %v1153 = vpop.xlane.xlu0 %1152
      %v1154 = vsub.f32 %v1150, %v1153
      %v1155 = vmul.f32 %v1154, 1.442695
      %v1156 = vpow.pop %v1155
      %v1157 = vsel %vm567, %v1156, 0.0
      %1158 = vadd.xlane.f32.xlu0 %v1157
      %v1159 = vpop.xlane.xlu0 %1158
      %v1160 = vrcp.pop %v1159
      %v1161 = vmul.f32 %v1156, %v1160
      %1162 = vrot.lane.b32.xlu0 %v561, 40
      %v1163 = vpop.permute.xlu0 %1162
      %v1166 = vsel %vm567, %v1161, 0
      %1168 = vmatprep.subr.mxu0 0.0
      %1169 = vmatpush1.msra.mxu0 %v1163
      %1170 = vmatprep.subr.mxu0 0.0
      %1171 = vmatpush1.msra.mxu0 0.0
      %1172 = vmatprep.subr.mxu0 0.0
      %1173 = vmatpush1.msra.mxu0 0.0
      %1174 = vmatprep.subr.mxu0 0.0
      %1175 = vmatpush1.msra.mxu0 0.0
      %1176 = vmatprep.subr.mxu0 0.0
      %1177 = vmatpush1.msra.mxu0 0.0
      %1178 = vmatprep.subr.mxu0 0.0
      %1179 = vmatpush1.msra.mxu0 0.0
      %1180 = vmatprep.subr.mxu0 0.0
      %1181 = vmatpush1.msra.mxu0 0.0
      %1182 = vmatprep.subr.mxu0 0.0
      %1183 = vmatpush1.msra.mxu0 0.0
      %1184 = vmatprep.subr.mxu0 0.0
      %1185 = vmatpush1.msra.mxu0 0.0
      %1186 = vmatprep.subr.mxu0 0.0
      %1187 = vmatpush1.msra.mxu0 0.0
      %1188 = vmatprep.subr.mxu0 0.0
      %1189 = vmatpush1.msra.mxu0 0.0
      %1190 = vmatprep.subr.mxu0 0.0
      %1191 = vmatpush1.msra.mxu0 0.0
      %1192 = vmatprep.subr.mxu0 0.0
      %1193 = vmatpush1.msra.mxu0 0.0
      %1194 = vmatprep.subr.mxu0 0.0
      %1195 = vmatpush1.msra.mxu0 0.0
      %1196 = vmatprep.subr.mxu0 0.0
      %1197 = vmatpush1.msra.mxu0 0.0
      %1198 = vmatprep.subr.mxu0 0.0
      %1199 = vmatpush1.msra.mxu0 0.0
      %1200 = vmatprep.subr.mxu0 0.0
      %1201 = vmatpush1.msra.mxu0 0.0
      %1202 = vmatprep.subr.mxu0 0.0
      %1203 = vmatpush1.msra.mxu0 0.0
      %1204 = vmatprep.subr.mxu0 0.0
      %1205 = vmatpush1.msra.mxu0 0.0
      %1206 = vmatprep.subr.mxu0 0.0
      %1207 = vmatpush1.msra.mxu0 0.0
      %1208 = vmatprep.subr.mxu0 0.0
      %1209 = vmatpush1.msra.mxu0 0.0
      %1210 = vmatprep.subr.mxu0 0.0
      %1211 = vmatpush1.msra.mxu0 0.0
      %1212 = vmatprep.subr.mxu0 0.0
      %1213 = vmatpush1.msra.mxu0 0.0
      %1214 = vmatprep.subr.mxu0 0.0
      %1215 = vmatpush1.msra.mxu0 0.0
      %1216 = vmatprep.subr.mxu0 0.0
      %1217 = vmatpush1.msra.mxu0 0.0
      %1218 = vmatprep.subr.mxu0 0.0
      %1219 = vmatpush1.msra.mxu0 0.0
      %1220 = vmatprep.subr.mxu0 0.0
      %1221 = vmatpush1.msra.mxu0 0.0
      %1222 = vmatprep.subr.mxu0 0.0
      %1223 = vmatpush1.msra.mxu0 0.0
      %1224 = vmatprep.subr.mxu0 0.0
      %1225 = vmatpush1.msra.mxu0 0.0
      %1226 = vmatprep.subr.mxu0 0.0
      %1227 = vmatpush1.msra.mxu0 0.0
      %1228 = vmatprep.subr.mxu0 0.0
      %1229 = vmatpush1.msra.mxu0 0.0
      %1230 = vmatprep.subr.mxu0 0.0
      %1231 = vmatpush1.msra.mxu0 0.0
      %1232 = vmatprep.mubr.f32.mxu0 0.0
      %1233 = vmatmul.mubr.f32.gmra.mrb[0].mxu0 %v1166
      %v1234 = vpop.f32.mrb[0].mxu0
      %v1235 = vadd.f32 0.0, %v1234
      %v1236 = vpop.f32.mrb[0].mxu0
      %1237 = vdwg.mxu0
      %1239 = vrot.lane.b32.xlu0 %v901, 8
      %v1240 = vpop.permute.xlu0 %1239
      %1243 = vrot.lane.b32.xlu0 %v1068, 16
      %v1244 = vpop.permute.xlu0 %1243
      %1247 = vrot.lane.b32.xlu0 %v1235, 24
      %v1248 = vpop.permute.xlu0 %1247
      %v1250 = vsel %vm567, %v734, %v1240
      %vm1251 = vcmask 130048
      %v1252 = vsel %vm1251, %v1250, %v1244
      %vm1253 = vcmask 195584
      %v1254 = vsel %vm1253, %v1252, %v1248
      %v1255 = vld [vmem:[%s4] sm:$0xff]
      %v1256 = vld [vmem:[%s4 + $0x8] sm:$0xff]
      %v1257 = vld [vmem:[%s4 + $0x10] sm:$0xff]
      %v1258 = vld [vmem:[%s4 + $0x18] sm:$0xff]
      %v1259 = vld [vmem:[%s5] sm:$0x1]
      %v1261 = vlaneseq
      %v1262 = vshrl.u32 %v1261, 7
      %v1263 = vsub.s32 0, %v1262
      %v1264 = vrot.slane %v1259, %v1263
      %v1267 = vsel %vm490, %v1254, 0
      %1269 = vmatprep.subr.mxu0 0.0
      %1270 = vmatpush1.msra.mxu0 %v1255
      %1271 = vmatprep.subr.mxu0 0.0
      %1272 = vmatpush1.msra.mxu0 %v1256
      %1273 = vmatprep.subr.mxu0 0.0
      %1274 = vmatpush1.msra.mxu0 %v1257
      %1275 = vmatprep.subr.mxu0 0.0
      %1276 = vmatpush1.msra.mxu0 %v1258
      %1277 = vmatprep.subr.mxu0 0.0
      %1278 = vmatpush1.msra.mxu0 0.0
      %1279 = vmatprep.subr.mxu0 0.0
      %1280 = vmatpush1.msra.mxu0 0.0
      %1281 = vmatprep.subr.mxu0 0.0
      %1282 = vmatpush1.msra.mxu0 0.0
      %1283 = vmatprep.subr.mxu0 0.0
      %1284 = vmatpush1.msra.mxu0 0.0
      %1285 = vmatprep.subr.mxu0 0.0
      %1286 = vmatpush1.msra.mxu0 0.0
      %1287 = vmatprep.subr.mxu0 0.0
      %1288 = vmatpush1.msra.mxu0 0.0
      %1289 = vmatprep.subr.mxu0 0.0
      %1290 = vmatpush1.msra.mxu0 0.0
      %1291 = vmatprep.subr.mxu0 0.0
      %1292 = vmatpush1.msra.mxu0 0.0
      %1293 = vmatprep.subr.mxu0 0.0
      %1294 = vmatpush1.msra.mxu0 0.0
      %1295 = vmatprep.subr.mxu0 0.0
      %1296 = vmatpush1.msra.mxu0 0.0
      %1297 = vmatprep.subr.mxu0 0.0
      %1298 = vmatpush1.msra.mxu0 0.0
      %1299 = vmatprep.subr.mxu0 0.0
      %1300 = vmatpush1.msra.mxu0 0.0
      %1301 = vmatprep.subr.mxu0 0.0
      %1302 = vmatpush1.msra.mxu0 0.0
      %1303 = vmatprep.subr.mxu0 0.0
      %1304 = vmatpush1.msra.mxu0 0.0
      %1305 = vmatprep.subr.mxu0 0.0
      %1306 = vmatpush1.msra.mxu0 0.0
      %1307 = vmatprep.subr.mxu0 0.0
      %1308 = vmatpush1.msra.mxu0 0.0
      %1309 = vmatprep.subr.mxu0 0.0
      %1310 = vmatpush1.msra.mxu0 0.0
      %1311 = vmatprep.subr.mxu0 0.0
      %1312 = vmatpush1.msra.mxu0 0.0
      %1313 = vmatprep.subr.mxu0 0.0
      %1314 = vmatpush1.msra.mxu0 0.0
      %1315 = vmatprep.subr.mxu0 0.0
      %1316 = vmatpush1.msra.mxu0 0.0
      %1317 = vmatprep.subr.mxu0 0.0
      %1318 = vmatpush1.msra.mxu0 0.0
      %1319 = vmatprep.subr.mxu0 0.0
      %1320 = vmatpush1.msra.mxu0 0.0
      %1321 = vmatprep.subr.mxu0 0.0
      %1322 = vmatpush1.msra.mxu0 0.0
      %1323 = vmatprep.subr.mxu0 0.0
      %1324 = vmatpush1.msra.mxu0 0.0
      %1325 = vmatprep.subr.mxu0 0.0
      %1326 = vmatpush1.msra.mxu0 0.0
      %1327 = vmatprep.subr.mxu0 0.0
      %1328 = vmatpush1.msra.mxu0 0.0
      %1329 = vmatprep.subr.mxu0 0.0
      %1330 = vmatpush1.msra.mxu0 0.0
      %1331 = vmatprep.subr.mxu0 0.0
      %1332 = vmatpush1.msra.mxu0 0.0
      %1333 = vmatprep.mubr.f32.mxu0 0.0
      %1334 = vmatmul.mubr.f32.gmra.mrb[0].mxu0 %v1267
      %v1335 = vpop.f32.mrb[0].mxu0
      %v1336 = vadd.f32 %v1264, %v1335
      %v1337 = vpop.f32.mrb[0].mxu0
      %1338 = vdwg.mxu0
      %v1339 = vadd.f32 %v1336, %v477
      %v1340 = vld [vmem:[%s6] sm:$0x1]
      %v1341 = vld [vmem:[%s7] sm:$0x1]
      %v1342 = vsel %vm490, %v1339, 0.0
      %1343 = vadd.xlane.f32.xlu0 %v1342
      %v1344 = vpop.xlane.xlu0 %1343
      %v1345 = vrcp.pop 32.0
      %v1346 = vmul.f32 %v1344, %v1345
      %v1347 = vsub.f32 %v1339, %v1346
      %v1348 = vmul.f32 %v1347, %v1347
      %v1349 = vsel %vm490, %v1348, 0.0
      %1350 = vadd.xlane.f32.xlu0 %v1349
      %v1351 = vpop.xlane.xlu0 %1350
      %v1352 = vmul.f32 %v1351, %v1345
      %v1353 = vadd.f32 %v1352, 1e-12
      %v1354 = vrsqrt.pop %v1353
      %v1355 = vmul.f32 %v1347, %v1354
      %v1357 = vlaneseq
      %v1358 = vshrl.u32 %v1357, 7
      %v1359 = vsub.s32 0, %v1358
      %v1360 = vrot.slane %v1340, %v1359
      %v1362 = vmul.f32 %v1355, %v1360
      %v1364 = vlaneseq
      %v1365 = vshrl.u32 %v1364, 7
      %v1366 = vsub.s32 0, %v1365
      %v1367 = vrot.slane %v1341, %v1366
      %v1369 = vadd.f32 %v1362, %v1367
      %v1370 = vld [vmem:[%s8] sm:$0xff]
      %v1371 = vld [vmem:[%s8 + $0x8] sm:$0xff]
      %v1372 = vld [vmem:[%s8 + $0x10] sm:$0xff]
      %v1373 = vld [vmem:[%s8 + $0x18] sm:$0xff]
      %v1374 = vld [vmem:[%s9] sm:$0x1]
      %v1376 = vlaneseq
      %v1377 = vshrl.u32 %v1376, 7
      %v1378 = vsub.s32 0, %v1377
      %v1379 = vrot.slane %v1374, %v1378
      %v1382 = vsel %vm490, %v1369, 0
      %1384 = vmatprep.subr.mxu0 0.0
      %1385 = vmatpush1.msra.mxu0 %v1370
      %1386 = vmatprep.subr.mxu0 0.0
      %1387 = vmatpush1.msra.mxu0 %v1371
      %1388 = vmatprep.subr.mxu0 0.0
      %1389 = vmatpush1.msra.mxu0 %v1372
      %1390 = vmatprep.subr.mxu0 0.0
      %1391 = vmatpush1.msra.mxu0 %v1373
      %1392 = vmatprep.subr.mxu0 0.0
      %1393 = vmatpush1.msra.mxu0 0.0
      %1394 = vmatprep.subr.mxu0 0.0
      %1395 = vmatpush1.msra.mxu0 0.0
      %1396 = vmatprep.subr.mxu0 0.0
      %1397 = vmatpush1.msra.mxu0 0.0
      %1398 = vmatprep.subr.mxu0 0.0
      %1399 = vmatpush1.msra.mxu0 0.0
      %1400 = vmatprep.subr.mxu0 0.0
      %1401 = vmatpush1.msra.mxu0 0.0
      %1402 = vmatprep.subr.mxu0 0.0
      %1403 = vmatpush1.msra.mxu0 0.0
      %1404 = vmatprep.subr.mxu0 0.0
      %1405 = vmatpush1.msra.mxu0 0.0
      %1406 = vmatprep.subr.mxu0 0.0
      %1407 = vmatpush1.msra.mxu0 0.0
      %1408 = vmatprep.subr.mxu0 0.0
      %1409 = vmatpush1.msra.mxu0 0.0
      %1410 = vmatprep.subr.mxu0 0.0
      %1411 = vmatpush1.msra.mxu0 0.0
      %1412 = vmatprep.subr.mxu0 0.0
      %1413 = vmatpush1.msra.mxu0 0.0
      %1414 = vmatprep.subr.mxu0 0.0
      %1415 = vmatpush1.msra.mxu0 0.0
      %1416 = vmatprep.subr.mxu0 0.0
      %1417 = vmatpush1.msra.mxu0 0.0
      %1418 = vmatprep.subr.mxu0 0.0
      %1419 = vmatpush1.msra.mxu0 0.0
      %1420 = vmatprep.subr.mxu0 0.0
      %1421 = vmatpush1.msra.mxu0 0.0
      %1422 = vmatprep.subr.mxu0 0.0
      %1423 = vmatpush1.msra.mxu0 0.0
      %1424 = vmatprep.subr.mxu0 0.0
      %1425 = vmatpush1.msra.mxu0 0.0
      %1426 = vmatprep.subr.mxu0 0.0
      %1427 = vmatpush1.msra.mxu0 0.0
      %1428 = vmatprep.subr.mxu0 0.0
      %1429 = vmatpush1.msra.mxu0 0.0
      %1430 = vmatprep.subr.mxu0 0.0
      %1431 = vmatpush1.msra.mxu0 0.0
      %1432 = vmatprep.subr.mxu0 0.0
      %1433 = vmatpush1.msra.mxu0 0.0
      %1434 = vmatprep.subr.mxu0 0.0
      %1435 = vmatpush1.msra.mxu0 0.0
      %1436 = vmatprep.subr.mxu0 0.0
      %1437 = vmatpush1.msra.mxu0 0.0
      %1438 = vmatprep.subr.mxu0 0.0
      %1439 = vmatpush1.msra.mxu0 0.0
      %1440 = vmatprep.subr.mxu0 0.0
      %1441 = vmatpush1.msra.mxu0 0.0
      %1442 = vmatprep.subr.mxu0 0.0
      %1443 = vmatpush1.msra.mxu0 0.0
      %1444 = vmatprep.subr.mxu0 0.0
      %1445 = vmatpush1.msra.mxu0 0.0
      %1446 = vmatprep.subr.mxu0 0.0
      %1447 = vmatpush1.msra.mxu0 0.0
      %1448 = vmatprep.mubr.f32.mxu0 0.0
      %1449 = vmatmul.mubr.f32.gmra.mrb[0].mxu0 %v1382
      %v1450 = vpop.f32.mrb[0].mxu0
      %v1451 = vadd.f32 %v1379, %v1450
      %v1452 = vpop.f32.mrb[0].mxu0
      %1453 = vdwg.mxu0
      %v1454 = vmul.f32 %v1451, 0.5
      %v1455 = vmul.f32 %v1451, 0.044715
      %v1456 = vmul.f32 %v1455, %v1451
      %v1457 = vmul.f32 %v1456, %v1451
      %v1458 = vadd.f32 %v1451, %v1457
      %v1459 = vmul.f32 %v1458, 0.7978846
      %v1460 = vtanh.pop %v1459
      %v1461 = vadd.f32 %v1460, 1.0
      %v1462 = vmul.f32 %v1454, %v1461
      %v1463 = vld [vmem:[%s10] sm:$0xff]
      %v1464 = vld [vmem:[%s10 + $0x8] sm:$0xff]
      %v1465 = vld [vmem:[%s10 + $0x10] sm:$0xff]
      %v1466 = vld [vmem:[%s10 + $0x18] sm:$0xff]
      %v1467 = vld [vmem:[%s10 + $0x20] sm:$0xff]
      %v1468 = vld [vmem:[%s10 + $0x28] sm:$0xff]
      %v1469 = vld [vmem:[%s10 + $0x30] sm:$0xff]
      %v1470 = vld [vmem:[%s10 + $0x38] sm:$0xff]
      %v1471 = vld [vmem:[%s11] sm:$0x1]
      %v1473 = vlaneseq
      %v1474 = vshrl.u32 %v1473, 7
      %v1475 = vsub.s32 0, %v1474
      %v1476 = vrot.slane %v1471, %v1475
      %vm1478 = vcmask 523264
      %v1480 = vsel %vm1478, %v1462, 0
      %1482 = vmatprep.subr.mxu0 0.0
      %1483 = vmatpush1.msra.mxu0 %v1463
      %1484 = vmatprep.subr.mxu0 0.0
      %1485 = vmatpush1.msra.mxu0 %v1464
      %1486 = vmatprep.subr.mxu0 0.0
      %1487 = vmatpush1.msra.mxu0 %v1465
      %1488 = vmatprep.subr.mxu0 0.0
      %1489 = vmatpush1.msra.mxu0 %v1466
      %1490 = vmatprep.subr.mxu0 0.0
      %1491 = vmatpush1.msra.mxu0 %v1467
      %1492 = vmatprep.subr.mxu0 0.0
      %1493 = vmatpush1.msra.mxu0 %v1468
      %1494 = vmatprep.subr.mxu0 0.0
      %1495 = vmatpush1.msra.mxu0 %v1469
      %1496 = vmatprep.subr.mxu0 0.0
      %1497 = vmatpush1.msra.mxu0 %v1470
      %1498 = vmatprep.subr.mxu0 0.0
      %1499 = vmatpush1.msra.mxu0 0.0
      %1500 = vmatprep.subr.mxu0 0.0
      %1501 = vmatpush1.msra.mxu0 0.0
      %1502 = vmatprep.subr.mxu0 0.0
      %1503 = vmatpush1.msra.mxu0 0.0
      %1504 = vmatprep.subr.mxu0 0.0
      %1505 = vmatpush1.msra.mxu0 0.0
      %1506 = vmatprep.subr.mxu0 0.0
      %1507 = vmatpush1.msra.mxu0 0.0
      %1508 = vmatprep.subr.mxu0 0.0
      %1509 = vmatpush1.msra.mxu0 0.0
      %1510 = vmatprep.subr.mxu0 0.0
      %1511 = vmatpush1.msra.mxu0 0.0
      %1512 = vmatprep.subr.mxu0 0.0
      %1513 = vmatpush1.msra.mxu0 0.0
      %1514 = vmatprep.subr.mxu0 0.0
      %1515 = vmatpush1.msra.mxu0 0.0
      %1516 = vmatprep.subr.mxu0 0.0
      %1517 = vmatpush1.msra.mxu0 0.0
      %1518 = vmatprep.subr.mxu0 0.0
      %1519 = vmatpush1.msra.mxu0 0.0
      %1520 = vmatprep.subr.mxu0 0.0
      %1521 = vmatpush1.msra.mxu0 0.0
      %1522 = vmatprep.subr.mxu0 0.0
      %1523 = vmatpush1.msra.mxu0 0.0
      %1524 = vmatprep.subr.mxu0 0.0
      %1525 = vmatpush1.msra.mxu0 0.0
      %1526 = vmatprep.subr.mxu0 0.0
      %1527 = vmatpush1.msra.mxu0 0.0
      %1528 = vmatprep.subr.mxu0 0.0
      %1529 = vmatpush1.msra.mxu0 0.0
      %1530 = vmatprep.subr.mxu0 0.0
      %1531 = vmatpush1.msra.mxu0 0.0
      %1532 = vmatprep.subr.mxu0 0.0
      %1533 = vmatpush1.msra.mxu0 0.0
      %1534 = vmatprep.subr.mxu0 0.0
      %1535 = vmatpush1.msra.mxu0 0.0
      %1536 = vmatprep.subr.mxu0 0.0
      %1537 = vmatpush1.msra.mxu0 0.0
      %1538 = vmatprep.subr.mxu0 0.0
      %1539 = vmatpush1.msra.mxu0 0.0
      %1540 = vmatprep.subr.mxu0 0.0
      %1541 = vmatpush1.msra.mxu0 0.0
      %1542 = vmatprep.subr.mxu0 0.0
      %1543 = vmatpush1.msra.mxu0 0.0
      %1544 = vmatprep.subr.mxu0 0.0
      %1545 = vmatpush1.msra.mxu0 0.0
      %1546 = vmatprep.mubr.f32.mxu0 0.0
      %1547 = vmatmul.mubr.f32.gmra.mrb[0].mxu0 %v1480
      %v1548 = vpop.f32.mrb[0].mxu0
      %v1549 = vadd.f32 %v1476, %v1548
      %v1550 = vpop.f32.mrb[0].mxu0
      %1551 = vdwg.mxu0
      %v1552 = vadd.f32 %v1549, %v1369
      %v1553 = vld [vmem:[%s12] sm:$0x1]
      %v1554 = vld [vmem:[%s13] sm:$0x1]
      %v1555 = vsel %vm490, %v1552, 0.0
      %1556 = vadd.xlane.f32.xlu0 %v1555
      %v1557 = vpop.xlane.xlu0 %1556
      %v1558 = vmul.f32 %v1557, %v1345
      %v1559 = vsub.f32 %v1552, %v1558
      %v1560 = vmul.f32 %v1559, %v1559
      %v1561 = vsel %vm490, %v1560, 0.0
      %1562 = vadd.xlane.f32.xlu0 %v1561
      %v1563 = vpop.xlane.xlu0 %1562
      %v1564 = vmul.f32 %v1563, %v1345
      %v1565 = vadd.f32 %v1564, 1e-12
      %v1566 = vrsqrt.pop %v1565
      %v1567 = vmul.f32 %v1559, %v1566
      %v1569 = vlaneseq
      %v1570 = vshrl.u32 %v1569, 7
      %v1571 = vsub.s32 0, %v1570
      %v1572 = vrot.slane %v1553, %v1571
      %v1574 = vmul.f32 %v1567, %v1572
      %v1576 = vlaneseq
      %v1577 = vshrl.u32 %v1576, 7
      %v1578 = vsub.s32 0, %v1577
      %v1579 = vrot.slane %v1554, %v1578
      %v1581 = vadd.f32 %v1574, %v1579
      %1582 = vst.msk [vmem:[%s476] sm:$0xff] %vm490, %v1581
      %p1583 = scmp.lt.s32.totalorder %s25, 1
      %s1584 = scalar_select %p1583, %s25, 1
      %s1585 = smul.addr %s1584, 8
      %s1586 = scalar_lea.vmem %s14, %s1585
      // Predicated region
      $region77: #{bert_forward.4} parent=75 // pred_check
        %p1587 = pneg %p347
      $region78: #{bert_forward.4} parent=75 // pred_check_branch
        %1589 = sbr.rel (%p1587) target = $region80
      $region79: #{bert_forward.4} parent=75 // pred_region
        _
      $region80: #{bert_forward.4} parent=75 // pred_fallthru
        _
    $region76: #{bert_forward.4} parent=5 // pred_fallthru
      _
    %p1590 = scmp.le.s32.totalorder 2, %s20
    // Predicated region
    $region81: #{bert_forward.4} parent=5 // pred_check
      %p1591 = pneg %p1590
    $region82: #{bert_forward.4} parent=5 // pred_check_branch
      %1593 = sbr.rel (%p1591) target = $region84
    $region83: #{bert_forward.4} parent=5 // pred_region
      %s1594 = ssub.s32 %s20, 2
      // Predicated region
      $region85: #{bert_forward.4} parent=83 // pred_check
        %p1595 = pneg %p353
      $region86: #{bert_forward.4} parent=83 // pred_check_branch
        %1597 = sbr.rel (%p1595) target = $region88
      $region87: #{bert_forward.4} parent=83 // pred_region
        %p1598 = scmp.lt.s32.totalorder %s26, 1
        %s1599 = scalar_select %p1598, %s26, 1
        %s1600 = smul.addr %s1599, 8
        %s1601 = scalar_lea.vmem %s14, %s1600
      $region88: #{bert_forward.4} parent=83 // pred_fallthru
        _
    $region84: #{bert_forward.4} parent=5 // pred_fallthru
      _
  $region6: #{bert_forward.4} parent=0 // loop_footer
    %s24 = sadd.s32 1, %s20
  $region7: #{bert_forward.4} parent=0 // loop_footer_branch
    %19 = sbr.rel target = $region3
  $region8: #{bert_forward.4} parent=0 // loop_exit
    _

// kernel: bert_forward.5
$region0: #{bert_forward.5}
  #allocation0 [shape = 'u32[]', space=smem, size = 0x4, offset = 0x4, fixed_abs, tag = 'smem constant byte address 0x4 - core index']
  #allocation1 [shape = 'u32[144,128]{1,0:T(1,128)}', space=vmem, size = 0x12000, scoped, tag = 'internal scratch']
  %s0 = inlined_call_operand.vmem [shape: f32[16,32], index: 0, kind: input, shape index: {}]
  %s1 = inlined_call_operand.vmem [shape: f32[2,1,8], index: 1, kind: input, shape index: {}]
  %s2 = inlined_call_operand.vmem [shape: f32[32,96], index: 2, kind: input, shape index: {}]
  %s3 = inlined_call_operand.vmem [shape: f32[1,96], index: 3, kind: input, shape index: {}]
  %s4 = inlined_call_operand.vmem [shape: f32[32,32], index: 4, kind: input, shape index: {}]
  %s5 = inlined_call_operand.vmem [shape: f32[1,32], index: 5, kind: input, shape index: {}]
  %s6 = inlined_call_operand.vmem [shape: f32[1,32], index: 6, kind: input, shape index: {}]
  %s7 = inlined_call_operand.vmem [shape: f32[1,32], index: 7, kind: input, shape index: {}]
  %s8 = inlined_call_operand.vmem [shape: f32[32,64], index: 8, kind: input, shape index: {}]
  %s9 = inlined_call_operand.vmem [shape: f32[1,64], index: 9, kind: input, shape index: {}]
  %s10 = inlined_call_operand.vmem [shape: f32[64,32], index: 10, kind: input, shape index: {}]
  %s11 = inlined_call_operand.vmem [shape: f32[1,32], index: 11, kind: input, shape index: {}]
  %s12 = inlined_call_operand.vmem [shape: f32[1,32], index: 12, kind: input, shape index: {}]
  %s13 = inlined_call_operand.vmem [shape: f32[1,32], index: 13, kind: input, shape index: {}]
  %s14 = inlined_call_operand.hbm [shape: f32[16,32], index: 14, kind: output, shape index: {}]
  %s15 = sld [smem:[#allocation0]]
  $region89: #{bert_forward.5} parent=0
    _
  %s17 = ssub.s32 1, %s15
  %s18 = scalar_select 0, %s17, %s15
  $region1: #{bert_forward.5} parent=0
    #allocation2 [shape = 'u8[8192]{0}', space=vmem, size = 0x2000, scoped, tag = 'output window, operand 0']
    #allocation3 [shape = 's32[2]{0}', space=sflag, size = 0x8, scoped, tag = 'scoped memory for bert_forward.5']
    %19 = vsyncpa [#allocation3], 0
    %s20 = scalar_lea.sflag [#allocation3], 1
    %21 = vsyncpa %s20, 0
    loop: start=0, step=1, limit=4
    $region2: #{bert_forward.5} parent=1 // loop_pre_header
      _
    $region3: #{bert_forward.5} parent=1 // loop_header
      %s23 = sphi 0, %s27
      %p24 = scmp.ge.s32.totalorder %s23, 4
      %s33 = sphi 0, %s35
      %s36 = sphi 0, %s33
      %s37 = sphi 0, %s36
      %s53 = sphi 0, %s37
      %s59 = sphi 0, %s61
      %s62 = sphi 0, %s59
      %s63 = sphi 0, %s62
      %s79 = sphi 0, %s63
      %s83 = sphi 0, %s83
      %s85 = sphi 0, %s83
      %s86 = sphi 0, %s85
      %s100 = sphi 0, %s86
      %s104 = sphi 0, %s104
      %s106 = sphi 0, %s104
      %s107 = sphi 0, %s106
      %s121 = sphi 0, %s107
      %s125 = sphi 0, %s125
      %s127 = sphi 0, %s125
      %s128 = sphi 0, %s127
      %s142 = sphi 0, %s128
      %s146 = sphi 0, %s146
      %s148 = sphi 0, %s146
      %s149 = sphi 0, %s148
      %s163 = sphi 0, %s149
      %s167 = sphi 0, %s167
      %s169 = sphi 0, %s167
      %s170 = sphi 0, %s169
      %s184 = sphi 0, %s170
      %s188 = sphi 0, %s188
      %s190 = sphi 0, %s188
      %s191 = sphi 0, %s190
      %s205 = sphi 0, %s191
      %s209 = sphi 0, %s209
      %s211 = sphi 0, %s209
      %s212 = sphi 0, %s211
      %s226 = sphi 0, %s212
      %s230 = sphi 0, %s230
      %s232 = sphi 0, %s230
      %s233 = sphi 0, %s232
      %s247 = sphi 0, %s233
      %s251 = sphi 0, %s251
      %s253 = sphi 0, %s251
      %s254 = sphi 0, %s253
      %s268 = sphi 0, %s254
      %s272 = sphi 0, %s272
      %s274 = sphi 0, %s272
      %s275 = sphi 0, %s274
      %s289 = sphi 0, %s275
      %s293 = sphi 0, %s293
      %s295 = sphi 0, %s293
      %s296 = sphi 0, %s295
      %s310 = sphi 0, %s296
      %s314 = sphi 0, %s314
      %s316 = sphi 0, %s314
      %s317 = sphi 0, %s316
      %s331 = sphi 0, %s317
      %s337 = sphi 0, %s339
      %s340 = sphi 0, %s337
      %s341 = sphi 0, %s340
      %s357 = sphi 0, %s341
    $region4: #{bert_forward.5} parent=1 // loop_header_branch
      %26 = sbr.rel (%p24) target = $region8
    $region5: #{bert_forward.5} parent=1 // loop_body
      %s28 = ssub.s32 %s23, 1
      %s29 = ssub.s32 %s23, 2
      %s30 = sadd.s32 %s23, 1
      %s31 = ssub.s32 %s23, %s30
      %p32 = scmp.eq.s32.totalorder %s31, 0
      %s34 = sadd.s32 %s33, 1
      %s35 = scalar_select %p32, %s33, %s34
      %p38 = pneg %p32
      %p39 = scmp.eq.s32.totalorder %s23, 1
      %p40 = por %p38, %p39
      %p41 = scmp.ne.s32.totalorder %s33, %s36
      %p42 = scmp.eq.s32.totalorder %s23, 0
      %p43 = por %p41, %p42
      %p44 = scmp.ne.s32.totalorder %s33, %s36
      %p45 = scmp.eq.s32.totalorder %s28, 1
      %p46 = por %p44, %p45
      %p47 = scmp.ne.s32.totalorder %s36, %s37
      %p48 = scmp.eq.s32.totalorder %s28, 0
      %p49 = por %p47, %p48
      %p50 = scmp.ne.s32.totalorder %s36, %s37
      %p51 = scmp.eq.s32.totalorder %s29, 1
      %p52 = por %p50, %p51
      %p54 = scmp.ne.s32.totalorder %s37, %s53
      %p55 = scmp.eq.s32.totalorder %s29, 0
      %p56 = por %p54, %p55
      %s57 = ssub.s32 %s23, %s30
      %p58 = scmp.eq.s32.totalorder %s57, 0
      %s60 = sadd.s32 %s59, 1
      %s61 = scalar_select %p58, %s59, %s60
      %p64 = pneg %p58
      %p65 = scmp.eq.s32.totalorder %s23, 1
      %p66 = por %p64, %p65
      %p67 = scmp.ne.s32.totalorder %s59, %s62
      %p68 = scmp.eq.s32.totalorder %s23, 0
      %p69 = por %p67, %p68
      %p70 = scmp.ne.s32.totalorder %s59, %s62
      %p71 = scmp.eq.s32.totalorder %s28, 1
      %p72 = por %p70, %p71
      %p73 = scmp.ne.s32.totalorder %s62, %s63
      %p74 = scmp.eq.s32.totalorder %s28, 0
      %p75 = por %p73, %p74
      %p76 = scmp.ne.s32.totalorder %s62, %s63
      %p77 = scmp.eq.s32.totalorder %s29, 1
      %p78 = por %p76, %p77
      %p80 = scmp.ne.s32.totalorder %s63, %s79
      %p81 = scmp.eq.s32.totalorder %s29, 0
      %p82 = por %p80, %p81
      %s84 = sadd.s32 %s83, 1
      %p87 = scmp.eq.s32.totalorder %s23, 1
      %p88 = scmp.ne.s32.totalorder %s83, %s85
      %p89 = scmp.eq.s32.totalorder %s23, 0
      %p90 = por %p88, %p89
      %p91 = scmp.ne.s32.totalorder %s83, %s85
      %p92 = scmp.eq.s32.totalorder %s28, 1
      %p93 = por %p91, %p92
      %p94 = scmp.ne.s32.totalorder %s85, %s86
      %p95 = scmp.eq.s32.totalorder %s28, 0
      %p96 = por %p94, %p95
      %p97 = scmp.ne.s32.totalorder %s85, %s86
      %p98 = scmp.eq.s32.totalorder %s29, 1
      %p99 = por %p97, %p98
      %p101 = scmp.ne.s32.totalorder %s86, %s100
      %p102 = scmp.eq.s32.totalorder %s29, 0
      %p103 = por %p101, %p102
      %s105 = sadd.s32 %s104, 1
      %p108 = scmp.eq.s32.totalorder %s23, 1
      %p109 = scmp.ne.s32.totalorder %s104, %s106
      %p110 = scmp.eq.s32.totalorder %s23, 0
      %p111 = por %p109, %p110
      %p112 = scmp.ne.s32.totalorder %s104, %s106
      %p113 = scmp.eq.s32.totalorder %s28, 1
      %p114 = por %p112, %p113
      %p115 = scmp.ne.s32.totalorder %s106, %s107
      %p116 = scmp.eq.s32.totalorder %s28, 0
      %p117 = por %p115, %p116
      %p118 = scmp.ne.s32.totalorder %s106, %s107
      %p119 = scmp.eq.s32.totalorder %s29, 1
      %p120 = por %p118, %p119
      %p122 = scmp.ne.s32.totalorder %s107, %s121
      %p123 = scmp.eq.s32.totalorder %s29, 0
      %p124 = por %p122, %p123
      %s126 = sadd.s32 %s125, 1
      %p129 = scmp.eq.s32.totalorder %s23, 1
      %p130 = scmp.ne.s32.totalorder %s125, %s127
      %p131 = scmp.eq.s32.totalorder %s23, 0
      %p132 = por %p130, %p131
      %p133 = scmp.ne.s32.totalorder %s125, %s127
      %p134 = scmp.eq.s32.totalorder %s28, 1
      %p135 = por %p133, %p134
      %p136 = scmp.ne.s32.totalorder %s127, %s128
      %p137 = scmp.eq.s32.totalorder %s28, 0
      %p138 = por %p136, %p137
      %p139 = scmp.ne.s32.totalorder %s127, %s128
      %p140 = scmp.eq.s32.totalorder %s29, 1
      %p141 = por %p139, %p140
      %p143 = scmp.ne.s32.totalorder %s128, %s142
      %p144 = scmp.eq.s32.totalorder %s29, 0
      %p145 = por %p143, %p144
      %s147 = sadd.s32 %s146, 1
      %p150 = scmp.eq.s32.totalorder %s23, 1
      %p151 = scmp.ne.s32.totalorder %s146, %s148
      %p152 = scmp.eq.s32.totalorder %s23, 0
      %p153 = por %p151, %p152
      %p154 = scmp.ne.s32.totalorder %s146, %s148
      %p155 = scmp.eq.s32.totalorder %s28, 1
      %p156 = por %p154, %p155
      %p157 = scmp.ne.s32.totalorder %s148, %s149
      %p158 = scmp.eq.s32.totalorder %s28, 0
      %p159 = por %p157, %p158
      %p160 = scmp.ne.s32.totalorder %s148, %s149
      %p161 = scmp.eq.s32.totalorder %s29, 1
      %p162 = por %p160, %p161
      %p164 = scmp.ne.s32.totalorder %s149, %s163
      %p165 = scmp.eq.s32.totalorder %s29, 0
      %p166 = por %p164, %p165
      %s168 = sadd.s32 %s167, 1
      %p171 = scmp.eq.s32.totalorder %s23, 1
      %p172 = scmp.ne.s32.totalorder %s167, %s169
      %p173 = scmp.eq.s32.totalorder %s23, 0
      %p174 = por %p172, %p173
      %p175 = scmp.ne.s32.totalorder %s167, %s169
      %p176 = scmp.eq.s32.totalorder %s28, 1
      %p177 = por %p175, %p176
      %p178 = scmp.ne.s32.totalorder %s169, %s170
      %p179 = scmp.eq.s32.totalorder %s28, 0
      %p180 = por %p178, %p179
      %p181 = scmp.ne.s32.totalorder %s169, %s170
      %p182 = scmp.eq.s32.totalorder %s29, 1
      %p183 = por %p181, %p182
      %p185 = scmp.ne.s32.totalorder %s170, %s184
      %p186 = scmp.eq.s32.totalorder %s29, 0
      %p187 = por %p185, %p186
      %s189 = sadd.s32 %s188, 1
      %p192 = scmp.eq.s32.totalorder %s23, 1
      %p193 = scmp.ne.s32.totalorder %s188, %s190
      %p194 = scmp.eq.s32.totalorder %s23, 0
      %p195 = por %p193, %p194
      %p196 = scmp.ne.s32.totalorder %s188, %s190
      %p197 = scmp.eq.s32.totalorder %s28, 1
      %p198 = por %p196, %p197
      %p199 = scmp.ne.s32.totalorder %s190, %s191
      %p200 = scmp.eq.s32.totalorder %s28, 0
      %p201 = por %p199, %p200
      %p202 = scmp.ne.s32.totalorder %s190, %s191
      %p203 = scmp.eq.s32.totalorder %s29, 1
      %p204 = por %p202, %p203
      %p206 = scmp.ne.s32.totalorder %s191, %s205
      %p207 = scmp.eq.s32.totalorder %s29, 0
      %p208 = por %p206, %p207
      %s210 = sadd.s32 %s209, 1
      %p213 = scmp.eq.s32.totalorder %s23, 1
      %p214 = scmp.ne.s32.totalorder %s209, %s211
      %p215 = scmp.eq.s32.totalorder %s23, 0
      %p216 = por %p214, %p215
      %p217 = scmp.ne.s32.totalorder %s209, %s211
      %p218 = scmp.eq.s32.totalorder %s28, 1
      %p219 = por %p217, %p218
      %p220 = scmp.ne.s32.totalorder %s211, %s212
      %p221 = scmp.eq.s32.totalorder %s28, 0
      %p222 = por %p220, %p221
      %p223 = scmp.ne.s32.totalorder %s211, %s212
      %p224 = scmp.eq.s32.totalorder %s29, 1
      %p225 = por %p223, %p224
      %p227 = scmp.ne.s32.totalorder %s212, %s226
      %p228 = scmp.eq.s32.totalorder %s29, 0
      %p229 = por %p227, %p228
      %s231 = sadd.s32 %s230, 1
      %p234 = scmp.eq.s32.totalorder %s23, 1
      %p235 = scmp.ne.s32.totalorder %s230, %s232
      %p236 = scmp.eq.s32.totalorder %s23, 0
      %p237 = por %p235, %p236
      %p238 = scmp.ne.s32.totalorder %s230, %s232
      %p239 = scmp.eq.s32.totalorder %s28, 1
      %p240 = por %p238, %p239
      %p241 = scmp.ne.s32.totalorder %s232, %s233
      %p242 = scmp.eq.s32.totalorder %s28, 0
      %p243 = por %p241, %p242
      %p244 = scmp.ne.s32.totalorder %s232, %s233
      %p245 = scmp.eq.s32.totalorder %s29, 1
      %p246 = por %p244, %p245
      %p248 = scmp.ne.s32.totalorder %s233, %s247
      %p249 = scmp.eq.s32.totalorder %s29, 0
      %p250 = por %p248, %p249
      %s252 = sadd.s32 %s251, 1
      %p255 = scmp.eq.s32.totalorder %s23, 1
      %p256 = scmp.ne.s32.totalorder %s251, %s253
      %p257 = scmp.eq.s32.totalorder %s23, 0
      %p258 = por %p256, %p257
      %p259 = scmp.ne.s32.totalorder %s251, %s253
      %p260 = scmp.eq.s32.totalorder %s28, 1
      %p261 = por %p259, %p260
      %p262 = scmp.ne.s32.totalorder %s253, %s254
      %p263 = scmp.eq.s32.totalorder %s28, 0
      %p264 = por %p262, %p263
      %p265 = scmp.ne.s32.totalorder %s253, %s254
      %p266 = scmp.eq.s32.totalorder %s29, 1
      %p267 = por %p265, %p266
      %p269 = scmp.ne.s32.totalorder %s254, %s268
      %p270 = scmp.eq.s32.totalorder %s29, 0
      %p271 = por %p269, %p270
      %s273 = sadd.s32 %s272, 1
      %p276 = scmp.eq.s32.totalorder %s23, 1
      %p277 = scmp.ne.s32.totalorder %s272, %s274
      %p278 = scmp.eq.s32.totalorder %s23, 0
      %p279 = por %p277, %p278
      %p280 = scmp.ne.s32.totalorder %s272, %s274
      %p281 = scmp.eq.s32.totalorder %s28, 1
      %p282 = por %p280, %p281
      %p283 = scmp.ne.s32.totalorder %s274, %s275
      %p284 = scmp.eq.s32.totalorder %s28, 0
      %p285 = por %p283, %p284
      %p286 = scmp.ne.s32.totalorder %s274, %s275
      %p287 = scmp.eq.s32.totalorder %s29, 1
      %p288 = por %p286, %p287
      %p290 = scmp.ne.s32.totalorder %s275, %s289
      %p291 = scmp.eq.s32.totalorder %s29, 0
      %p292 = por %p290, %p291
      %s294 = sadd.s32 %s293, 1
      %p297 = scmp.eq.s32.totalorder %s23, 1
      %p298 = scmp.ne.s32.totalorder %s293, %s295
      %p299 = scmp.eq.s32.totalorder %s23, 0
      %p300 = por %p298, %p299
      %p301 = scmp.ne.s32.totalorder %s293, %s295
      %p302 = scmp.eq.s32.totalorder %s28, 1
      %p303 = por %p301, %p302
      %p304 = scmp.ne.s32.totalorder %s295, %s296
      %p305 = scmp.eq.s32.totalorder %s28, 0
      %p306 = por %p304, %p305
      %p307 = scmp.ne.s32.totalorder %s295, %s296
      %p308 = scmp.eq.s32.totalorder %s29, 1
      %p309 = por %p307, %p308
      %p311 = scmp.ne.s32.totalorder %s296, %s310
      %p312 = scmp.eq.s32.totalorder %s29, 0
      %p313 = por %p311, %p312
      %s315 = sadd.s32 %s314, 1
      %p318 = scmp.eq.s32.totalorder %s23, 1
      %p319 = scmp.ne.s32.totalorder %s314, %s316
      %p320 = scmp.eq.s32.totalorder %s23, 0
      %p321 = por %p319, %p320
      %p322 = scmp.ne.s32.totalorder %s314, %s316
      %p323 = scmp.eq.s32.totalorder %s28, 1
      %p324 = por %p322, %p323
      %p325 = scmp.ne.s32.totalorder %s316, %s317
      %p326 = scmp.eq.s32.totalorder %s28, 0
      %p327 = por %p325, %p326
      %p328 = scmp.ne.s32.totalorder %s316, %s317
      %p329 = scmp.eq.s32.totalorder %s29, 1
      %p330 = por %p328, %p329
      %p332 = scmp.ne.s32.totalorder %s317, %s331
      %p333 = scmp.eq.s32.totalorder %s29, 0
      %p334 = por %p332, %p333
      %s335 = ssub.s32 %s23, %s30
      %p336 = scmp.eq.s32.totalorder %s335, 0
      %s338 = sadd.s32 %s337, 1
      %s339 = scalar_select %p336, %s337, %s338
      %p342 = pneg %p336
      %p343 = scmp.eq.s32.totalorder %s23, 1
      %p344 = por %p342, %p343
      %p345 = scmp.ne.s32.totalorder %s337, %s340
      %p346 = scmp.eq.s32.totalorder %s23, 0
      %p347 = por %p345, %p346
      %p348 = scmp.ne.s32.totalorder %s337, %s340
      %p349 = scmp.eq.s32.totalorder %s28, 1
      %p350 = por %p348, %p349
      %p351 = scmp.ne.s32.totalorder %s340, %s341
      %p352 = scmp.eq.s32.totalorder %s28, 0
      %p353 = por %p351, %p352
      %p354 = scmp.ne.s32.totalorder %s340, %s341
      %p355 = scmp.eq.s32.totalorder %s29, 1
      %p356 = por %p354, %p355
      %p358 = scmp.ne.s32.totalorder %s341, %s357
      %p359 = scmp.eq.s32.totalorder %s29, 0
      %p360 = por %p358, %p359
      %p361 = scmp.le.s32.totalorder 1, %s23
      %p362 = scmp.lt.s32.totalorder %s23, 3
      %p363 = pnand %p361, %p362
      %p364 = pneg %p363
      // Predicated region
      $region9: #{bert_forward.5} parent=5 // pred_check
        _
      $region10: #{bert_forward.5} parent=5 // pred_check_branch
        %366 = sbr.rel (%p363) target = $region12
      $region11: #{bert_forward.5} parent=5 // pred_region
        %s367 = ssub.s32 %s23, 1
        // Predicated region
        $region13: #{bert_forward.5} parent=11 // pred_check
          %p368 = pneg %p96
        $region14: #{bert_forward.5} parent=11 // pred_check_branch
          %370 = sbr.rel (%p368) target = $region16
        $region15: #{bert_forward.5} parent=11 // pred_region
          _
        $region16: #{bert_forward.5} parent=11 // pred_fallthru
          _
        // Predicated region
        $region17: #{bert_forward.5} parent=11 // pred_check
          %p371 = pneg %p117
        $region18: #{bert_forward.5} parent=11 // pred_check_branch
          %373 = sbr.rel (%p371) target = $region20
        $region19: #{bert_forward.5} parent=11 // pred_region
          _
        $region20: #{bert_forward.5} parent=11 // pred_fallthru
          _
        // Predicated region
        $region21: #{bert_forward.5} parent=11 // pred_check
          %p374 = pneg %p138
        $region22: #{bert_forward.5} parent=11 // pred_check_branch
          %376 = sbr.rel (%p374) target = $region24
        $region23: #{bert_forward.5} parent=11 // pred_region
          _
        $region24: #{bert_forward.5} parent=11 // pred_fallthru
          _
        // Predicated region
        $region25: #{bert_forward.5} parent=11 // pred_check
          %p377 = pneg %p159
        $region26: #{bert_forward.5} parent=11 // pred_check_branch
          %379 = sbr.rel (%p377) target = $region28
        $region27: #{bert_forward.5} parent=11 // pred_region
          _
        $region28: #{bert_forward.5} parent=11 // pred_fallthru
          _
        // Predicated region
        $region29: #{bert_forward.5} parent=11 // pred_check
          %p380 = pneg %p180
        $region30: #{bert_forward.5} parent=11 // pred_check_branch
          %382 = sbr.rel (%p380) target = $region32
        $region31: #{bert_forward.5} parent=11 // pred_region
          _
        $region32: #{bert_forward.5} parent=11 // pred_fallthru
          _
        // Predicated region
        $region33: #{bert_forward.5} parent=11 // pred_check
          %p383 = pneg %p201
        $region34: #{bert_forward.5} parent=11 // pred_check_branch
          %385 = sbr.rel (%p383) target = $region36
        $region35: #{bert_forward.5} parent=11 // pred_region
          _
        $region36: #{bert_forward.5} parent=11 // pred_fallthru
          _
        // Predicated region
        $region37: #{bert_forward.5} parent=11 // pred_check
          %p386 = pneg %p222
        $region38: #{bert_forward.5} parent=11 // pred_check_branch
          %388 = sbr.rel (%p386) target = $region40
        $region39: #{bert_forward.5} parent=11 // pred_region
          _
        $region40: #{bert_forward.5} parent=11 // pred_fallthru
          _
        // Predicated region
        $region41: #{bert_forward.5} parent=11 // pred_check
          %p389 = pneg %p243
        $region42: #{bert_forward.5} parent=11 // pred_check_branch
          %391 = sbr.rel (%p389) target = $region44
        $region43: #{bert_forward.5} parent=11 // pred_region
          _
        $region44: #{bert_forward.5} parent=11 // pred_fallthru
          _
        // Predicated region
        $region45: #{bert_forward.5} parent=11 // pred_check
          %p392 = pneg %p264
        $region46: #{bert_forward.5} parent=11 // pred_check_branch
          %394 = sbr.rel (%p392) target = $region48
        $region47: #{bert_forward.5} parent=11 // pred_region
          _
        $region48: #{bert_forward.5} parent=11 // pred_fallthru
          _
        // Predicated region
        $region49: #{bert_forward.5} parent=11 // pred_check
          %p395 = pneg %p285
        $region50: #{bert_forward.5} parent=11 // pred_check_branch
          %397 = sbr.rel (%p395) target = $region52
        $region51: #{bert_forward.5} parent=11 // pred_region
          _
        $region52: #{bert_forward.5} parent=11 // pred_fallthru
          _
        // Predicated region
        $region53: #{bert_forward.5} parent=11 // pred_check
          %p398 = pneg %p306
        $region54: #{bert_forward.5} parent=11 // pred_check_branch
          %400 = sbr.rel (%p398) target = $region56
        $region55: #{bert_forward.5} parent=11 // pred_region
          _
        $region56: #{bert_forward.5} parent=11 // pred_fallthru
          _
        // Predicated region
        $region57: #{bert_forward.5} parent=11 // pred_check
          %p401 = pneg %p327
        $region58: #{bert_forward.5} parent=11 // pred_check_branch
          %403 = sbr.rel (%p401) target = $region60
        $region59: #{bert_forward.5} parent=11 // pred_region
          _
        $region60: #{bert_forward.5} parent=11 // pred_fallthru
          _
      $region12: #{bert_forward.5} parent=5 // pred_fallthru
        _
      %p404 = scmp.lt.s32.totalorder %s23, 2
      // Predicated region
      $region61: #{bert_forward.5} parent=5 // pred_check
        %p405 = pneg %p404
      $region62: #{bert_forward.5} parent=5 // pred_check_branch
        %407 = sbr.rel (%p405) target = $region64
      $region63: #{bert_forward.5} parent=5 // pred_region
        // Predicated region
        $region65: #{bert_forward.5} parent=63 // pred_check
          %p408 = pneg %p43
        $region66: #{bert_forward.5} parent=63 // pred_check_branch
          %410 = sbr.rel (%p408) target = $region68
        $region67: #{bert_forward.5} parent=63 // pred_region
          %p411 = scmp.lt.s32.totalorder %s23, 1
          %s412 = scalar_select %p411, %s23, 1
          %s413 = smul.addr %s412, 8
          %s414 = scalar_lea.vmem %s0, %s413
        $region68: #{bert_forward.5} parent=63 // pred_fallthru
          _
        // Predicated region
        $region69: #{bert_forward.5} parent=63 // pred_check
          %p415 = pneg %p69
        $region70: #{bert_forward.5} parent=63 // pred_check_branch
          %417 = sbr.rel (%p415) target = $region72
        $region71: #{bert_forward.5} parent=63 // pred_region
          %p418 = scmp.lt.s32.totalorder %s23, 1
          %s419 = scalar_select %p418, %s23, 1
          %s420 = scalar_lea.vmem %s1, %s419
        $region72: #{bert_forward.5} parent=63 // pred_fallthru
          _
      $region64: #{bert_forward.5} parent=5 // pred_fallthru
        _
      %p421 = scmp.le.s32.totalorder 1, %s23
      %p422 = scmp.lt.s32.totalorder %s23, 3
      %p423 = pnand %p421, %p422
      %p424 = pneg %p423
      // Predicated region
      $region73: #{bert_forward.5} parent=5 // pred_check
        _
      $region74: #{bert_forward.5} parent=5 // pred_check_branch
        %426 = sbr.rel (%p423) target = $region76
      $region75: #{bert_forward.5} parent=5 // pred_region
        %s427 = ssub.s32 %s23, 1
        %p428 = scmp.lt.s32.totalorder %s28, 1
        %s429 = scalar_select %p428, %s28, 1
        %s430 = smul.addr %s429, 8
        %s431 = scalar_lea.vmem %s0, %s430
        %p432 = pneg %p49
        %p433 = pneg %p46
        %p434 = scmp.lt.s32.totalorder %s28, 1
        %s435 = scalar_select %p434, %s28, 1
        %s436 = scalar_lea.vmem %s1, %s435
        %p437 = pneg %p75
        %p438 = pneg %p72
        %p439 = pneg %p96
        %p440 = pneg %p93
        %p441 = pneg %p117
        %p442 = pneg %p114
        %p443 = pneg %p138
        %p444 = pneg %p135
        %p445 = pneg %p159
        %p446 = pneg %p156
        %p447 = pneg %p180
        %p448 = pneg %p177
        %p449 = pneg %p201
        %p450 = pneg %p198
        %p451 = pneg %p222
        %p452 = pneg %p219
        %p453 = pneg %p243
        %p454 = pneg %p240
        %p455 = pneg %p264
        %p456 = pneg %p261
        %p457 = pneg %p285
        %p458 = pneg %p282
        %p459 = pneg %p306
        %p460 = pneg %p303
        %p461 = pneg %p327
        %p462 = pneg %p324
        %p463 = pneg %p353
        %p464 = pneg %p350
        %s465 = sand.u32 %s340, 1
        %s466 = scalar_lea.sflag [#allocation3], %s465
        %s467 = sand.u32 %s340, 1
        %s468 = smul.addr %s467, 8
        %s469 = scalar_lea.vmem [#allocation2], %s468
        %p470 = scmp.lt.s32.totalorder %s28, 1
        %s471 = scalar_select %p470, %s28, 1
        %s472 = smul.addr %s471, 8
        %s473 = scalar_lea.vmem %s0, %s472
        %p474 = scmp.lt.s32.totalorder %s28, 1
        %s475 = scalar_select %p474, %s28, 1
        %s476 = scalar_lea.vmem %s1, %s475
        %v477 = vld [vmem:[%s473] sm:$0xff]
        %v478 = vld [vmem:[%s476] sm:$0x1]
        %v479 = vld [vmem:[%s2] sm:$0xff]
        %v480 = vld [vmem:[%s2 + $0x8] sm:$0xff]
        %v481 = vld [vmem:[%s2 + $0x10] sm:$0xff]
        %v482 = vld [vmem:[%s2 + $0x18] sm:$0xff]
        %v483 = vld [vmem:[%s3] sm:$0x1]
        %v485 = vlaneseq
        %v486 = vshrl.u32 %v485, 7
        %v487 = vsub.s32 0, %v486
        %v488 = vrot.slane %v483, %v487
        %vm490 = vcmask 261120
        %v492 = vsel %vm490, %v477, 0
        %494 = vmatprep.subr.mxu0 0.0
        %495 = vmatpush1.msra.mxu0 %v479
        %496 = vmatprep.subr.mxu0 0.0
        %497 = vmatpush1.msra.mxu0 %v480
        %498 = vmatprep.subr.mxu0 0.0
        %499 = vmatpush1.msra.mxu0 %v481
        %500 = vmatprep.subr.mxu0 0.0
        %501 = vmatpush1.msra.mxu0 %v482
        %502 = vmatprep.subr.mxu0 0.0
        %503 = vmatpush1.msra.mxu0 0.0
        %504 = vmatprep.subr.mxu0 0.0
        %505 = vmatpush1.msra.mxu0 0.0
        %506 = vmatprep.subr.mxu0 0.0
        %507 = vmatpush1.msra.mxu0 0.0
        %508 = vmatprep.subr.mxu0 0.0
        %509 = vmatpush1.msra.mxu0 0.0
        %510 = vmatprep.subr.mxu0 0.0
        %511 = vmatpush1.msra.mxu0 0.0
        %512 = vmatprep.subr.mxu0 0.0
        %513 = vmatpush1.msra.mxu0 0.0
        %514 = vmatprep.subr.mxu0 0.0
        %515 = vmatpush1.msra.mxu0 0.0
        %516 = vmatprep.subr.mxu0 0.0
        %517 = vmatpush1.msra.mxu0 0.0
        %518 = vmatprep.subr.mxu0 0.0
        %519 = vmatpush1.msra.mxu0 0.0
        %520 = vmatprep.subr.mxu0 0.0
        %521 = vmatpush1.msra.mxu0 0.0
        %522 = vmatprep.subr.mxu0 0.0
        %523 = vmatpush1.msra.mxu0 0.0
        %524 = vmatprep.subr.mxu0 0.0
        %525 = vmatpush1.msra.mxu0 0.0
        %526 = vmatprep.subr.mxu0 0.0
        %527 = vmatpush1.msra.mxu0 0.0
        %528 = vmatprep.subr.mxu0 0.0
        %529 = vmatpush1.msra.mxu0 0.0
        %530 = vmatprep.subr.mxu0 0.0
        %531 = vmatpush1.msra.mxu0 0.0
        %532 = vmatprep.subr.mxu0 0.0
        %533 = vmatpush1.msra.mxu0 0.0
        %534 = vmatprep.subr.mxu0 0.0
        %535 = vmatpush1.msra.mxu0 0.0
        %536 = vmatprep.subr.mxu0 0.0
        %537 = vmatpush1.msra.mxu0 0.0
        %538 = vmatprep.subr.mxu0 0.0
        %539 = vmatpush1.msra.mxu0 0.0
        %540 = vmatprep.subr.mxu0 0.0
        %541 = vmatpush1.msra.mxu0 0.0
        %542 = vmatprep.subr.mxu0 0.0
        %543 = vmatpush1.msra.mxu0 0.0
        %544 = vmatprep.subr.mxu0 0.0
        %545 = vmatpush1.msra.mxu0 0.0
        %546 = vmatprep.subr.mxu0 0.0
        %547 = vmatpush1.msra.mxu0 0.0
        %548 = vmatprep.subr.mxu0 0.0
        %549 = vmatpush1.msra.mxu0 0.0
        %550 = vmatprep.subr.mxu0 0.0
        %551 = vmatpush1.msra.mxu0 0.0
        %552 = vmatprep.subr.mxu0 0.0
        %553 = vmatpush1.msra.mxu0 0.0
        %554 = vmatprep.subr.mxu0 0.0
        %555 = vmatpush1.msra.mxu0 0.0
        %556 = vmatprep.subr.mxu0 0.0
        %557 = vmatpush1.msra.mxu0 0.0
        %558 = vmatprep.mubr.f32.mxu0 0.0
        %559 = vmatmul.mubr.f32.gmra.mrb[0].mxu0 %v492
        %v560 = vpop.f32.mrb[0].mxu0
        %v561 = vadd.f32 %v488, %v560
        %v562 = vpop.f32.mrb[0].mxu0
        %563 = vdwg.mxu0
        %565 = vrot.lane.b32.xlu0 %v561, 96
        %v566 = vpop.permute.xlu0 %565
        %vm567 = vcmask 64512
        %v568 = vsel %vm567, %v561, 0
        %v570 = vsel %vm567, %v566, 0
        %572 = vmatprep.subr.mxu0 0.0
        %573 = vmatpush1.xpose.msra.mxu0 %v570
        %574 = vmatprep.subr.mxu0 0.0
        %575 = vmatpush1.xpose.msra.mxu0 0.0
        %576 = vmatprep.subr.mxu0 0.0
        %577 = vmatpush1.xpose.msra.mxu0 0.0
        %578 = vmatprep.subr.mxu0 0.0
        %579 = vmatpush1.xpose.msra.mxu0 0.0
        %580 = vmatprep.subr.mxu0 0.0
        %581 = vmatpush1.xpose.msra.mxu0 0.0
        %582 = vmatprep.subr.mxu0 0.0
        %583 = vmatpush1.xpose.msra.mxu0 0.0
        %584 = vmatprep.subr.mxu0 0.0
        %585 = vmatpush1.xpose.msra.mxu0 0.0
        %586 = vmatprep.subr.mxu0 0.0
        %587 = vmatpush1.xpose.msra.mxu0 0.0
        %588 = vmatprep.subr.mxu0 0.0
        %589 = vmatpush1.xpose.msra.mxu0 0.0
        %590 = vmatprep.subr.mxu0 0.0
        %591 = vmatpush1.xpose.msra.mxu0 0.0
        %592 = vmatprep.subr.mxu0 0.0
        %593 = vmatpush1.xpose.msra.mxu0 0.0
        %594 = vmatprep.subr.mxu0 0.0
        %595 = vmatpush1.xpose.msra.mxu0 0.0
        %596 = vmatprep.subr.mxu0 0.0
        %597 = vmatpush1.xpose.msra.mxu0 0.0
        %598 = vmatprep.subr.mxu0 0.0
        %599 = vmatpush1.xpose.msra.mxu0 0.0
        %600 = vmatprep.subr.mxu0 0.0
        %601 = vmatpush1.xpose.msra.mxu0 0.0
        %602 = vmatprep.subr.mxu0 0.0
        %603 = vmatpush1.xpose.msra.mxu0 0.0
        %604 = vmatprep.subr.mxu0 0.0
        %605 = vmatpush1.xpose.msra.mxu0 0.0
        %606 = vmatprep.subr.mxu0 0.0
        %607 = vmatpush1.xpose.msra.mxu0 0.0
        %608 = vmatprep.subr.mxu0 0.0
        %609 = vmatpush1.xpose.msra.mxu0 0.0
        %610 = vmatprep.subr.mxu0 0.0
        %611 = vmatpush1.xpose.msra.mxu0 0.0
        %612 = vmatprep.subr.mxu0 0.0
        %613 = vmatpush1.xpose.msra.mxu0 0.0
        %614 = vmatprep.subr.mxu0 0.0
        %615 = vmatpush1.xpose.msra.mxu0 0.0
        %616 = vmatprep.subr.mxu0 0.0
        %617 = vmatpush1.xpose.msra.mxu0 0.0
        %618 = vmatprep.subr.mxu0 0.0
        %619 = vmatpush1.xpose.msra.mxu0 0.0
        %620 = vmatprep.subr.mxu0 0.0
        %621 = vmatpush1.xpose.msra.mxu0 0.0
        %622 = vmatprep.subr.mxu0 0.0
        %623 = vmatpush1.xpose.msra.mxu0 0.0
        %624 = vmatprep.subr.mxu0 0.0
        %625 = vmatpush1.xpose.msra.mxu0 0.0
        %626 = vmatprep.subr.mxu0 0.0
        %627 = vmatpush1.xpose.msra.mxu0 0.0
        %628 = vmatprep.subr.mxu0 0.0
        %629 = vmatpush1.xpose.msra.mxu0 0.0
        %630 = vmatprep.subr.mxu0 0.0
        %631 = vmatpush1.xpose.msra.mxu0 0.0
        %632 = vmatprep.subr.mxu0 0.0
        %633 = vmatpush1.xpose.msra.mxu0 0.0
        %634 = vmatprep.subr.mxu0 0.0
        %635 = vmatpush1.xpose.msra.mxu0 0.0
        %636 = vmatprep.mubr.f32.mxu0 0.0
        %637 = vmatmul.mubr.f32.gmra.mrb[0].mxu0 %v568
        %v638 = vpop.f32.mrb[0].mxu0
        %v639 = vadd.f32 0.0, %v638
        %v640 = vpop.f32.mrb[0].mxu0
        %641 = vdwg.mxu0
        %v642 = vmul.f32 %v639, 0.35355338
        %v644 = vlaneseq
        %v645 = vshrl.u32 %v644, 7
        %v646 = vsub.s32 0, %v645
        %v647 = vrot.slane %v478, %v646
        %v649 = vadd.f32 %v642, %v647
        %v650 = vsel %vm567, %v649, -inf
        %651 = vmax.xlane.f32.xlu0 %v650
        %v652 = vpop.xlane.xlu0 %651
        %v653 = vsub.f32 %v649, %v652
        %v654 = vmul.f32 %v653, 1.442695
        %v655 = vpow.pop %v654
        %v656 = vsel %vm567, %v655, 0.0
        %657 = vadd.xlane.f32.xlu0 %v656
        %v658 = vpop.xlane.xlu0 %657
        %v659 = vrcp.pop %v658
        %v660 = vmul.f32 %v655, %v659
        %661 = vrot.lane.b32.xlu0 %v561, 64
        %v662 = vpop.permute.xlu0 %661
        %v665 = vsel %vm567, %v660, 0
        %667 = vmatprep.subr.mxu0 0.0
        %668 = vmatpush1.msra.mxu0 %v662
        %669 = vmatprep.subr.mxu0 0.0
        %670 = vmatpush1.msra.mxu0 0.0
        %671 = vmatprep.subr.mxu0 0.0
        %672 = vmatpush1.msra.mxu0 0.0
        %673 = vmatprep.subr.mxu0 0.0
        %674 = vmatpush1.msra.mxu0 0.0
        %675 = vmatprep.subr.mxu0 0.0
        %676 = vmatpush1.msra.mxu0 0.0
        %677 = vmatprep.subr.mxu0 0.0
        %678 = vmatpush1.msra.mxu0 0.0
        %679 = vmatprep.subr.mxu0 0.0
        %680 = vmatpush1.msra.mxu0 0.0
        %681 = vmatprep.subr.mxu0 0.0
        %682 = vmatpush1.msra.mxu0 0.0
        %683 = vmatprep.subr.mxu0 0.0
        %684 = vmatpush1.msra.mxu0 0.0
        %685 = vmatprep.subr.mxu0 0.0
        %686 = vmatpush1.msra.mxu0 0.0
        %687 = vmatprep.subr.mxu0 0.0
        %688 = vmatpush1.msra.mxu0 0.0
        %689 = vmatprep.subr.mxu0 0.0
        %690 = vmatpush1.msra.mxu0 0.0
        %691 = vmatprep.subr.mxu0 0.0
        %692 = vmatpush1.msra.mxu0 0.0
        %693 = vmatprep.subr.mxu0 0.0
        %694 = vmatpush1.msra.mxu0 0.0
        %695 = vmatprep.subr.mxu0 0.0
        %696 = vmatpush1.msra.mxu0 0.0
        %697 = vmatprep.subr.mxu0 0.0
        %698 = vmatpush1.msra.mxu0 0.0
        %699 = vmatprep.subr.mxu0 0.0
        %700 = vmatpush1.msra.mxu0 0.0
        %701 = vmatprep.subr.mxu0 0.0
        %702 = vmatpush1.msra.mxu0 0.0
        %703 = vmatprep.subr.mxu0 0.0
        %704 = vmatpush1.msra.mxu0 0.0
        %705 = vmatprep.subr.mxu0 0.0
        %706 = vmatpush1.msra.mxu0 0.0
        %707 = vmatprep.subr.mxu0 0.0
        %708 = vmatpush1.msra.mxu0 0.0
        %709 = vmatprep.subr.mxu0 0.0
        %710 = vmatpush1.msra.mxu0 0.0
        %711 = vmatprep.subr.mxu0 0.0
        %712 = vmatpush1.msra.mxu0 0.0
        %713 = vmatprep.subr.mxu0 0.0
        %714 = vmatpush1.msra.mxu0 0.0
        %715 = vmatprep.subr.mxu0 0.0
        %716 = vmatpush1.msra.mxu0 0.0
        %717 = vmatprep.subr.mxu0 0.0
        %718 = vmatpush1.msra.mxu0 0.0
        %719 = vmatprep.subr.mxu0 0.0
        %720 = vmatpush1.msra.mxu0 0.0
        %721 = vmatprep.subr.mxu0 0.0
        %722 = vmatpush1.msra.mxu0 0.0
        %723 = vmatprep.subr.mxu0 0.0
        %724 = vmatpush1.msra.mxu0 0.0
        %725 = vmatprep.subr.mxu0 0.0
        %726 = vmatpush1.msra.mxu0 0.0
        %727 = vmatprep.subr.mxu0 0.0
        %728 = vmatpush1.msra.mxu0 0.0
        %729 = vmatprep.subr.mxu0 0.0
        %730 = vmatpush1.msra.mxu0 0.0
        %731 = vmatprep.mubr.f32.mxu0 0.0
        %732 = vmatmul.mubr.f32.gmra.mrb[0].mxu0 %v665
        %v733 = vpop.f32.mrb[0].mxu0
        %v734 = vadd.f32 0.0, %v733
        %v735 = vpop.f32.mrb[0].mxu0
        %736 = vdwg.mxu0
        %737 = vrot.lane.b32.xlu0 %v561, 120
        %v738 = vpop.permute.xlu0 %737
        %739 = vrot.lane.b32.xlu0 %v561, 88
        %v740 = vpop.permute.xlu0 %739
        %v741 = vsel %vm567, %v738, 0
        %v743 = vsel %vm567, %v740, 0
        %745 = vmatprep.subr.mxu0 0.0
        %746 = vmatpush1.xpose.msra.mxu0 %v743
        %747 = vmatprep.subr.mxu0 0.0
        %748 = vmatpush1.xpose.msra.mxu0 0.0
        %749 = vmatprep.subr.mxu0 0.0
        %750 = vmatpush1.xpose.msra.mxu0 0.0
        %751 = vmatprep.subr.mxu0 0.0
        %752 = vmatpush1.xpose.msra.mxu0 0.0
        %753 = vmatprep.subr.mxu0 0.0
        %754 = vmatpush1.xpose.msra.mxu0 0.0
        %755 = vmatprep.subr.mxu0 0.0
        %756 = vmatpush1.xpose.msra.mxu0 0.0
        %757 = vmatprep.subr.mxu0 0.0
        %758 = vmatpush1.xpose.msra.mxu0 0.0
        %759 = vmatprep.subr.mxu0 0.0
        %760 = vmatpush1.xpose.msra.mxu0 0.0
        %761 = vmatprep.subr.mxu0 0.0
        %762 = vmatpush1.xpose.msra.mxu0 0.0
        %763 = vmatprep.subr.mxu0 0.0
        %764 = vmatpush1.xpose.msra.mxu0 0.0
        %765 = vmatprep.subr.mxu0 0.0
        %766 = vmatpush1.xpose.msra.mxu0 0.0
        %767 = vmatprep.subr.mxu0 0.0
        %768 = vmatpush1.xpose.msra.mxu0 0.0
        %769 = vmatprep.subr.mxu0 0.0
        %770 = vmatpush1.xpose.msra.mxu0 0.0
        %771 = vmatprep.subr.mxu0 0.0
        %772 = vmatpush1.xpose.msra.mxu0 0.0
        %773 = vmatprep.subr.mxu0 0.0
        %774 = vmatpush1.xpose.msra.mxu0 0.0
        %775 = vmatprep.subr.mxu0 0.0
        %776 = vmatpush1.xpose.msra.mxu0 0.0
        %777 = vmatprep.subr.mxu0 0.0
        %778 = vmatpush1.xpose.msra.mxu0 0.0
        %779 = vmatprep.subr.mxu0 0.0
        %780 = vmatpush1.xpose.msra.mxu0 0.0
        %781 = vmatprep.subr.mxu0 0.0
        %782 = vmatpush1.xpose.msra.mxu0 0.0
        %783 = vmatprep.subr.mxu0 0.0
        %784 = vmatpush1.xpose.msra.mxu0 0.0
        %785 = vmatprep.subr.mxu0 0.0
        %786 = vmatpush1.xpose.msra.mxu0 0.0
        %787 = vmatprep.subr.mxu0 0.0
        %788 = vmatpush1.xpose.msra.mxu0 0.0
        %789 = vmatprep.subr.mxu0 0.0
        %790 = vmatpush1.xpose.msra.mxu0 0.0
        %791 = vmatprep.subr.mxu0 0.0
        %792 = vmatpush1.xpose.msra.mxu0 0.0
        %793 = vmatprep.subr.mxu0 0.0
        %794 = vmatpush1.xpose.msra.mxu0 0.0
        %795 = vmatprep.subr.mxu0 0.0
        %796 = vmatpush1.xpose.msra.mxu0 0.0
        %797 = vmatprep.subr.mxu0 0.0
        %798 = vmatpush1.xpose.msra.mxu0 0.0
        %799 = vmatprep.subr.mxu0 0.0
        %800 = vmatpush1.xpose.msra.mxu0 0.0
        %801 = vmatprep.subr.mxu0 0.0
        %802 = vmatpush1.xpose.msra.mxu0 0.0
        %803 = vmatprep.subr.mxu0 0.0
        %804 = vmatpush1.xpose.msra.mxu0 0.0
        %805 = vmatprep.subr.mxu0 0.0
        %806 = vmatpush1.xpose.msra.mxu0 0.0
        %807 = vmatprep.subr.mxu0 0.0
        %808 = vmatpush1.xpose.msra.mxu0 0.0
        %809 = vmatprep.mubr.f32.mxu0 0.0
        %810 = vmatmul.mubr.f32.gmra.mrb[0].mxu0 %v741
        %v811 = vpop.f32.mrb[0].mxu0
        %v812 = vadd.f32 0.0, %v811
        %v813 = vpop.f32.mrb[0].mxu0
        %814 = vdwg.mxu0
        %v815 = vmul.f32 %v812, 0.35355338
        %v816 = vadd.f32 %v815, %v647
        %v817 = vsel %vm567, %v816, -inf
        %818 = vmax.xlane.f32.xlu0 %v817
        %v819 = vpop.xlane.xlu0 %818
        %v820 = vsub.f32 %v816, %v819
        %v821 = vmul.f32 %v820, 1.442695
        %v822 = vpow.pop %v821
        %v823 = vsel %vm567, %v822, 0.0
        %824 = vadd.xlane.f32.xlu0 %v823
        %v825 = vpop.xlane.xlu0 %824
        %v826 = vrcp.pop %v825
        %v827 = vmul.f32 %v822, %v826
        %828 = vrot.lane.b32.xlu0 %v561, 56
        %v829 = vpop.permute.xlu0 %828
        %v832 = vsel %vm567, %v827, 0
        %834 = vmatprep.subr.mxu0 0.0
        %835 = vmatpush1.msra.mxu0 %v829
        %836 = vmatprep.subr.mxu0 0.0
        %837 = vmatpush1.msra.mxu0 0.0
        %838 = vmatprep.subr.mxu0 0.0
        %839 = vmatpush1.msra.mxu0 0.0
        %840 = vmatprep.subr.mxu0 0.0
        %841 = vmatpush1.msra.mxu0 0.0
        %842 = vmatprep.subr.mxu0 0.0
        %843 = vmatpush1.msra.mxu0 0.0
        %844 = vmatprep.subr.mxu0 0.0
        %845 = vmatpush1.msra.mxu0 0.0
        %846 = vmatprep.subr.mxu0 0.0
        %847 = vmatpush1.msra.mxu0 0.0
        %848 = vmatprep.subr.mxu0 0.0
        %849 = vmatpush1.msra.mxu0 0.0
        %850 = vmatprep.subr.mxu0 0.0
        %851 = vmatpush1.msra.mxu0 0.0
        %852 = vmatprep.subr.mxu0 0.0
        %853 = vmatpush1.msra.mxu0 0.0
        %854 = vmatprep.subr.mxu0 0.0
        %855 = vmatpush1.msra.mxu0 0.0
        %856 = vmatprep.subr.mxu0 0.0
        %857 = vmatpush1.msra.mxu0 0.0
        %858 = vmatprep.subr.mxu0 0.0
        %859 = vmatpush1.msra.mxu0 0.0
        %860 = vmatprep.subr.mxu0 0.0
        %861 = vmatpush1.msra.mxu0 0.0
        %862 = vmatprep.subr.mxu0 0.0
        %863 = vmatpush1.msra.mxu0 0.0
        %864 = vmatprep.subr.mxu0 0.0
        %865 = vmatpush1.msra.mxu0 0.0
        %866 = vmatprep.subr.mxu0 0.0
        %867 = vmatpush1.msra.mxu0 0.0
        %868 = vmatprep.subr.mxu0 0.0
        %869 = vmatpush1.msra.mxu0 0.0
        %870 = vmatprep.subr.mxu0 0.0
        %871 = vmatpush1.msra.mxu0 0.0
        %872 = vmatprep.subr.mxu0 0.0
        %873 = vmatpush1.msra.mxu0 0.0
        %874 = vmatprep.subr.mxu0 0.0
        %875 = vmatpush1.msra.mxu0 0.0
        %876 = vmatprep.subr.mxu0 0.0
        %877 = vmatpush1.msra.mxu0 0.0
        %878 = vmatprep.subr.mxu0 0.0
        %879 = vmatpush1.msra.mxu0 0.0
        %880 = vmatprep.subr.mxu0 0.0
        %881 = vmatpush1.msra.mxu0 0.0
        %882 = vmatprep.subr.mxu0 0.0
        %883 = vmatpush1.msra.mxu0 0.0
        %884 = vmatprep.subr.mxu0 0.0
        %885 = vmatpush1.msra.mxu0 0.0
        %886 = vmatprep.subr.mxu0 0.0
        %887 = vmatpush1.msra.mxu0 0.0
        %888 = vmatprep.subr.mxu0 0.0
        %889 = vmatpush1.msra.mxu0 0.0
        %890 = vmatprep.subr.mxu0 0.0
        %891 = vmatpush1.msra.mxu0 0.0
        %892 = vmatprep.subr.mxu0 0.0
        %893 = vmatpush1.msra.mxu0 0.0
        %894 = vmatprep.subr.mxu0 0.0
        %895 = vmatpush1.msra.mxu0 0.0
        %896 = vmatprep.subr.mxu0 0.0
        %897 = vmatpush1.msra.mxu0 0.0
        %898 = vmatprep.mubr.f32.mxu0 0.0
        %899 = vmatmul.mubr.f32.gmra.mrb[0].mxu0 %v832
        %v900 = vpop.f32.mrb[0].mxu0
        %v901 = vadd.f32 0.0, %v900
        %v902 = vpop.f32.mrb[0].mxu0
        %903 = vdwg.mxu0
        %904 = vrot.lane.b32.xlu0 %v561, 112
        %v905 = vpop.permute.xlu0 %904
        %906 = vrot.lane.b32.xlu0 %v561, 80
        %v907 = vpop.permute.xlu0 %906
        %v908 = vsel %vm567, %v905, 0
        %v910 = vsel %vm567, %v907, 0
        %912 = vmatprep.subr.mxu0 0.0
        %913 = vmatpush1.xpose.msra.mxu0 %v910
        %914 = vmatprep.subr.mxu0 0.0
        %915 = vmatpush1.xpose.msra.mxu0 0.0
        %916 = vmatprep.subr.mxu0 0.0
        %917 = vmatpush1.xpose.msra.mxu0 0.0
        %918 = vmatprep.subr.mxu0 0.0
        %919 = vmatpush1.xpose.msra.mxu0 0.0
        %920 = vmatprep.subr.mxu0 0.0
        %921 = vmatpush1.xpose.msra.mxu0 0.0
        %922 = vmatprep.subr.mxu0 0.0
        %923 = vmatpush1.xpose.msra.mxu0 0.0
        %924 = vmatprep.subr.mxu0 0.0
        %925 = vmatpush1.xpose.msra.mxu0 0.0
        %926 = vmatprep.subr.mxu0 0.0
        %927 = vmatpush1.xpose.msra.mxu0 0.0
        %928 = vmatprep.subr.mxu0 0.0
        %929 = vmatpush1.xpose.msra.mxu0 0.0
        %930 = vmatprep.subr.mxu0 0.0
        %931 = vmatpush1.xpose.msra.mxu0 0.0
        %932 = vmatprep.subr.mxu0 0.0
        %933 = vmatpush1.xpose.msra.mxu0 0.0
        %934 = vmatprep.subr.mxu0 0.0
        %935 = vmatpush1.xpose.msra.mxu0 0.0
        %936 = vmatprep.subr.mxu0 0.0
        %937 = vmatpush1.xpose.msra.mxu0 0.0
        %938 = vmatprep.subr.mxu0 0.0
        %939 = vmatpush1.xpose.msra.mxu0 0.0
        %940 = vmatprep.subr.mxu0 0.0
        %941 = vmatpush1.xpose.msra.mxu0 0.0
        %942 = vmatprep.subr.mxu0 0.0
        %943 = vmatpush1.xpose.msra.mxu0 0.0
        %944 = vmatprep.subr.mxu0 0.0
        %945 = vmatpush1.xpose.msra.mxu0 0.0
        %946 = vmatprep.subr.mxu0 0.0
        %947 = vmatpush1.xpose.msra.mxu0 0.0
        %948 = vmatprep.subr.mxu0 0.0
        %949 = vmatpush1.xpose.msra.mxu0 0.0
        %950 = vmatprep.subr.mxu0 0.0
        %951 = vmatpush1.xpose.msra.mxu0 0.0
        %952 = vmatprep.subr.mxu0 0.0
        %953 = vmatpush1.xpose.msra.mxu0 0.0
        %954 = vmatprep.subr.mxu0 0.0
        %955 = vmatpush1.xpose.msra.mxu0 0.0
        %956 = vmatprep.subr.mxu0 0.0
        %957 = vmatpush1.xpose.msra.mxu0 0.0
        %958 = vmatprep.subr.mxu0 0.0
        %959 = vmatpush1.xpose.msra.mxu0 0.0
        %960 = vmatprep.subr.mxu0 0.0
        %961 = vmatpush1.xpose.msra.mxu0 0.0
        %962 = vmatprep.subr.mxu0 0.0
        %963 = vmatpush1.xpose.msra.mxu0 0.0
        %964 = vmatprep.subr.mxu0 0.0
        %965 = vmatpush1.xpose.msra.mxu0 0.0
        %966 = vmatprep.subr.mxu0 0.0
        %967 = vmatpush1.xpose.msra.mxu0 0.0
        %968 = vmatprep.subr.mxu0 0.0
        %969 = vmatpush1.xpose.msra.mxu0 0.0
        %970 = vmatprep.subr.mxu0 0.0
        %971 = vmatpush1.xpose.msra.mxu0 0.0
        %972 = vmatprep.subr.mxu0 0.0
        %973 = vmatpush1.xpose.msra.mxu0 0.0
        %974 = vmatprep.subr.mxu0 0.0
        %975 = vmatpush1.xpose.msra.mxu0 0.0
        %976 = vmatprep.mubr.f32.mxu0 0.0
        %977 = vmatmul.mubr.f32.gmra.mrb[0].mxu0 %v908
        %v978 = vpop.f32.mrb[0].mxu0
        %v979 = vadd.f32 0.0, %v978
        %v980 = vpop.f32.mrb[0].mxu0
        %981 = vdwg.mxu0
        %v982 = vmul.f32 %v979, 0.35355338
        %v983 = vadd.f32 %v982, %v647
        %v984 = vsel %vm567, %v983, -inf
        %985 = vmax.xlane.f32.xlu0 %v984
        %v986 = vpop.xlane.xlu0 %985
        %v987 = vsub.f32 %v983, %v986
        %v988 = vmul.f32 %v987, 1.442695
        %v989 = vpow.pop %v988
        %v990 = vsel %vm567, %v989, 0.0
        %991 = vadd.xlane.f32.xlu0 %v990
        %v992 = vpop.xlane.xlu0 %991
        %v993 = vrcp.pop %v992
        %v994 = vmul.f32 %v989, %v993
        %995 = vrot.lane.b32.xlu0 %v561, 48
        %v996 = vpop.permute.xlu0 %995
        %v999 = vsel %vm567, %v994, 0
        %1001 = vmatprep.subr.mxu0 0.0
        %1002 = vmatpush1.msra.mxu0 %v996
        %1003 = vmatprep.subr.mxu0 0.0
        %1004 = vmatpush1.msra.mxu0 0.0
        %1005 = vmatprep.subr.mxu0 0.0
        %1006 = vmatpush1.msra.mxu0 0.0
        %1007 = vmatprep.subr.mxu0 0.0
        %1008 = vmatpush1.msra.mxu0 0.0
        %1009 = vmatprep.subr.mxu0 0.0
        %1010 = vmatpush1.msra.mxu0 0.0
        %1011 = vmatprep.subr.mxu0 0.0
        %1012 = vmatpush1.msra.mxu0 0.0
        %1013 = vmatprep.subr.mxu0 0.0
        %1014 = vmatpush1.msra.mxu0 0.0
        %1015 = vmatprep.subr.mxu0 0.0
        %1016 = vmatpush1.msra.mxu0 0.0
        %1017 = vmatprep.subr.mxu0 0.0
        %1018 = vmatpush1.msra.mxu0 0.0
        %1019 = vmatprep.subr.mxu0 0.0
        %1020 = vmatpush1.msra.mxu0 0.0
        %1021 = vmatprep.subr.mxu0 0.0
        %1022 = vmatpush1.msra.mxu0 0.0
        %1023 = vmatprep.subr.mxu0 0.0
        %1024 = vmatpush1.msra.mxu0 0.0
        %1025 = vmatprep.subr.mxu0 0.0
        %1026 = vmatpush1.msra.mxu0 0.0
        %1027 = vmatprep.subr.mxu0 0.0
        %1028 = vmatpush1.msra.mxu0 0.0
        %1029 = vmatprep.subr.mxu0 0.0
        %1030 = vmatpush1.msra.mxu0 0.0
        %1031 = vmatprep.subr.mxu0 0.0
        %1032 = vmatpush1.msra.mxu0 0.0
        %1033 = vmatprep.subr.mxu0 0.0
        %1034 = vmatpush1.msra.mxu0 0.0
        %1035 = vmatprep.subr.mxu0 0.0
        %1036 = vmatpush1.msra.mxu0 0.0
        %1037 = vmatprep.subr.mxu0 0.0
        %1038 = vmatpush1.msra.mxu0 0.0
        %1039 = vmatprep.subr.mxu0 0.0
        %1040 = vmatpush1.msra.mxu0 0.0
        %1041 = vmatprep.subr.mxu0 0.0
        %1042 = vmatpush1.msra.mxu0 0.0
        %1043 = vmatprep.subr.mxu0 0.0
        %1044 = vmatpush1.msra.mxu0 0.0
        %1045 = vmatprep.subr.mxu0 0.0
        %1046 = vmatpush1.msra.mxu0 0.0
        %1047 = vmatprep.subr.mxu0 0.0
        %1048 = vmatpush1.msra.mxu0 0.0
        %1049 = vmatprep.subr.mxu0 0.0
        %1050 = vmatpush1.msra.mxu0 0.0
        %1051 = vmatprep.subr.mxu0 0.0
        %1052 = vmatpush1.msra.mxu0 0.0
        %1053 = vmatprep.subr.mxu0 0.0
        %1054 = vmatpush1.msra.mxu0 0.0
        %1055 = vmatprep.subr.mxu0 0.0
        %1056 = vmatpush1.msra.mxu0 0.0
        %1057 = vmatprep.subr.mxu0 0.0
        %1058 = vmatpush1.msra.mxu0 0.0
        %1059 = vmatprep.subr.mxu0 0.0
        %1060 = vmatpush1.msra.mxu0 0.0
        %1061 = vmatprep.subr.mxu0 0.0
        %1062 = vmatpush1.msra.mxu0 0.0
        %1063 = vmatprep.subr.mxu0 0.0
        %1064 = vmatpush1.msra.mxu0 0.0
        %1065 = vmatprep.mubr.f32.mxu0 0.0
        %1066 = vmatmul.mubr.f32.gmra.mrb[0].mxu0 %v999
        %v1067 = vpop.f32.mrb[0].mxu0
        %v1068 = vadd.f32 0.0, %v1067
        %v1069 = vpop.f32.mrb[0].mxu0
        %1070 = vdwg.mxu0
        %1071 = vrot.lane.b32.xlu0 %v561, 104
        %v1072 = vpop.permute.xlu0 %1071
        %1073 = vrot.lane.b32.xlu0 %v561, 72
        %v1074 = vpop.permute.xlu0 %1073
        %v1075 = vsel %vm567, %v1072, 0
        %v1077 = vsel %vm567, %v1074, 0
        %1079 = vmatprep.subr.mxu0 0.0
        %1080 = vmatpush1.xpose.msra.mxu0 %v1077
        %1081 = vmatprep.subr.mxu0 0.0
        %1082 = vmatpush1.xpose.msra.mxu0 0.0
        %1083 = vmatprep.subr.mxu0 0.0
        %1084 = vmatpush1.xpose.msra.mxu0 0.0
        %1085 = vmatprep.subr.mxu0 0.0
        %1086 = vmatpush1.xpose.msra.mxu0 0.0
        %1087 = vmatprep.subr.mxu0 0.0
        %1088 = vmatpush1.xpose.msra.mxu0 0.0
        %1089 = vmatprep.subr.mxu0 0.0
        %1090 = vmatpush1.xpose.msra.mxu0 0.0
        %1091 = vmatprep.subr.mxu0 0.0
        %1092 = vmatpush1.xpose.msra.mxu0 0.0
        %1093 = vmatprep.subr.mxu0 0.0
        %1094 = vmatpush1.xpose.msra.mxu0 0.0
        %1095 = vmatprep.subr.mxu0 0.0
        %1096 = vmatpush1.xpose.msra.mxu0 0.0
        %1097 = vmatprep.subr.mxu0 0.0
        %1098 = vmatpush1.xpose.msra.mxu0 0.0
        %1099 = vmatprep.subr.mxu0 0.0
        %1100 = vmatpush1.xpose.msra.mxu0 0.0
        %1101 = vmatprep.subr.mxu0 0.0
        %1102 = vmatpush1.xpose.msra.mxu0 0.0
        %1103 = vmatprep.subr.mxu0 0.0
        %1104 = vmatpush1.xpose.msra.mxu0 0.0
        %1105 = vmatprep.subr.mxu0 0.0
        %1106 = vmatpush1.xpose.msra.mxu0 0.0
        %1107 = vmatprep.subr.mxu0 0.0
        %1108 = vmatpush1.xpose.msra.mxu0 0.0
        %1109 = vmatprep.subr.mxu0 0.0
        %1110 = vmatpush1.xpose.msra.mxu0 0.0
        %1111 = vmatprep.subr.mxu0 0.0
        %1112 = vmatpush1.xpose.msra.mxu0 0.0
        %1113 = vmatprep.subr.mxu0 0.0
        %1114 = vmatpush1.xpose.msra.mxu0 0.0
        %1115 = vmatprep.subr.mxu0 0.0
        %1116 = vmatpush1.xpose.msra.mxu0 0.0
        %1117 = vmatprep.subr.mxu0 0.0
        %1118 = vmatpush1.xpose.msra.mxu0 0.0
        %1119 = vmatprep.subr.mxu0 0.0
        %1120 = vmatpush1.xpose.msra.mxu0 0.0
        %1121 = vmatprep.subr.mxu0 0.0
        %1122 = vmatpush1.xpose.msra.mxu0 0.0
        %1123 = vmatprep.subr.mxu0 0.0
        %1124 = vmatpush1.xpose.msra.mxu0 0.0
        %1125 = vmatprep.subr.mxu0 0.0
        %1126 = vmatpush1.xpose.msra.mxu0 0.0
        %1127 = vmatprep.subr.mxu0 0.0
        %1128 = vmatpush1.xpose.msra.mxu0 0.0
        %1129 = vmatprep.subr.mxu0 0.0
        %1130 = vmatpush1.xpose.msra.mxu0 0.0
        %1131 = vmatprep.subr.mxu0 0.0
        %1132 = vmatpush1.xpose.msra.mxu0 0.0
        %1133 = vmatprep.subr.mxu0 0.0
        %1134 = vmatpush1.xpose.msra.mxu0 0.0
        %1135 = vmatprep.subr.mxu0 0.0
        %1136 = vmatpush1.xpose.msra.mxu0 0.0
        %1137 = vmatprep.subr.mxu0 0.0
        %1138 = vmatpush1.xpose.msra.mxu0 0.0
        %1139 = vmatprep.subr.mxu0 0.0
        %1140 = vmatpush1.xpose.msra.mxu0 0.0
        %1141 = vmatprep.subr.mxu0 0.0
        %1142 = vmatpush1.xpose.msra.mxu0 0.0
        %1143 = vmatprep.mubr.f32.mxu0 0.0
        %1144 = vmatmul.mubr.f32.gmra.mrb[0].mxu0 %v1075
        %v1145 = vpop.f32.mrb[0].mxu0
        %v1146 = vadd.f32 0.0, %v1145
        %v1147 = vpop.f32.mrb[0].mxu0
        %1148 = vdwg.mxu0
        %v1149 = vmul.f32 %v1146, 0.35355338
        %v1150 = vadd.f32 %v1149, %v647
        %v1151 = vsel %vm567, %v1150, -inf
        %1152 = vmax.xlane.f32.xlu0 %v1151
        %v1153 = vpop.xlane.xlu0 %1152
        %v1154 = vsub.f32 %v1150, %v1153
        %v1155 = vmul.f32 %v1154, 1.442695
        %v1156 = vpow.pop %v1155
        %v1157 = vsel %vm567, %v1156, 0.0
        %1158 = vadd.xlane.f32.xlu0 %v1157
        %v1159 = vpop.xlane.xlu0 %1158
        %v1160 = vrcp.pop %v1159
        %v1161 = vmul.f32 %v1156, %v1160
        %1162 = vrot.lane.b32.xlu0 %v561, 40
        %v1163 = vpop.permute.xlu0 %1162
        %v1166 = vsel %vm567, %v1161, 0
        %1168 = vmatprep.subr.mxu0 0.0
        %1169 = vmatpush1.msra.mxu0 %v1163
        %1170 = vmatprep.subr.mxu0 0.0
        %1171 = vmatpush1.msra.mxu0 0.0
        %1172 = vmatprep.subr.mxu0 0.0
        %1173 = vmatpush1.msra.mxu0 0.0
        %1174 = vmatprep.subr.mxu0 0.0
        %1175 = vmatpush1.msra.mxu0 0.0
        %1176 = vmatprep.subr.mxu0 0.0
        %1177 = vmatpush1.msra.mxu0 0.0
        %1178 = vmatprep.subr.mxu0 0.0
        %1179 = vmatpush1.msra.mxu0 0.0
        %1180 = vmatprep.subr.mxu0 0.0
        %1181 = vmatpush1.msra.mxu0 0.0
        %1182 = vmatprep.subr.mxu0 0.0
        %1183 = vmatpush1.msra.mxu0 0.0
        %1184 = vmatprep.subr.mxu0 0.0
        %1185 = vmatpush1.msra.mxu0 0.0
        %1186 = vmatprep.subr.mxu0 0.0
        %1187 = vmatpush1.msra.mxu0 0.0
        %1188 = vmatprep.subr.mxu0 0.0
        %1189 = vmatpush1.msra.mxu0 0.0
        %1190 = vmatprep.subr.mxu0 0.0
        %1191 = vmatpush1.msra.mxu0 0.0
        %1192 = vmatprep.subr.mxu0 0.0
        %1193 = vmatpush1.msra.mxu0 0.0
        %1194 = vmatprep.subr.mxu0 0.0
        %1195 = vmatpush1.msra.mxu0 0.0
        %1196 = vmatprep.subr.mxu0 0.0
        %1197 = vmatpush1.msra.mxu0 0.0
        %1198 = vmatprep.subr.mxu0 0.0
        %1199 = vmatpush1.msra.mxu0 0.0
        %1200 = vmatprep.subr.mxu0 0.0
        %1201 = vmatpush1.msra.mxu0 0.0
        %1202 = vmatprep.subr.mxu0 0.0
        %1203 = vmatpush1.msra.mxu0 0.0
        %1204 = vmatprep.subr.mxu0 0.0
        %1205 = vmatpush1.msra.mxu0 0.0
        %1206 = vmatprep.subr.mxu0 0.0
        %1207 = vmatpush1.msra.mxu0 0.0
        %1208 = vmatprep.subr.mxu0 0.0
        %1209 = vmatpush1.msra.mxu0 0.0
        %1210 = vmatprep.subr.mxu0 0.0
        %1211 = vmatpush1.msra.mxu0 0.0
        %1212 = vmatprep.subr.mxu0 0.0
        %1213 = vmatpush1.msra.mxu0 0.0
        %1214 = vmatprep.subr.mxu0 0.0
        %1215 = vmatpush1.msra.mxu0 0.0
        %1216 = vmatprep.subr.mxu0 0.0
        %1217 = vmatpush1.msra.mxu0 0.0
        %1218 = vmatprep.subr.mxu0 0.0
        %1219 = vmatpush1.msra.mxu0 0.0
        %1220 = vmatprep.subr.mxu0 0.0
        %1221 = vmatpush1.msra.mxu0 0.0
        %1222 = vmatprep.subr.mxu0 0.0
        %1223 = vmatpush1.msra.mxu0 0.0
        %1224 = vmatprep.subr.mxu0 0.0
        %1225 = vmatpush1.msra.mxu0 0.0
        %1226 = vmatprep.subr.mxu0 0.0
        %1227 = vmatpush1.msra.mxu0 0.0
        %1228 = vmatprep.subr.mxu0 0.0
        %1229 = vmatpush1.msra.mxu0 0.0
        %1230 = vmatprep.subr.mxu0 0.0
        %1231 = vmatpush1.msra.mxu0 0.0
        %1232 = vmatprep.mubr.f32.mxu0 0.0
        %1233 = vmatmul.mubr.f32.gmra.mrb[0].mxu0 %v1166
        %v1234 = vpop.f32.mrb[0].mxu0
        %v1235 = vadd.f32 0.0, %v1234
        %v1236 = vpop.f32.mrb[0].mxu0
        %1237 = vdwg.mxu0
        %1239 = vrot.lane.b32.xlu0 %v901, 8
        %v1240 = vpop.permute.xlu0 %1239
        %1243 = vrot.lane.b32.xlu0 %v1068, 16
        %v1244 = vpop.permute.xlu0 %1243
        %1247 = vrot.lane.b32.xlu0 %v1235, 24
        %v1248 = vpop.permute.xlu0 %1247
        %v1250 = vsel %vm567, %v734, %v1240
        %vm1251 = vcmask 130048
        %v1252 = vsel %vm1251, %v1250, %v1244
        %vm1253 = vcmask 195584
        %v1254 = vsel %vm1253, %v1252, %v1248
        %v1255 = vld [vmem:[%s4] sm:$0xff]
        %v1256 = vld [vmem:[%s4 + $0x8] sm:$0xff]
        %v1257 = vld [vmem:[%s4 + $0x10] sm:$0xff]
        %v1258 = vld [vmem:[%s4 + $0x18] sm:$0xff]
        %v1259 = vld [vmem:[%s5] sm:$0x1]
        %v1261 = vlaneseq
        %v1262 = vshrl.u32 %v1261, 7
        %v1263 = vsub.s32 0, %v1262
        %v1264 = vrot.slane %v1259, %v1263
        %v1267 = vsel %vm490, %v1254, 0
        %1269 = vmatprep.subr.mxu0 0.0
        %1270 = vmatpush1.msra.mxu0 %v1255
        %1271 = vmatprep.subr.mxu0 0.0
        %1272 = vmatpush1.msra.mxu0 %v1256
        %1273 = vmatprep.subr.mxu0 0.0
        %1274 = vmatpush1.msra.mxu0 %v1257
        %1275 = vmatprep.subr.mxu0 0.0
        %1276 = vmatpush1.msra.mxu0 %v1258
        %1277 = vmatprep.subr.mxu0 0.0
        %1278 = vmatpush1.msra.mxu0 0.0
        %1279 = vmatprep.subr.mxu0 0.0
        %1280 = vmatpush1.msra.mxu0 0.0
        %1281 = vmatprep.subr.mxu0 0.0
        %1282 = vmatpush1.msra.mxu0 0.0
        %1283 = vmatprep.subr.mxu0 0.0
        %1284 = vmatpush1.msra.mxu0 0.0
        %1285 = vmatprep.subr.mxu0 0.0
        %1286 = vmatpush1.msra.mxu0 0.0
        %1287 = vmatprep.subr.mxu0 0.0
        %1288 = vmatpush1.msra.mxu0 0.0
        %1289 = vmatprep.subr.mxu0 0.0
        %1290 = vmatpush1.msra.mxu0 0.0
        %1291 = vmatprep.subr.mxu0 0.0
        %1292 = vmatpush1.msra.mxu0 0.0
        %1293 = vmatprep.subr.mxu0 0.0
        %1294 = vmatpush1.msra.mxu0 0.0
        %1295 = vmatprep.subr.mxu0 0.0
        %1296 = vmatpush1.msra.mxu0 0.0
        %1297 = vmatprep.subr.mxu0 0.0
        %1298 = vmatpush1.msra.mxu0 0.0
        %1299 = vmatprep.subr.mxu0 0.0
        %1300 = vmatpush1.msra.mxu0 0.0
        %1301 = vmatprep.subr.mxu0 0.0
        %1302 = vmatpush1.msra.mxu0 0.0
        %1303 = vmatprep.subr.mxu0 0.0
        %1304 = vmatpush1.msra.mxu0 0.0
        %1305 = vmatprep.subr.mxu0 0.0
        %1306 = vmatpush1.msra.mxu0 0.0
        %1307 = vmatprep.subr.mxu0 0.0
        %1308 = vmatpush1.msra.mxu0 0.0
        %1309 = vmatprep.subr.mxu0 0.0
        %1310 = vmatpush1.msra.mxu0 0.0
        %1311 = vmatprep.subr.mxu0 0.0
        %1312 = vmatpush1.msra.mxu0 0.0
        %1313 = vmatprep.subr.mxu0 0.0
        %1314 = vmatpush1.msra.mxu0 0.0
        %1315 = vmatprep.subr.mxu0 0.0
        %1316 = vmatpush1.msra.mxu0 0.0
        %1317 = vmatprep.subr.mxu0 0.0
        %1318 = vmatpush1.msra.mxu0 0.0
        %1319 = vmatprep.subr.mxu0 0.0
        %1320 = vmatpush1.msra.mxu0 0.0
        %1321 = vmatprep.subr.mxu0 0.0
        %1322 = vmatpush1.msra.mxu0 0.0
        %1323 = vmatprep.subr.mxu0 0.0
        %1324 = vmatpush1.msra.mxu0 0.0
        %1325 = vmatprep.subr.mxu0 0.0
        %1326 = vmatpush1.msra.mxu0 0.0
        %1327 = vmatprep.subr.mxu0 0.0
        %1328 = vmatpush1.msra.mxu0 0.0
        %1329 = vmatprep.subr.mxu0 0.0
        %1330 = vmatpush1.msra.mxu0 0.0
        %1331 = vmatprep.subr.mxu0 0.0
        %1332 = vmatpush1.msra.mxu0 0.0
        %1333 = vmatprep.mubr.f32.mxu0 0.0
        %1334 = vmatmul.mubr.f32.gmra.mrb[0].mxu0 %v1267
        %v1335 = vpop.f32.mrb[0].mxu0
        %v1336 = vadd.f32 %v1264, %v1335
        %v1337 = vpop.f32.mrb[0].mxu0
        %1338 = vdwg.mxu0
        %v1339 = vadd.f32 %v1336, %v477
        %v1340 = vld [vmem:[%s6] sm:$0x1]
        %v1341 = vld [vmem:[%s7] sm:$0x1]
        %v1342 = vsel %vm490, %v1339, 0.0
        %1343 = vadd.xlane.f32.xlu0 %v1342
        %v1344 = vpop.xlane.xlu0 %1343
        %v1345 = vrcp.pop 32.0
        %v1346 = vmul.f32 %v1344, %v1345
        %v1347 = vsub.f32 %v1339, %v1346
        %v1348 = vmul.f32 %v1347, %v1347
        %v1349 = vsel %vm490, %v1348, 0.0
        %1350 = vadd.xlane.f32.xlu0 %v1349
        %v1351 = vpop.xlane.xlu0 %1350
        %v1352 = vmul.f32 %v1351, %v1345
        %v1353 = vadd.f32 %v1352, 1e-12
        %v1354 = vrsqrt.pop %v1353
        %v1355 = vmul.f32 %v1347, %v1354
        %v1357 = vlaneseq
        %v1358 = vshrl.u32 %v1357, 7
        %v1359 = vsub.s32 0, %v1358
        %v1360 = vrot.slane %v1340, %v1359
        %v1362 = vmul.f32 %v1355, %v1360
        %v1364 = vlaneseq
        %v1365 = vshrl.u32 %v1364, 7
        %v1366 = vsub.s32 0, %v1365
        %v1367 = vrot.slane %v1341, %v1366
        %v1369 = vadd.f32 %v1362, %v1367
        %v1370 = vld [vmem:[%s8] sm:$0xff]
        %v1371 = vld [vmem:[%s8 + $0x8] sm:$0xff]
        %v1372 = vld [vmem:[%s8 + $0x10] sm:$0xff]
        %v1373 = vld [vmem:[%s8 + $0x18] sm:$0xff]
        %v1374 = vld [vmem:[%s9] sm:$0x1]
        %v1376 = vlaneseq
        %v1377 = vshrl.u32 %v1376, 7
        %v1378 = vsub.s32 0, %v1377
        %v1379 = vrot.slane %v1374, %v1378
        %v1382 = vsel %vm490, %v1369, 0
        %1384 = vmatprep.subr.mxu0 0.0
        %1385 = vmatpush1.msra.mxu0 %v1370
        %1386 = vmatprep.subr.mxu0 0.0
        %1387 = vmatpush1.msra.mxu0 %v1371
        %1388 = vmatprep.subr.mxu0 0.0
        %1389 = vmatpush1.msra.mxu0 %v1372
        %1390 = vmatprep.subr.mxu0 0.0
        %1391 = vmatpush1.msra.mxu0 %v1373
        %1392 = vmatprep.subr.mxu0 0.0
        %1393 = vmatpush1.msra.mxu0 0.0
        %1394 = vmatprep.subr.mxu0 0.0
        %1395 = vmatpush1.msra.mxu0 0.0
        %1396 = vmatprep.subr.mxu0 0.0
        %1397 = vmatpush1.msra.mxu0 0.0
        %1398 = vmatprep.subr.mxu0 0.0
        %1399 = vmatpush1.msra.mxu0 0.0
        %1400 = vmatprep.subr.mxu0 0.0
        %1401 = vmatpush1.msra.mxu0 0.0
        %1402 = vmatprep.subr.mxu0 0.0
        %1403 = vmatpush1.msra.mxu0 0.0
        %1404 = vmatprep.subr.mxu0 0.0
        %1405 = vmatpush1.msra.mxu0 0.0
        %1406 = vmatprep.subr.mxu0 0.0
        %1407 = vmatpush1.msra.mxu0 0.0
        %1408 = vmatprep.subr.mxu0 0.0
        %1409 = vmatpush1.msra.mxu0 0.0
        %1410 = vmatprep.subr.mxu0 0.0
        %1411 = vmatpush1.msra.mxu0 0.0
        %1412 = vmatprep.subr.mxu0 0.0
        %1413 = vmatpush1.msra.mxu0 0.0
        %1414 = vmatprep.subr.mxu0 0.0
        %1415 = vmatpush1.msra.mxu0 0.0
        %1416 = vmatprep.subr.mxu0 0.0
        %1417 = vmatpush1.msra.mxu0 0.0
        %1418 = vmatprep.subr.mxu0 0.0
        %1419 = vmatpush1.msra.mxu0 0.0
        %1420 = vmatprep.subr.mxu0 0.0
        %1421 = vmatpush1.msra.mxu0 0.0
        %1422 = vmatprep.subr.mxu0 0.0
        %1423 = vmatpush1.msra.mxu0 0.0
        %1424 = vmatprep.subr.mxu0 0.0
        %1425 = vmatpush1.msra.mxu0 0.0
        %1426 = vmatprep.subr.mxu0 0.0
        %1427 = vmatpush1.msra.mxu0 0.0
        %1428 = vmatprep.subr.mxu0 0.0
        %1429 = vmatpush1.msra.mxu0 0.0
        %1430 = vmatprep.subr.mxu0 0.0
        %1431 = vmatpush1.msra.mxu0 0.0
        %1432 = vmatprep.subr.mxu0 0.0
        %1433 = vmatpush1.msra.mxu0 0.0
        %1434 = vmatprep.subr.mxu0 0.0
        %1435 = vmatpush1.msra.mxu0 0.0
        %1436 = vmatprep.subr.mxu0 0.0
        %1437 = vmatpush1.msra.mxu0 0.0
        %1438 = vmatprep.subr.mxu0 0.0
        %1439 = vmatpush1.msra.mxu0 0.0
        %1440 = vmatprep.subr.mxu0 0.0
        %1441 = vmatpush1.msra.mxu0 0.0
        %1442 = vmatprep.subr.mxu0 0.0
        %1443 = vmatpush1.msra.mxu0 0.0
        %1444 = vmatprep.subr.mxu0 0.0
        %1445 = vmatpush1.msra.mxu0 0.0
        %1446 = vmatprep.subr.mxu0 0.0
        %1447 = vmatpush1.msra.mxu0 0.0
        %1448 = vmatprep.mubr.f32.mxu0 0.0
        %1449 = vmatmul.mubr.f32.gmra.mrb[0].mxu0 %v1382
        %v1450 = vpop.f32.mrb[0].mxu0
        %v1451 = vadd.f32 %v1379, %v1450
        %v1452 = vpop.f32.mrb[0].mxu0
        %1453 = vdwg.mxu0
        %v1454 = vmul.f32 %v1451, 0.5
        %v1455 = vmul.f32 %v1451, 0.044715
        %v1456 = vmul.f32 %v1455, %v1451
        %v1457 = vmul.f32 %v1456, %v1451
        %v1458 = vadd.f32 %v1451, %v1457
        %v1459 = vmul.f32 %v1458, 0.7978846
        %v1460 = vtanh.pop %v1459
        %v1461 = vadd.f32 %v1460, 1.0
        %v1462 = vmul.f32 %v1454, %v1461
        %v1463 = vld [vmem:[%s10] sm:$0xff]
        %v1464 = vld [vmem:[%s10 + $0x8] sm:$0xff]
        %v1465 = vld [vmem:[%s10 + $0x10] sm:$0xff]
        %v1466 = vld [vmem:[%s10 + $0x18] sm:$0xff]
        %v1467 = vld [vmem:[%s10 + $0x20] sm:$0xff]
        %v1468 = vld [vmem:[%s10 + $0x28] sm:$0xff]
        %v1469 = vld [vmem:[%s10 + $0x30] sm:$0xff]
        %v1470 = vld [vmem:[%s10 + $0x38] sm:$0xff]
        %v1471 = vld [vmem:[%s11] sm:$0x1]
        %v1473 = vlaneseq
        %v1474 = vshrl.u32 %v1473, 7
        %v1475 = vsub.s32 0, %v1474
        %v1476 = vrot.slane %v1471, %v1475
        %vm1478 = vcmask 523264
        %v1480 = vsel %vm1478, %v1462, 0
        %1482 = vmatprep.subr.mxu0 0.0
        %1483 = vmatpush1.msra.mxu0 %v1463
        %1484 = vmatprep.subr.mxu0 0.0
        %1485 = vmatpush1.msra.mxu0 %v1464
        %1486 = vmatprep.subr.mxu0 0.0
        %1487 = vmatpush1.msra.mxu0 %v1465
        %1488 = vmatprep.subr.mxu0 0.0
        %1489 = vmatpush1.msra.mxu0 %v1466
        %1490 = vmatprep.subr.mxu0 0.0
        %1491 = vmatpush1.msra.mxu0 %v1467
        %1492 = vmatprep.subr.mxu0 0.0
        %1493 = vmatpush1.msra.mxu0 %v1468
        %1494 = vmatprep.subr.mxu0 0.0
        %1495 = vmatpush1.msra.mxu0 %v1469
        %1496 = vmatprep.subr.mxu0 0.0
        %1497 = vmatpush1.msra.mxu0 %v1470
        %1498 = vmatprep.subr.mxu0 0.0
        %1499 = vmatpush1.msra.mxu0 0.0
        %1500 = vmatprep.subr.mxu0 0.0
        %1501 = vmatpush1.msra.mxu0 0.0
        %1502 = vmatprep.subr.mxu0 0.0
        %1503 = vmatpush1.msra.mxu0 0.0
        %1504 = vmatprep.subr.mxu0 0.0
        %1505 = vmatpush1.msra.mxu0 0.0
        %1506 = vmatprep.subr.mxu0 0.0
        %1507 = vmatpush1.msra.mxu0 0.0
        %1508 = vmatprep.subr.mxu0 0.0
        %1509 = vmatpush1.msra.mxu0 0.0
        %1510 = vmatprep.subr.mxu0 0.0
        %1511 = vmatpush1.msra.mxu0 0.0
        %1512 = vmatprep.subr.mxu0 0.0
        %1513 = vmatpush1.msra.mxu0 0.0
        %1514 = vmatprep.subr.mxu0 0.0
        %1515 = vmatpush1.msra.mxu0 0.0
        %1516 = vmatprep.subr.mxu0 0.0
        %1517 = vmatpush1.msra.mxu0 0.0
        %1518 = vmatprep.subr.mxu0 0.0
        %1519 = vmatpush1.msra.mxu0 0.0
        %1520 = vmatprep.subr.mxu0 0.0
        %1521 = vmatpush1.msra.mxu0 0.0
        %1522 = vmatprep.subr.mxu0 0.0
        %1523 = vmatpush1.msra.mxu0 0.0
        %1524 = vmatprep.subr.mxu0 0.0
        %1525 = vmatpush1.msra.mxu0 0.0
        %1526 = vmatprep.subr.mxu0 0.0
        %1527 = vmatpush1.msra.mxu0 0.0
        %1528 = vmatprep.subr.mxu0 0.0
        %1529 = vmatpush1.msra.mxu0 0.0
        %1530 = vmatprep.subr.mxu0 0.0
        %1531 = vmatpush1.msra.mxu0 0.0
        %1532 = vmatprep.subr.mxu0 0.0
        %1533 = vmatpush1.msra.mxu0 0.0
        %1534 = vmatprep.subr.mxu0 0.0
        %1535 = vmatpush1.msra.mxu0 0.0
        %1536 = vmatprep.subr.mxu0 0.0
        %1537 = vmatpush1.msra.mxu0 0.0
        %1538 = vmatprep.subr.mxu0 0.0
        %1539 = vmatpush1.msra.mxu0 0.0
        %1540 = vmatprep.subr.mxu0 0.0
        %1541 = vmatpush1.msra.mxu0 0.0
        %1542 = vmatprep.subr.mxu0 0.0
        %1543 = vmatpush1.msra.mxu0 0.0
        %1544 = vmatprep.subr.mxu0 0.0
        %1545 = vmatpush1.msra.mxu0 0.0
        %1546 = vmatprep.mubr.f32.mxu0 0.0
        %1547 = vmatmul.mubr.f32.gmra.mrb[0].mxu0 %v1480
        %v1548 = vpop.f32.mrb[0].mxu0
        %v1549 = vadd.f32 %v1476, %v1548
        %v1550 = vpop.f32.mrb[0].mxu0
        %1551 = vdwg.mxu0
        %v1552 = vadd.f32 %v1549, %v1369
        %v1553 = vld [vmem:[%s12] sm:$0x1]
        %v1554 = vld [vmem:[%s13] sm:$0x1]
        %v1555 = vsel %vm490, %v1552, 0.0
        %1556 = vadd.xlane.f32.xlu0 %v1555
        %v1557 = vpop.xlane.xlu0 %1556
        %v1558 = vmul.f32 %v1557, %v1345
        %v1559 = vsub.f32 %v1552, %v1558
        %v1560 = vmul.f32 %v1559, %v1559
        %v1561 = vsel %vm490, %v1560, 0.0
        %1562 = vadd.xlane.f32.xlu0 %v1561
        %v1563 = vpop.xlane.xlu0 %1562
        %v1564 = vmul.f32 %v1563, %v1345
        %v1565 = vadd.f32 %v1564, 1e-12
        %v1566 = vrsqrt.pop %v1565
        %v1567 = vmul.f32 %v1559, %v1566
        %v1569 = vlaneseq
        %v1570 = vshrl.u32 %v1569, 7
        %v1571 = vsub.s32 0, %v1570
        %v1572 = vrot.slane %v1553, %v1571
        %v1574 = vmul.f32 %v1567, %v1572
        %v1576 = vlaneseq
        %v1577 = vshrl.u32 %v1576, 7
        %v1578 = vsub.s32 0, %v1577
        %v1579 = vrot.slane %v1554, %v1578
        %v1581 = vadd.f32 %v1574, %v1579
        %1582 = vst.msk [vmem:[%s469] sm:$0xff] %vm490, %v1581
        %s1583 = sand.u32 %s340, 1
        %s1584 = scalar_lea.sflag [#allocation3], %s1583
        %s1585 = sand.u32 %s340, 1
        %s1586 = smul.addr %s1585, 8
        %s1587 = scalar_lea.vmem [#allocation2], %s1586
        // Predicated region
        $region77: #{bert_forward.5} parent=75 // pred_check
          %p1588 = pneg %p350
        $region78: #{bert_forward.5} parent=75 // pred_check_branch
          %1590 = sbr.rel (%p1588) target = $region80
        $region79: #{bert_forward.5} parent=75 // pred_region
          %s1592 = ssub.s32 128, 128
          %1593 = vsyncadd %s1584, %s1592
          %s1594 = smul.addr %s28, 128
          %s1595 = scalar_lea.hbm %s14, %s1594
          %s1597 = sshll.u32 %s1587, 4
          %s1598 = int_to_ptr.vmem [resolvable:$true] %s1597
          %1600 = dma.vmem_to_hbm [thread:$0]  %s1598, 128, %s1595, %s1584
        $region80: #{bert_forward.5} parent=75 // pred_fallthru
          _
      $region76: #{bert_forward.5} parent=5 // pred_fallthru
        _
      %p1601 = scmp.le.s32.totalorder 2, %s23
      // Predicated region
      $region81: #{bert_forward.5} parent=5 // pred_check
        %p1602 = pneg %p1601
      $region82: #{bert_forward.5} parent=5 // pred_check_branch
        %1604 = sbr.rel (%p1602) target = $region84
      $region83: #{bert_forward.5} parent=5 // pred_region
        %s1605 = ssub.s32 %s23, 2
        // Predicated region
        $region85: #{bert_forward.5} parent=83 // pred_check
          %p1606 = pneg %p356
        $region86: #{bert_forward.5} parent=83 // pred_check_branch
          %1608 = sbr.rel (%p1606) target = $region88
        $region87: #{bert_forward.5} parent=83 // pred_region
          %s1609 = sand.u32 %s341, 1
          %s1610 = scalar_lea.sflag [#allocation3], %s1609
          %s1611 = sand.u32 %s341, 1
          %s1612 = smul.addr %s1611, 8
          %s1613 = scalar_lea.vmem [#allocation2], %s1612
          %1614 = dma.done %s1610, 128
        $region88: #{bert_forward.5} parent=83 // pred_fallthru
          _
      $region84: #{bert_forward.5} parent=5 // pred_fallthru
        _
    $region6: #{bert_forward.5} parent=1 // loop_footer
      %s27 = sadd.s32 1, %s23
    $region7: #{bert_forward.5} parent=1 // loop_footer_branch
      %22 = sbr.rel target = $region3
    $region8: #{bert_forward.5} parent=1 // loop_exit
      _
    %1615 = vsyncpa [#allocation3], 1
    %s1616 = scalar_lea.sflag [#allocation3], 1
    %1617 = vsyncpa %s1616, 1

</llo_original>
